<compile_context>
chip_gen: v5e
topology: v5e:2x2
jax: 0.10.0
libtpu: 0.0.40
codegen_flags: <defaults>
</compile_context>

<pallas_src>
import jax
import jax.numpy as jnp
from jax.experimental import pallas as pl
from jax.experimental.pallas import tpu as pltpu


def _disc_kernel(c1_ref, c2_ref, wt_ref, b_ref,
                 h1_ref, h2_ref, h3_ref, h4_ref,
                 sc1_ref, sc2_ref, sc3_ref, sc4_ref):
    # Bilinear projection of the two graph summaries:
    #   t_k[b, i] = sum_j W[i, j] * c_k[b, j]   (== c_k @ W^T), exact f32.
    wt = wt_ref[...].astype(jnp.float32)                        # (F, F) resident
    c1 = c1_ref[...].astype(jnp.float32)                        # (B, F) resident
    c2 = c2_ref[...].astype(jnp.float32)                        # (B, F) resident
    t1 = jnp.sum(c1[:, :, None] * wt[None, :, :], axis=1)       # (B, F)
    t2 = jnp.sum(c2[:, :, None] * wt[None, :, :], axis=1)       # (B, F)
    bias = b_ref[...]                                           # (1, 1), broadcasts

    def _score(h_ref, t, out_ref):
        # sc[b, n] = <h[b, n, :], t[b, :]> + bias
        # (VPU multiply + XLU lane reduce; the kernel is HBM-bandwidth-bound,
        #  so routing this through the MXU would not change wall time.)
        h = h_ref[...].astype(jnp.float32)                      # (B, TN, F)
        s = jnp.sum(h * t[:, None, :], axis=-1) + bias          # (B, TN), f32
        out_ref[...] = s.astype(out_ref.dtype)

    _score(h2_ref, t1, sc1_ref)   # sc_1 = f_k(h2, c1)
    _score(h1_ref, t2, sc2_ref)   # sc_2 = f_k(h1, c2)
    _score(h4_ref, t1, sc3_ref)   # sc_3 = f_k(h4, c1)
    _score(h3_ref, t2, sc4_ref)   # sc_4 = f_k(h3, c2)


def _pick_block_n(B, N, F, itemsize=4, tile_budget_bytes=2 << 20):
    """Largest 128-aligned node tile keeping one (B, TN, F) buffer <= ~2 MiB.

    4 streamed inputs x 2 pipeline buffers x ~2 MiB ~= 16 MiB of streamed VMEM,
    comfortably inside the scoped VMEM limit on v5e/v6e/v7x.
    """
    if N <= 512:
        return N            # single node block: no (8, 128) tiling constraint
    cap = (tile_budget_bytes // (B * F * itemsize)) // 128 * 128
    return int(max(128, min(512, cap)))


def discriminator_forward(c1, c2, h1, h2, h3, h4, weight, bias,
                          s_bias1=None, s_bias2=None, *, block_n=None):
    """Pallas implementation of Discriminator.forward.

    c1, c2 : (B, F)      graph summary vectors
    h1..h4 : (B, N, F)   node embeddings
    weight : (1, F, F) or (F, F)   nn.Bilinear weight
    bias   : scalar / (1,)         nn.Bilinear bias
    returns  (B, 4N) logits = cat([f_k(h2,c1), f_k(h1,c2), f_k(h4,c1), f_k(h3,c2)], 1)
    """
    # s_bias1 / s_bias2 are accepted for signature parity with the PyTorch
    # module but are never used in its forward body.
    del s_bias1, s_bias2

    B, N, F = h1.shape
    w = jnp.asarray(weight, jnp.float32).reshape(F, F)
    wt = w.T                                         # tiny trace-time transpose
    b2 = jnp.asarray(bias, jnp.float32).reshape(1, 1)
    out_dtype = h1.dtype

    if block_n is None:
        block_n = _pick_block_n(B, N, F)
    block_n = int(min(block_n, N))
    if block_n < N and block_n % 128 != 0:
        block_n = N      # lane-dim output tiles must be 128-aligned unless full

    n_pad = pl.cdiv(N, block_n) * block_n
    if n_pad != N:       # pad nodes so the tile evenly divides; sliced off below
        pad = ((0, 0), (0, n_pad - N), (0, 0))
        h1, h2, h3, h4 = tuple(jnp.pad(h, pad) for h in (h1, h2, h3, h4))

    grid = (n_pad // block_n,)

    c_spec = pl.BlockSpec((B, F), lambda j: (0, 0))              # resident
    w_spec = pl.BlockSpec((F, F), lambda j: (0, 0))              # resident
    b_spec = pl.BlockSpec((1, 1), lambda j: (0, 0))              # resident
    h_spec = pl.BlockSpec((B, block_n, F), lambda j: (0, j, 0))  # streamed
    o_spec = pl.BlockSpec((B, block_n), lambda j: (0, j))        # streamed

    out_shape = tuple(jax.ShapeDtypeStruct((B, n_pad), out_dtype)
                      for _ in range(4))

    sc1, sc2, sc3, sc4 = pl.pallas_call(
        _disc_kernel,
        out_shape=out_shape,
        grid_spec=pltpu.PrefetchScalarGridSpec(
            num_scalar_prefetch=0,
            grid=grid,
            in_specs=[c_spec, c_spec, w_spec, b_spec,
                      h_spec, h_spec, h_spec, h_spec],
            out_specs=[o_spec, o_spec, o_spec, o_spec],
        ),
        compiler_params=pltpu.CompilerParams(
            dimension_semantics=("parallel",),
            vmem_limit_bytes=32 * 1024 * 1024,
        ),
    )(c1, c2, wt, b2, h1, h2, h3, h4)

    if n_pad != N:
        sc1, sc2, sc3, sc4 = (s[:, :N] for s in (sc1, sc2, sc3, sc4))
    return jnp.concatenate([sc1, sc2, sc3, sc4], axis=1)


if __name__ == "__main__":
    key = jax.random.PRNGKey(0)
    kc1, kc2, kh1, kh2, kh3, kh4, kw = jax.random.split(key, 7)

    B, N, F = 2, 256, 64     # batch, nodes, hidden (n_h)
    c1 = jax.random.normal(kc1, (B, F), dtype=jnp.float32)
    c2 = jax.random.normal(kc2, (B, F), dtype=jnp.float32)
    h1 = jax.random.normal(kh1, (B, N, F), dtype=jnp.float32)
    h2 = jax.random.normal(kh2, (B, N, F), dtype=jnp.float32)
    h3 = jax.random.normal(kh3, (B, N, F), dtype=jnp.float32)
    h4 = jax.random.normal(kh4, (B, N, F), dtype=jnp.float32)

    # nn.Bilinear(n_h, n_h, 1): weight (1, F, F) xavier-uniform-ish; bias (1,)
    # (the module inits it to 0 — use a nonzero value to exercise the bias add).
    limit = (6.0 / (F + F)) ** 0.5
    weight = jax.random.uniform(kw, (1, F, F), minval=-limit, maxval=limit,
                                dtype=jnp.float32)
    bias = jnp.asarray([0.05], dtype=jnp.float32)

    # block_n=128 -> grid of 2 node tiles, exercising the tiled/pipelined path.
    logits = jax.block_until_ready(
        discriminator_forward(c1, c2, h1, h2, h3, h4, weight, bias,
                              block_n=128))

    # Pure-JAX reference mirroring the PyTorch forward (exact f32 contraction).
    w_ref = weight.reshape(F, F)

    def f_k_ref(h, c):
        return jnp.einsum('bnf,fg,bg->bn', h, w_ref, c,
                          precision=jax.lax.Precision.HIGHEST) + bias[0]

    ref = jnp.concatenate(
        [f_k_ref(h2, c1), f_k_ref(h1, c2), f_k_ref(h4, c1), f_k_ref(h3, c2)],
        axis=1)

    assert logits.shape == (B, 4 * N), logits.shape
    assert jnp.allclose(logits, ref, rtol=1e-4, atol=1e-4), \
        float(jnp.max(jnp.abs(logits - ref)))

    print("KERNEL_OK")
</pallas_src>

<mosaic_0001>
module attributes {stable_mosaic.version = 11 : i64} {
  func.func @_disc_kernel(%arg0: i32, %arg1: memref<2x64xf32, #tpu.memory_space<vmem>>, %arg2: memref<2x64xf32, #tpu.memory_space<vmem>>, %arg3: memref<64x64xf32, #tpu.memory_space<vmem>>, %arg4: memref<1x1xf32, #tpu.memory_space<vmem>>, %arg5: memref<2x128x64xf32, #tpu.memory_space<vmem>>, %arg6: memref<2x128x64xf32, #tpu.memory_space<vmem>>, %arg7: memref<2x128x64xf32, #tpu.memory_space<vmem>>, %arg8: memref<2x128x64xf32, #tpu.memory_space<vmem>>, %arg9: memref<2x128xf32, #tpu.memory_space<vmem>>, %arg10: memref<2x128xf32, #tpu.memory_space<vmem>>, %arg11: memref<2x128xf32, #tpu.memory_space<vmem>>, %arg12: memref<2x128xf32, #tpu.memory_space<vmem>>) attributes {dimension_semantics = [#tpu.dimension_semantics<parallel>], iteration_bounds = array<i64: 2>, scalar_prefetch = 0 : i64, scratch_operands = 0 : i64, tpu.core_type = #tpu.core_type<tc>, window_params = [{pipeline_mode = #tpu.pipeline_mode<synchronous>, transform_indices = @transform_0, window_bounds = array<i64: 2, 64>}, {pipeline_mode = #tpu.pipeline_mode<synchronous>, transform_indices = @transform_1, window_bounds = array<i64: 2, 64>}, {pipeline_mode = #tpu.pipeline_mode<synchronous>, transform_indices = @transform_2, window_bounds = array<i64: 64, 64>}, {pipeline_mode = #tpu.pipeline_mode<synchronous>, transform_indices = @transform_3, window_bounds = array<i64: 1, 1>}, {transform_indices = @transform_4, window_bounds = array<i64: 2, 128, 64>}, {transform_indices = @transform_5, window_bounds = array<i64: 2, 128, 64>}, {transform_indices = @transform_6, window_bounds = array<i64: 2, 128, 64>}, {transform_indices = @transform_7, window_bounds = array<i64: 2, 128, 64>}, {transform_indices = @transform_8, window_bounds = array<i64: 2, 128>}, {transform_indices = @transform_9, window_bounds = array<i64: 2, 128>}, {transform_indices = @transform_10, window_bounds = array<i64: 2, 128>}, {transform_indices = @transform_11, window_bounds = array<i64: 2, 128>}]} {
    %c0 = arith.constant 0 : index
    %c0_0 = arith.constant 0 : index
    %0 = vector.load %arg3[%c0, %c0_0] : memref<64x64xf32, #tpu.memory_space<vmem>>, vector<64x64xf32>
    %c0_1 = arith.constant 0 : index
    %c0_2 = arith.constant 0 : index
    %1 = vector.load %arg1[%c0_1, %c0_2] : memref<2x64xf32, #tpu.memory_space<vmem>>, vector<2x64xf32>
    %c0_3 = arith.constant 0 : index
    %c0_4 = arith.constant 0 : index
    %2 = vector.load %arg2[%c0_3, %c0_4] : memref<2x64xf32, #tpu.memory_space<vmem>>, vector<2x64xf32>
    %3 = vector.shape_cast %1 : vector<2x64xf32> to vector<2x64x1xf32>
    %4 = vector.shape_cast %0 : vector<64x64xf32> to vector<1x64x64xf32>
    %5 = vector.broadcast %3 : vector<2x64x1xf32> to vector<2x64x64xf32>
    %6 = vector.broadcast %4 : vector<1x64x64xf32> to vector<2x64x64xf32>
    %7 = arith.mulf %5, %6 : vector<2x64x64xf32>
    %cst = arith.constant dense<0.000000e+00> : vector<2x64xf32>
    %8 = vector.multi_reduction <add>, %7, %cst [1] : vector<2x64x64xf32> to vector<2x64xf32>
    %9 = vector.shape_cast %2 : vector<2x64xf32> to vector<2x64x1xf32>
    %10 = vector.shape_cast %0 : vector<64x64xf32> to vector<1x64x64xf32>
    %11 = vector.broadcast %9 : vector<2x64x1xf32> to vector<2x64x64xf32>
    %12 = vector.broadcast %10 : vector<1x64x64xf32> to vector<2x64x64xf32>
    %13 = arith.mulf %11, %12 : vector<2x64x64xf32>
    %cst_5 = arith.constant dense<0.000000e+00> : vector<2x64xf32>
    %14 = vector.multi_reduction <add>, %13, %cst_5 [1] : vector<2x64x64xf32> to vector<2x64xf32>
    %c0_6 = arith.constant 0 : index
    %c0_7 = arith.constant 0 : index
    %15 = vector.load %arg4[%c0_6, %c0_7] : memref<1x1xf32, #tpu.memory_space<vmem>>, vector<1x1xf32>
    %c0_8 = arith.constant 0 : index
    %c0_9 = arith.constant 0 : index
    %c0_10 = arith.constant 0 : index
    %16 = vector.load %arg6[%c0_8, %c0_9, %c0_10] : memref<2x128x64xf32, #tpu.memory_space<vmem>>, vector<2x128x64xf32>
    %17 = vector.shape_cast %8 : vector<2x64xf32> to vector<2x1x64xf32>
    %18 = vector.broadcast %17 : vector<2x1x64xf32> to vector<2x128x64xf32>
    %19 = arith.mulf %16, %18 : vector<2x128x64xf32>
    %cst_11 = arith.constant dense<0.000000e+00> : vector<2x128xf32>
    %20 = vector.multi_reduction <add>, %19, %cst_11 [2] : vector<2x128x64xf32> to vector<2x128xf32>
    %21 = vector.broadcast %15 : vector<1x1xf32> to vector<2x128xf32>
    %22 = arith.addf %20, %21 : vector<2x128xf32>
    %c0_12 = arith.constant 0 : index
    %c0_13 = arith.constant 0 : index
    %23 = vector.load %arg9[%c0_12, %c0_13] : memref<2x128xf32, #tpu.memory_space<vmem>>, vector<2x128xf32>
    tpu.vector_store %arg9[%c0_12, %c0_13], %22 {strides = array<i32>} : memref<2x128xf32, #tpu.memory_space<vmem>>, vector<2x128xf32>,
    %c0_14 = arith.constant 0 : index
    %c0_15 = arith.constant 0 : index
    %c0_16 = arith.constant 0 : index
    %24 = vector.load %arg5[%c0_14, %c0_15, %c0_16] : memref<2x128x64xf32, #tpu.memory_space<vmem>>, vector<2x128x64xf32>
    %25 = vector.shape_cast %14 : vector<2x64xf32> to vector<2x1x64xf32>
    %26 = vector.broadcast %25 : vector<2x1x64xf32> to vector<2x128x64xf32>
    %27 = arith.mulf %24, %26 : vector<2x128x64xf32>
    %cst_17 = arith.constant dense<0.000000e+00> : vector<2x128xf32>
    %28 = vector.multi_reduction <add>, %27, %cst_17 [2] : vector<2x128x64xf32> to vector<2x128xf32>
    %29 = vector.broadcast %15 : vector<1x1xf32> to vector<2x128xf32>
    %30 = arith.addf %28, %29 : vector<2x128xf32>
    %c0_18 = arith.constant 0 : index
    %c0_19 = arith.constant 0 : index
    %31 = vector.load %arg10[%c0_18, %c0_19] : memref<2x128xf32, #tpu.memory_space<vmem>>, vector<2x128xf32>
    tpu.vector_store %arg10[%c0_18, %c0_19], %30 {strides = array<i32>} : memref<2x128xf32, #tpu.memory_space<vmem>>, vector<2x128xf32>,
    %c0_20 = arith.constant 0 : index
    %c0_21 = arith.constant 0 : index
    %c0_22 = arith.constant 0 : index
    %32 = vector.load %arg8[%c0_20, %c0_21, %c0_22] : memref<2x128x64xf32, #tpu.memory_space<vmem>>, vector<2x128x64xf32>
    %33 = vector.shape_cast %8 : vector<2x64xf32> to vector<2x1x64xf32>
    %34 = vector.broadcast %33 : vector<2x1x64xf32> to vector<2x128x64xf32>
    %35 = arith.mulf %32, %34 : vector<2x128x64xf32>
    %cst_23 = arith.constant dense<0.000000e+00> : vector<2x128xf32>
    %36 = vector.multi_reduction <add>, %35, %cst_23 [2] : vector<2x128x64xf32> to vector<2x128xf32>
    %37 = vector.broadcast %15 : vector<1x1xf32> to vector<2x128xf32>
    %38 = arith.addf %36, %37 : vector<2x128xf32>
    %c0_24 = arith.constant 0 : index
    %c0_25 = arith.constant 0 : index
    %39 = vector.load %arg11[%c0_24, %c0_25] : memref<2x128xf32, #tpu.memory_space<vmem>>, vector<2x128xf32>
    tpu.vector_store %arg11[%c0_24, %c0_25], %38 {strides = array<i32>} : memref<2x128xf32, #tpu.memory_space<vmem>>, vector<2x128xf32>,
    %c0_26 = arith.constant 0 : index
    %c0_27 = arith.constant 0 : index
    %c0_28 = arith.constant 0 : index
    %40 = vector.load %arg7[%c0_26, %c0_27, %c0_28] : memref<2x128x64xf32, #tpu.memory_space<vmem>>, vector<2x128x64xf32>
    %41 = vector.shape_cast %14 : vector<2x64xf32> to vector<2x1x64xf32>
    %42 = vector.broadcast %41 : vector<2x1x64xf32> to vector<2x128x64xf32>
    %43 = arith.mulf %40, %42 : vector<2x128x64xf32>
    %cst_29 = arith.constant dense<0.000000e+00> : vector<2x128xf32>
    %44 = vector.multi_reduction <add>, %43, %cst_29 [2] : vector<2x128x64xf32> to vector<2x128xf32>
    %45 = vector.broadcast %15 : vector<1x1xf32> to vector<2x128xf32>
    %46 = arith.addf %44, %45 : vector<2x128xf32>
    %c0_30 = arith.constant 0 : index
    %c0_31 = arith.constant 0 : index
    %47 = vector.load %arg12[%c0_30, %c0_31] : memref<2x128xf32, #tpu.memory_space<vmem>>, vector<2x128xf32>
    tpu.vector_store %arg12[%c0_30, %c0_31], %46 {strides = array<i32>} : memref<2x128xf32, #tpu.memory_space<vmem>>, vector<2x128xf32>,
    return
  }
  func.func @transform_0(%arg0: i32) -> (i32, i32) {
    %c0_i32 = arith.constant 0 : i32
    %c0_i32_0 = arith.constant 0 : i32
    %c0_i32_1 = arith.constant 0 : i32
    return %c0_i32, %c0_i32_0 : i32, i32
  }
  func.func @transform_1(%arg0: i32) -> (i32, i32) {
    %c0_i32 = arith.constant 0 : i32
    %c0_i32_0 = arith.constant 0 : i32
    %c0_i32_1 = arith.constant 0 : i32
    return %c0_i32, %c0_i32_0 : i32, i32
  }
  func.func @transform_2(%arg0: i32) -> (i32, i32) {
    %c0_i32 = arith.constant 0 : i32
    %c0_i32_0 = arith.constant 0 : i32
    %c0_i32_1 = arith.constant 0 : i32
    return %c0_i32, %c0_i32_0 : i32, i32
  }
  func.func @transform_3(%arg0: i32) -> (i32, i32) {
    %c0_i32 = arith.constant 0 : i32
    %c0_i32_0 = arith.constant 0 : i32
    %c0_i32_1 = arith.constant 0 : i32
    return %c0_i32, %c0_i32_0 : i32, i32
  }
  func.func @transform_4(%arg0: i32) -> (i32, i32, i32) {
    %c0_i32 = arith.constant 0 : i32
    %c0_i32_0 = arith.constant 0 : i32
    %c0_i32_1 = arith.constant 0 : i32
    return %c0_i32, %arg0, %c0_i32_0 : i32, i32, i32
  }
  func.func @transform_5(%arg0: i32) -> (i32, i32, i32) {
    %c0_i32 = arith.constant 0 : i32
    %c0_i32_0 = arith.constant 0 : i32
    %c0_i32_1 = arith.constant 0 : i32
    return %c0_i32, %arg0, %c0_i32_0 : i32, i32, i32
  }
  func.func @transform_6(%arg0: i32) -> (i32, i32, i32) {
    %c0_i32 = arith.constant 0 : i32
    %c0_i32_0 = arith.constant 0 : i32
    %c0_i32_1 = arith.constant 0 : i32
    return %c0_i32, %arg0, %c0_i32_0 : i32, i32, i32
  }
  func.func @transform_7(%arg0: i32) -> (i32, i32, i32) {
    %c0_i32 = arith.constant 0 : i32
    %c0_i32_0 = arith.constant 0 : i32
    %c0_i32_1 = arith.constant 0 : i32
    return %c0_i32, %arg0, %c0_i32_0 : i32, i32, i32
  }
  func.func @transform_8(%arg0: i32) -> (i32, i32) {
    %c0_i32 = arith.constant 0 : i32
    %c0_i32_0 = arith.constant 0 : i32
    return %c0_i32, %arg0 : i32, i32
  }
  func.func @transform_9(%arg0: i32) -> (i32, i32) {
    %c0_i32 = arith.constant 0 : i32
    %c0_i32_0 = arith.constant 0 : i32
    return %c0_i32, %arg0 : i32, i32
  }
  func.func @transform_10(%arg0: i32) -> (i32, i32) {
    %c0_i32 = arith.constant 0 : i32
    %c0_i32_0 = arith.constant 0 : i32
    return %c0_i32, %arg0 : i32, i32
  }
  func.func @transform_11(%arg0: i32) -> (i32, i32) {
    %c0_i32 = arith.constant 0 : i32
    %c0_i32_0 = arith.constant 0 : i32
    return %c0_i32, %arg0 : i32, i32
  }
}

</mosaic_0001>

<llo_original>
// kernel: tpu_custom_call.1
$region0: #{tpu_custom_call.1}
  #allocation0 [shape = 'u32[]', space=smem, size = 0x4, offset = 0x4, fixed_abs, tag = 'smem constant byte address 0x4 - core index']
  #allocation1 [shape = 'u32[72,128]{1,0:T(1,128)}', space=vmem, size = 0x9000, scoped, tag = 'internal scratch']
  #allocation2 [shape = 'f32[1,1]{1,0:T(1,128)S(1)}', space=vmem, size = 0x200, scoped, tag = 'scoped memory for tpu_custom_call.1']
  %s0 = inlined_call_operand.vmem [shape: f32[2,64], index: 0, kind: input, shape index: {}]
  %s1 = inlined_call_operand.vmem [shape: f32[2,64], index: 1, kind: input, shape index: {}]
  %s2 = inlined_call_operand.vmem [shape: f32[64,64], index: 2, kind: input, shape index: {}]
  %s3 = inlined_call_operand.<no memory space> [shape: f32[1,1], index: 3, kind: input, shape index: {}]
  %s4 = inlined_call_operand.vmem [shape: f32[2,256,64], index: 4, kind: input, shape index: {}]
  %s5 = inlined_call_operand.vmem [shape: f32[2,256,64], index: 5, kind: input, shape index: {}]
  %s6 = inlined_call_operand.vmem [shape: f32[2,256,64], index: 6, kind: input, shape index: {}]
  %s7 = inlined_call_operand.vmem [shape: f32[2,256,64], index: 7, kind: input, shape index: {}]
  %s8 = inlined_call_operand.hbm [shape: f32[2,256], index: 8, kind: output, shape index: {0}]
  %s9 = inlined_call_operand.hbm [shape: f32[2,256], index: 9, kind: output, shape index: {1}]
  %s10 = inlined_call_operand.hbm [shape: f32[2,256], index: 10, kind: output, shape index: {2}]
  %s11 = inlined_call_operand.hbm [shape: f32[2,256], index: 11, kind: output, shape index: {3}]
  %12 = xla_tuple %s8, %s9, %s10, %s11
  %s13 = sld [smem:[#allocation0]]
  $region241: #{tpu_custom_call.1} parent=0
    _
  %s15 = ssub.s32 1, %s13
  %s16 = scalar_select 0, %s15, %s13
  %v17 = vstv %s3
  %18 = vst [vmem:[#allocation2] sm:$0x1] %v17
  $region1: #{tpu_custom_call.1} parent=0
    #allocation3 [shape = 'u8[262144]{0}', space=vmem, size = 0x40000, scoped, tag = 'input window, operand 4']
    #allocation4 [shape = 'u8[262144]{0}', space=vmem, size = 0x40000, scoped, tag = 'input window, operand 5']
    #allocation5 [shape = 'u8[262144]{0}', space=vmem, size = 0x40000, scoped, tag = 'input window, operand 6']
    #allocation6 [shape = 'u8[262144]{0}', space=vmem, size = 0x40000, scoped, tag = 'input window, operand 7']
    #allocation7 [shape = 'u8[2048]{0}', space=vmem, size = 0x800, scoped, tag = 'output window, operand 0']
    #allocation8 [shape = 's32[2]{0}', space=sflag, size = 0x8, scoped, tag = 'scoped memory for tpu_custom_call.1']
    #allocation9 [shape = 'u8[2048]{0}', space=vmem, size = 0x800, scoped, tag = 'output window, operand 1']
    #allocation10 [shape = 's32[2]{0}', space=sflag, size = 0x8, scoped, tag = 'scoped memory for tpu_custom_call.1']
    #allocation11 [shape = 'u8[2048]{0}', space=vmem, size = 0x800, scoped, tag = 'output window, operand 2']
    #allocation12 [shape = 'u8[2048]{0}', space=vmem, size = 0x800, scoped, tag = 'output window, operand 3']
    #allocation13 [shape = 's32[2]{0}', space=sflag, size = 0x8, scoped, tag = 'scoped memory for tpu_custom_call.1']
    %19 = vsyncpa [#allocation8], 0
    %s20 = scalar_lea.sflag [#allocation8], 1
    %21 = vsyncpa %s20, 0
    %22 = vsyncpa [#allocation10], 0
    %s23 = scalar_lea.sflag [#allocation10], 1
    %24 = vsyncpa %s23, 0
    %25 = vsyncpa [#allocation13], 0
    %s26 = scalar_lea.sflag [#allocation13], 1
    %27 = vsyncpa %s26, 0
    loop: start=0, step=1, limit=4
    $region2: #{tpu_custom_call.1} parent=1 // loop_pre_header
      _
    $region3: #{tpu_custom_call.1} parent=1 // loop_header
      %s29 = sphi 0, %s33
      %p30 = scmp.ge.s32.totalorder %s29, 4
      %s37 = sphi 0, %s37
      %s39 = sphi 0, %s37
      %s40 = sphi 0, %s39
      %s54 = sphi 0, %s40
      %s58 = sphi 0, %s58
      %s60 = sphi 0, %s58
      %s61 = sphi 0, %s60
      %s75 = sphi 0, %s61
      %s79 = sphi 0, %s79
      %s81 = sphi 0, %s79
      %s82 = sphi 0, %s81
      %s96 = sphi 0, %s82
      %s100 = sphi 0, %s100
      %s102 = sphi 0, %s100
      %s103 = sphi 0, %s102
      %s117 = sphi 0, %s103
      %s123 = sphi 0, %s125
      %s126 = sphi 0, %s123
      %s127 = sphi 0, %s126
      %s143 = sphi 0, %s127
      %s149 = sphi 0, %s151
      %s152 = sphi 0, %s149
      %s153 = sphi 0, %s152
      %s169 = sphi 0, %s153
      %s175 = sphi 0, %s177
      %s178 = sphi 0, %s175
      %s179 = sphi 0, %s178
      %s195 = sphi 0, %s179
      %s201 = sphi 0, %s203
      %s204 = sphi 0, %s201
      %s205 = sphi 0, %s204
      %s221 = sphi 0, %s205
      %s227 = sphi 0, %s229
      %s230 = sphi 0, %s227
      %s231 = sphi 0, %s230
      %s247 = sphi 0, %s231
      %s253 = sphi 0, %s255
      %s256 = sphi 0, %s253
      %s257 = sphi 0, %s256
      %s273 = sphi 0, %s257
      %s279 = sphi 0, %s281
      %s282 = sphi 0, %s279
      %s283 = sphi 0, %s282
      %s299 = sphi 0, %s283
      %s305 = sphi 0, %s307
      %s308 = sphi 0, %s305
      %s309 = sphi 0, %s308
      %s325 = sphi 0, %s309
    $region4: #{tpu_custom_call.1} parent=1 // loop_header_branch
      %32 = sbr.rel (%p30) target = $region8
    $region5: #{tpu_custom_call.1} parent=1 // loop_body
      %s34 = ssub.s32 %s29, 1
      %s35 = ssub.s32 %s29, 2
      %s36 = sadd.s32 %s29, 1
      %s38 = sadd.s32 %s37, 1
      %p41 = scmp.eq.s32.totalorder %s29, 1
      %p42 = scmp.ne.s32.totalorder %s37, %s39
      %p43 = scmp.eq.s32.totalorder %s29, 0
      %p44 = por %p42, %p43
      %p45 = scmp.ne.s32.totalorder %s37, %s39
      %p46 = scmp.eq.s32.totalorder %s34, 1
      %p47 = por %p45, %p46
      %p48 = scmp.ne.s32.totalorder %s39, %s40
      %p49 = scmp.eq.s32.totalorder %s34, 0
      %p50 = por %p48, %p49
      %p51 = scmp.ne.s32.totalorder %s39, %s40
      %p52 = scmp.eq.s32.totalorder %s35, 1
      %p53 = por %p51, %p52
      %p55 = scmp.ne.s32.totalorder %s40, %s54
      %p56 = scmp.eq.s32.totalorder %s35, 0
      %p57 = por %p55, %p56
      %s59 = sadd.s32 %s58, 1
      %p62 = scmp.eq.s32.totalorder %s29, 1
      %p63 = scmp.ne.s32.totalorder %s58, %s60
      %p64 = scmp.eq.s32.totalorder %s29, 0
      %p65 = por %p63, %p64
      %p66 = scmp.ne.s32.totalorder %s58, %s60
      %p67 = scmp.eq.s32.totalorder %s34, 1
      %p68 = por %p66, %p67
      %p69 = scmp.ne.s32.totalorder %s60, %s61
      %p70 = scmp.eq.s32.totalorder %s34, 0
      %p71 = por %p69, %p70
      %p72 = scmp.ne.s32.totalorder %s60, %s61
      %p73 = scmp.eq.s32.totalorder %s35, 1
      %p74 = por %p72, %p73
      %p76 = scmp.ne.s32.totalorder %s61, %s75
      %p77 = scmp.eq.s32.totalorder %s35, 0
      %p78 = por %p76, %p77
      %s80 = sadd.s32 %s79, 1
      %p83 = scmp.eq.s32.totalorder %s29, 1
      %p84 = scmp.ne.s32.totalorder %s79, %s81
      %p85 = scmp.eq.s32.totalorder %s29, 0
      %p86 = por %p84, %p85
      %p87 = scmp.ne.s32.totalorder %s79, %s81
      %p88 = scmp.eq.s32.totalorder %s34, 1
      %p89 = por %p87, %p88
      %p90 = scmp.ne.s32.totalorder %s81, %s82
      %p91 = scmp.eq.s32.totalorder %s34, 0
      %p92 = por %p90, %p91
      %p93 = scmp.ne.s32.totalorder %s81, %s82
      %p94 = scmp.eq.s32.totalorder %s35, 1
      %p95 = por %p93, %p94
      %p97 = scmp.ne.s32.totalorder %s82, %s96
      %p98 = scmp.eq.s32.totalorder %s35, 0
      %p99 = por %p97, %p98
      %s101 = sadd.s32 %s100, 1
      %p104 = scmp.eq.s32.totalorder %s29, 1
      %p105 = scmp.ne.s32.totalorder %s100, %s102
      %p106 = scmp.eq.s32.totalorder %s29, 0
      %p107 = por %p105, %p106
      %p108 = scmp.ne.s32.totalorder %s100, %s102
      %p109 = scmp.eq.s32.totalorder %s34, 1
      %p110 = por %p108, %p109
      %p111 = scmp.ne.s32.totalorder %s102, %s103
      %p112 = scmp.eq.s32.totalorder %s34, 0
      %p113 = por %p111, %p112
      %p114 = scmp.ne.s32.totalorder %s102, %s103
      %p115 = scmp.eq.s32.totalorder %s35, 1
      %p116 = por %p114, %p115
      %p118 = scmp.ne.s32.totalorder %s103, %s117
      %p119 = scmp.eq.s32.totalorder %s35, 0
      %p120 = por %p118, %p119
      %s121 = ssub.s32 %s29, %s36
      %p122 = scmp.eq.s32.totalorder %s121, 0
      %s124 = sadd.s32 %s123, 1
      %s125 = scalar_select %p122, %s123, %s124
      %p128 = pneg %p122
      %p129 = scmp.eq.s32.totalorder %s29, 1
      %p130 = por %p128, %p129
      %p131 = scmp.ne.s32.totalorder %s123, %s126
      %p132 = scmp.eq.s32.totalorder %s29, 0
      %p133 = por %p131, %p132
      %p134 = scmp.ne.s32.totalorder %s123, %s126
      %p135 = scmp.eq.s32.totalorder %s34, 1
      %p136 = por %p134, %p135
      %p137 = scmp.ne.s32.totalorder %s126, %s127
      %p138 = scmp.eq.s32.totalorder %s34, 0
      %p139 = por %p137, %p138
      %p140 = scmp.ne.s32.totalorder %s126, %s127
      %p141 = scmp.eq.s32.totalorder %s35, 1
      %p142 = por %p140, %p141
      %p144 = scmp.ne.s32.totalorder %s127, %s143
      %p145 = scmp.eq.s32.totalorder %s35, 0
      %p146 = por %p144, %p145
      %s147 = ssub.s32 %s29, %s36
      %p148 = scmp.eq.s32.totalorder %s147, 0
      %s150 = sadd.s32 %s149, 1
      %s151 = scalar_select %p148, %s149, %s150
      %p154 = pneg %p148
      %p155 = scmp.eq.s32.totalorder %s29, 1
      %p156 = por %p154, %p155
      %p157 = scmp.ne.s32.totalorder %s149, %s152
      %p158 = scmp.eq.s32.totalorder %s29, 0
      %p159 = por %p157, %p158
      %p160 = scmp.ne.s32.totalorder %s149, %s152
      %p161 = scmp.eq.s32.totalorder %s34, 1
      %p162 = por %p160, %p161
      %p163 = scmp.ne.s32.totalorder %s152, %s153
      %p164 = scmp.eq.s32.totalorder %s34, 0
      %p165 = por %p163, %p164
      %p166 = scmp.ne.s32.totalorder %s152, %s153
      %p167 = scmp.eq.s32.totalorder %s35, 1
      %p168 = por %p166, %p167
      %p170 = scmp.ne.s32.totalorder %s153, %s169
      %p171 = scmp.eq.s32.totalorder %s35, 0
      %p172 = por %p170, %p171
      %s173 = ssub.s32 %s29, %s36
      %p174 = scmp.eq.s32.totalorder %s173, 0
      %s176 = sadd.s32 %s175, 1
      %s177 = scalar_select %p174, %s175, %s176
      %p180 = pneg %p174
      %p181 = scmp.eq.s32.totalorder %s29, 1
      %p182 = por %p180, %p181
      %p183 = scmp.ne.s32.totalorder %s175, %s178
      %p184 = scmp.eq.s32.totalorder %s29, 0
      %p185 = por %p183, %p184
      %p186 = scmp.ne.s32.totalorder %s175, %s178
      %p187 = scmp.eq.s32.totalorder %s34, 1
      %p188 = por %p186, %p187
      %p189 = scmp.ne.s32.totalorder %s178, %s179
      %p190 = scmp.eq.s32.totalorder %s34, 0
      %p191 = por %p189, %p190
      %p192 = scmp.ne.s32.totalorder %s178, %s179
      %p193 = scmp.eq.s32.totalorder %s35, 1
      %p194 = por %p192, %p193
      %p196 = scmp.ne.s32.totalorder %s179, %s195
      %p197 = scmp.eq.s32.totalorder %s35, 0
      %p198 = por %p196, %p197
      %s199 = ssub.s32 %s29, %s36
      %p200 = scmp.eq.s32.totalorder %s199, 0
      %s202 = sadd.s32 %s201, 1
      %s203 = scalar_select %p200, %s201, %s202
      %p206 = pneg %p200
      %p207 = scmp.eq.s32.totalorder %s29, 1
      %p208 = por %p206, %p207
      %p209 = scmp.ne.s32.totalorder %s201, %s204
      %p210 = scmp.eq.s32.totalorder %s29, 0
      %p211 = por %p209, %p210
      %p212 = scmp.ne.s32.totalorder %s201, %s204
      %p213 = scmp.eq.s32.totalorder %s34, 1
      %p214 = por %p212, %p213
      %p215 = scmp.ne.s32.totalorder %s204, %s205
      %p216 = scmp.eq.s32.totalorder %s34, 0
      %p217 = por %p215, %p216
      %p218 = scmp.ne.s32.totalorder %s204, %s205
      %p219 = scmp.eq.s32.totalorder %s35, 1
      %p220 = por %p218, %p219
      %p222 = scmp.ne.s32.totalorder %s205, %s221
      %p223 = scmp.eq.s32.totalorder %s35, 0
      %p224 = por %p222, %p223
      %s225 = ssub.s32 %s29, %s36
      %p226 = scmp.eq.s32.totalorder %s225, 0
      %s228 = sadd.s32 %s227, 1
      %s229 = scalar_select %p226, %s227, %s228
      %p232 = pneg %p226
      %p233 = scmp.eq.s32.totalorder %s29, 1
      %p234 = por %p232, %p233
      %p235 = scmp.ne.s32.totalorder %s227, %s230
      %p236 = scmp.eq.s32.totalorder %s29, 0
      %p237 = por %p235, %p236
      %p238 = scmp.ne.s32.totalorder %s227, %s230
      %p239 = scmp.eq.s32.totalorder %s34, 1
      %p240 = por %p238, %p239
      %p241 = scmp.ne.s32.totalorder %s230, %s231
      %p242 = scmp.eq.s32.totalorder %s34, 0
      %p243 = por %p241, %p242
      %p244 = scmp.ne.s32.totalorder %s230, %s231
      %p245 = scmp.eq.s32.totalorder %s35, 1
      %p246 = por %p244, %p245
      %p248 = scmp.ne.s32.totalorder %s231, %s247
      %p249 = scmp.eq.s32.totalorder %s35, 0
      %p250 = por %p248, %p249
      %s251 = ssub.s32 %s29, %s36
      %p252 = scmp.eq.s32.totalorder %s251, 0
      %s254 = sadd.s32 %s253, 1
      %s255 = scalar_select %p252, %s253, %s254
      %p258 = pneg %p252
      %p259 = scmp.eq.s32.totalorder %s29, 1
      %p260 = por %p258, %p259
      %p261 = scmp.ne.s32.totalorder %s253, %s256
      %p262 = scmp.eq.s32.totalorder %s29, 0
      %p263 = por %p261, %p262
      %p264 = scmp.ne.s32.totalorder %s253, %s256
      %p265 = scmp.eq.s32.totalorder %s34, 1
      %p266 = por %p264, %p265
      %p267 = scmp.ne.s32.totalorder %s256, %s257
      %p268 = scmp.eq.s32.totalorder %s34, 0
      %p269 = por %p267, %p268
      %p270 = scmp.ne.s32.totalorder %s256, %s257
      %p271 = scmp.eq.s32.totalorder %s35, 1
      %p272 = por %p270, %p271
      %p274 = scmp.ne.s32.totalorder %s257, %s273
      %p275 = scmp.eq.s32.totalorder %s35, 0
      %p276 = por %p274, %p275
      %s277 = ssub.s32 %s29, %s36
      %p278 = scmp.eq.s32.totalorder %s277, 0
      %s280 = sadd.s32 %s279, 1
      %s281 = scalar_select %p278, %s279, %s280
      %p284 = pneg %p278
      %p285 = scmp.eq.s32.totalorder %s29, 1
      %p286 = por %p284, %p285
      %p287 = scmp.ne.s32.totalorder %s279, %s282
      %p288 = scmp.eq.s32.totalorder %s29, 0
      %p289 = por %p287, %p288
      %p290 = scmp.ne.s32.totalorder %s279, %s282
      %p291 = scmp.eq.s32.totalorder %s34, 1
      %p292 = por %p290, %p291
      %p293 = scmp.ne.s32.totalorder %s282, %s283
      %p294 = scmp.eq.s32.totalorder %s34, 0
      %p295 = por %p293, %p294
      %p296 = scmp.ne.s32.totalorder %s282, %s283
      %p297 = scmp.eq.s32.totalorder %s35, 1
      %p298 = por %p296, %p297
      %p300 = scmp.ne.s32.totalorder %s283, %s299
      %p301 = scmp.eq.s32.totalorder %s35, 0
      %p302 = por %p300, %p301
      %s303 = ssub.s32 %s29, %s36
      %p304 = scmp.eq.s32.totalorder %s303, 0
      %s306 = sadd.s32 %s305, 1
      %s307 = scalar_select %p304, %s305, %s306
      %p310 = pneg %p304
      %p311 = scmp.eq.s32.totalorder %s29, 1
      %p312 = por %p310, %p311
      %p313 = scmp.ne.s32.totalorder %s305, %s308
      %p314 = scmp.eq.s32.totalorder %s29, 0
      %p315 = por %p313, %p314
      %p316 = scmp.ne.s32.totalorder %s305, %s308
      %p317 = scmp.eq.s32.totalorder %s34, 1
      %p318 = por %p316, %p317
      %p319 = scmp.ne.s32.totalorder %s308, %s309
      %p320 = scmp.eq.s32.totalorder %s34, 0
      %p321 = por %p319, %p320
      %p322 = scmp.ne.s32.totalorder %s308, %s309
      %p323 = scmp.eq.s32.totalorder %s35, 1
      %p324 = por %p322, %p323
      %p326 = scmp.ne.s32.totalorder %s309, %s325
      %p327 = scmp.eq.s32.totalorder %s35, 0
      %p328 = por %p326, %p327
      %p329 = scmp.le.s32.totalorder 1, %s29
      %p330 = scmp.lt.s32.totalorder %s29, 3
      %p331 = pnand %p329, %p330
      %p332 = pneg %p331
      // Predicated region
      $region9: #{tpu_custom_call.1} parent=5 // pred_check
        _
      $region10: #{tpu_custom_call.1} parent=5 // pred_check_branch
        %334 = sbr.rel (%p331) target = $region12
      $region11: #{tpu_custom_call.1} parent=5 // pred_region
        %s335 = ssub.s32 %s29, 1
        // Predicated region
        $region13: #{tpu_custom_call.1} parent=11 // pred_check
          %p336 = pneg %p50
        $region14: #{tpu_custom_call.1} parent=11 // pred_check_branch
          %338 = sbr.rel (%p336) target = $region16
        $region15: #{tpu_custom_call.1} parent=11 // pred_region
          _
        $region16: #{tpu_custom_call.1} parent=11 // pred_fallthru
          _
        // Predicated region
        $region17: #{tpu_custom_call.1} parent=11 // pred_check
          %p339 = pneg %p71
        $region18: #{tpu_custom_call.1} parent=11 // pred_check_branch
          %341 = sbr.rel (%p339) target = $region20
        $region19: #{tpu_custom_call.1} parent=11 // pred_region
          _
        $region20: #{tpu_custom_call.1} parent=11 // pred_fallthru
          _
        // Predicated region
        $region21: #{tpu_custom_call.1} parent=11 // pred_check
          %p342 = pneg %p92
        $region22: #{tpu_custom_call.1} parent=11 // pred_check_branch
          %344 = sbr.rel (%p342) target = $region24
        $region23: #{tpu_custom_call.1} parent=11 // pred_region
          _
        $region24: #{tpu_custom_call.1} parent=11 // pred_fallthru
          _
        // Predicated region
        $region25: #{tpu_custom_call.1} parent=11 // pred_check
          %p345 = pneg %p113
        $region26: #{tpu_custom_call.1} parent=11 // pred_check_branch
          %347 = sbr.rel (%p345) target = $region28
        $region27: #{tpu_custom_call.1} parent=11 // pred_region
          _
        $region28: #{tpu_custom_call.1} parent=11 // pred_fallthru
          _
      $region12: #{tpu_custom_call.1} parent=5 // pred_fallthru
        _
      %p348 = scmp.lt.s32.totalorder %s29, 2
      // Predicated region
      $region29: #{tpu_custom_call.1} parent=5 // pred_check
        %p349 = pneg %p348
      $region30: #{tpu_custom_call.1} parent=5 // pred_check_branch
        %351 = sbr.rel (%p349) target = $region32
      $region31: #{tpu_custom_call.1} parent=5 // pred_region
        // Predicated region
        $region33: #{tpu_custom_call.1} parent=31 // pred_check
          %p352 = pneg %p133
        $region34: #{tpu_custom_call.1} parent=31 // pred_check_branch
          %354 = sbr.rel (%p352) target = $region36
        $region35: #{tpu_custom_call.1} parent=31 // pred_region
          %s355 = sand.u32 %s123, 1
          %s356 = sand.u32 %s123, 1
          %s357 = smul.addr %s356, 256
          %s358 = scalar_lea.vmem [#allocation3], %s357
          %s359 = smul.u32 16, %s29
          %s360 = smul.addr %s359, 8
          %s361 = scalar_lea.vmem %s4, %s360
          // Predicated region
          $region37: #{tpu_custom_call.1} parent=35 // pred_check
            _
          $region38: #{tpu_custom_call.1} parent=35 // pred_check_branch
            %363 = sbr.rel (0) target = $region40
          $region39: #{tpu_custom_call.1} parent=35 // pred_region
            // Predicated region
            $region41: #{tpu_custom_call.1} parent=39 // pred_check
              _
            $region42: #{tpu_custom_call.1} parent=39 // pred_check_branch
              %365 = sbr.rel (0) target = $region44
            $region43: #{tpu_custom_call.1} parent=39 // pred_region
              // Predicated region
              $region56: #{tpu_custom_call.1} parent=43 // pred_check
                _
              $region57: #{tpu_custom_call.1} parent=43 // pred_check_branch
                %443 = sbr.rel (0) target = $region59
              $region58: #{tpu_custom_call.1} parent=43 // pred_region
                loop: start=0, step=1, limit=1
                $region60: #{tpu_custom_call.1} parent=58 // loop_pre_header
                  _
                $region61: #{tpu_custom_call.1} parent=58 // loop_header
                  %s445 = sphi 0, %s449
                  %p446 = scmp.ge.s32.totalorder %s445, 1
                  %s450 = sphi %s361, %s361
                  %s451 = sphi %s358, %s358
                $region62: #{tpu_custom_call.1} parent=58 // loop_header_branch
                  %448 = sbr.rel (%p446) target = $region66
                $region63: #{tpu_custom_call.1} parent=58 // loop_body
                  %v452 = vld [vmem:[%s450] sm:$0xff]
                  %453 = vst [vmem:[%s451] sm:$0xff] %v452
                  %v454 = vld [vmem:[%s450 + $0x8] sm:$0xff]
                  %455 = vst [vmem:[%s451 + $0x8] sm:$0xff] %v454
                  %v456 = vld [vmem:[%s450 + $0x10] sm:$0xff]
                  %457 = vst [vmem:[%s451 + $0x10] sm:$0xff] %v456
                  %v458 = vld [vmem:[%s450 + $0x18] sm:$0xff]
                  %459 = vst [vmem:[%s451 + $0x18] sm:$0xff] %v458
                  %v460 = vld [vmem:[%s450 + $0x20] sm:$0xff]
                  %461 = vst [vmem:[%s451 + $0x20] sm:$0xff] %v460
                  %v462 = vld [vmem:[%s450 + $0x28] sm:$0xff]
                  %463 = vst [vmem:[%s451 + $0x28] sm:$0xff] %v462
                  %v464 = vld [vmem:[%s450 + $0x30] sm:$0xff]
                  %465 = vst [vmem:[%s451 + $0x30] sm:$0xff] %v464
                  %v466 = vld [vmem:[%s450 + $0x38] sm:$0xff]
                  %467 = vst [vmem:[%s451 + $0x38] sm:$0xff] %v466
                  %v468 = vld [vmem:[%s450 + $0x40] sm:$0xff]
                  %469 = vst [vmem:[%s451 + $0x40] sm:$0xff] %v468
                  %v470 = vld [vmem:[%s450 + $0x48] sm:$0xff]
                  %471 = vst [vmem:[%s451 + $0x48] sm:$0xff] %v470
                  %v472 = vld [vmem:[%s450 + $0x50] sm:$0xff]
                  %473 = vst [vmem:[%s451 + $0x50] sm:$0xff] %v472
                  %v474 = vld [vmem:[%s450 + $0x58] sm:$0xff]
                  %475 = vst [vmem:[%s451 + $0x58] sm:$0xff] %v474
                  %v476 = vld [vmem:[%s450 + $0x60] sm:$0xff]
                  %477 = vst [vmem:[%s451 + $0x60] sm:$0xff] %v476
                  %v478 = vld [vmem:[%s450 + $0x68] sm:$0xff]
                  %479 = vst [vmem:[%s451 + $0x68] sm:$0xff] %v478
                  %v480 = vld [vmem:[%s450 + $0x70] sm:$0xff]
                  %481 = vst [vmem:[%s451 + $0x70] sm:$0xff] %v480
                  %v482 = vld [vmem:[%s450 + $0x78] sm:$0xff]
                  %483 = vst [vmem:[%s451 + $0x78] sm:$0xff] %v482
                  %v484 = vld [vmem:[%s450 + $0x100] sm:$0xff]
                  %485 = vst [vmem:[%s451 + $0x80] sm:$0xff] %v484
                  %v486 = vld [vmem:[%s450 + $0x108] sm:$0xff]
                  %487 = vst [vmem:[%s451 + $0x88] sm:$0xff] %v486
                  %v488 = vld [vmem:[%s450 + $0x110] sm:$0xff]
                  %489 = vst [vmem:[%s451 + $0x90] sm:$0xff] %v488
                  %v490 = vld [vmem:[%s450 + $0x118] sm:$0xff]
                  %491 = vst [vmem:[%s451 + $0x98] sm:$0xff] %v490
                  %v492 = vld [vmem:[%s450 + $0x120] sm:$0xff]
                  %493 = vst [vmem:[%s451 + $0xa0] sm:$0xff] %v492
                  %v494 = vld [vmem:[%s450 + $0x128] sm:$0xff]
                  %495 = vst [vmem:[%s451 + $0xa8] sm:$0xff] %v494
                  %v496 = vld [vmem:[%s450 + $0x130] sm:$0xff]
                  %497 = vst [vmem:[%s451 + $0xb0] sm:$0xff] %v496
                  %v498 = vld [vmem:[%s450 + $0x138] sm:$0xff]
                  %499 = vst [vmem:[%s451 + $0xb8] sm:$0xff] %v498
                  %v500 = vld [vmem:[%s450 + $0x140] sm:$0xff]
                  %501 = vst [vmem:[%s451 + $0xc0] sm:$0xff] %v500
                  %v502 = vld [vmem:[%s450 + $0x148] sm:$0xff]
                  %503 = vst [vmem:[%s451 + $0xc8] sm:$0xff] %v502
                  %v504 = vld [vmem:[%s450 + $0x150] sm:$0xff]
                  %505 = vst [vmem:[%s451 + $0xd0] sm:$0xff] %v504
                  %v506 = vld [vmem:[%s450 + $0x158] sm:$0xff]
                  %507 = vst [vmem:[%s451 + $0xd8] sm:$0xff] %v506
                  %v508 = vld [vmem:[%s450 + $0x160] sm:$0xff]
                  %509 = vst [vmem:[%s451 + $0xe0] sm:$0xff] %v508
                  %v510 = vld [vmem:[%s450 + $0x168] sm:$0xff]
                  %511 = vst [vmem:[%s451 + $0xe8] sm:$0xff] %v510
                  %v512 = vld [vmem:[%s450 + $0x170] sm:$0xff]
                  %513 = vst [vmem:[%s451 + $0xf0] sm:$0xff] %v512
                  %v514 = vld [vmem:[%s450 + $0x178] sm:$0xff]
                  %515 = vst [vmem:[%s451 + $0xf8] sm:$0xff] %v514
                $region64: #{tpu_custom_call.1} parent=58 // loop_footer
                  %s449 = sadd.s32 1, %s445
                $region65: #{tpu_custom_call.1} parent=58 // loop_footer_branch
                  %444 = sbr.rel target = $region61
                $region66: #{tpu_custom_call.1} parent=58 // loop_exit
                  _
              $region59: #{tpu_custom_call.1} parent=43 // pred_fallthru
                _
              // Predicated region
              $region67: #{tpu_custom_call.1} parent=43 // pred_check
                _
              $region68: #{tpu_custom_call.1} parent=43 // pred_check_branch
                %517 = sbr.rel target = $region70
              $region69: #{tpu_custom_call.1} parent=43 // pred_region
                _
              $region70: #{tpu_custom_call.1} parent=43 // pred_fallthru
                _
            $region44: #{tpu_custom_call.1} parent=39 // pred_fallthru
              _
            // Predicated region
            $region45: #{tpu_custom_call.1} parent=39 // pred_check
              _
            $region46: #{tpu_custom_call.1} parent=39 // pred_check_branch
              %367 = sbr.rel target = $region48
            $region47: #{tpu_custom_call.1} parent=39 // pred_region
              %s369 = ssub.s32 256, 1
              loop: start=0, step=1, limit=1
              $region49: #{tpu_custom_call.1} parent=47 // loop_pre_header
                _
              $region50: #{tpu_custom_call.1} parent=47 // loop_header
                %s371 = sphi 0, %s375
                %p372 = scmp.ge.s32.totalorder %s371, 1
                %s376 = sphi %s361, %s361
                %s377 = sphi %s358, %s358
              $region51: #{tpu_custom_call.1} parent=47 // loop_header_branch
                %374 = sbr.rel (%p372) target = $region55
              $region52: #{tpu_custom_call.1} parent=47 // loop_body
                %v378 = vld [vmem:[%s376] sm:%s369]
                %379 = vst [vmem:[%s377] sm:%s369] %v378
                %v380 = vld [vmem:[%s376 + $0x8] sm:%s369]
                %381 = vst [vmem:[%s377 + $0x8] sm:%s369] %v380
                %v382 = vld [vmem:[%s376 + $0x10] sm:%s369]
                %383 = vst [vmem:[%s377 + $0x10] sm:%s369] %v382
                %v384 = vld [vmem:[%s376 + $0x18] sm:%s369]
                %385 = vst [vmem:[%s377 + $0x18] sm:%s369] %v384
                %v386 = vld [vmem:[%s376 + $0x20] sm:%s369]
                %387 = vst [vmem:[%s377 + $0x20] sm:%s369] %v386
                %v388 = vld [vmem:[%s376 + $0x28] sm:%s369]
                %389 = vst [vmem:[%s377 + $0x28] sm:%s369] %v388
                %v390 = vld [vmem:[%s376 + $0x30] sm:%s369]
                %391 = vst [vmem:[%s377 + $0x30] sm:%s369] %v390
                %v392 = vld [vmem:[%s376 + $0x38] sm:%s369]
                %393 = vst [vmem:[%s377 + $0x38] sm:%s369] %v392
                %v394 = vld [vmem:[%s376 + $0x40] sm:%s369]
                %395 = vst [vmem:[%s377 + $0x40] sm:%s369] %v394
                %v396 = vld [vmem:[%s376 + $0x48] sm:%s369]
                %397 = vst [vmem:[%s377 + $0x48] sm:%s369] %v396
                %v398 = vld [vmem:[%s376 + $0x50] sm:%s369]
                %399 = vst [vmem:[%s377 + $0x50] sm:%s369] %v398
                %v400 = vld [vmem:[%s376 + $0x58] sm:%s369]
                %401 = vst [vmem:[%s377 + $0x58] sm:%s369] %v400
                %v402 = vld [vmem:[%s376 + $0x60] sm:%s369]
                %403 = vst [vmem:[%s377 + $0x60] sm:%s369] %v402
                %v404 = vld [vmem:[%s376 + $0x68] sm:%s369]
                %405 = vst [vmem:[%s377 + $0x68] sm:%s369] %v404
                %v406 = vld [vmem:[%s376 + $0x70] sm:%s369]
                %407 = vst [vmem:[%s377 + $0x70] sm:%s369] %v406
                %v408 = vld [vmem:[%s376 + $0x78] sm:%s369]
                %409 = vst [vmem:[%s377 + $0x78] sm:%s369] %v408
                %v410 = vld [vmem:[%s376 + $0x100] sm:%s369]
                %411 = vst [vmem:[%s377 + $0x80] sm:%s369] %v410
                %v412 = vld [vmem:[%s376 + $0x108] sm:%s369]
                %413 = vst [vmem:[%s377 + $0x88] sm:%s369] %v412
                %v414 = vld [vmem:[%s376 + $0x110] sm:%s369]
                %415 = vst [vmem:[%s377 + $0x90] sm:%s369] %v414
                %v416 = vld [vmem:[%s376 + $0x118] sm:%s369]
                %417 = vst [vmem:[%s377 + $0x98] sm:%s369] %v416
                %v418 = vld [vmem:[%s376 + $0x120] sm:%s369]
                %419 = vst [vmem:[%s377 + $0xa0] sm:%s369] %v418
                %v420 = vld [vmem:[%s376 + $0x128] sm:%s369]
                %421 = vst [vmem:[%s377 + $0xa8] sm:%s369] %v420
                %v422 = vld [vmem:[%s376 + $0x130] sm:%s369]
                %423 = vst [vmem:[%s377 + $0xb0] sm:%s369] %v422
                %v424 = vld [vmem:[%s376 + $0x138] sm:%s369]
                %425 = vst [vmem:[%s377 + $0xb8] sm:%s369] %v424
                %v426 = vld [vmem:[%s376 + $0x140] sm:%s369]
                %427 = vst [vmem:[%s377 + $0xc0] sm:%s369] %v426
                %v428 = vld [vmem:[%s376 + $0x148] sm:%s369]
                %429 = vst [vmem:[%s377 + $0xc8] sm:%s369] %v428
                %v430 = vld [vmem:[%s376 + $0x150] sm:%s369]
                %431 = vst [vmem:[%s377 + $0xd0] sm:%s369] %v430
                %v432 = vld [vmem:[%s376 + $0x158] sm:%s369]
                %433 = vst [vmem:[%s377 + $0xd8] sm:%s369] %v432
                %v434 = vld [vmem:[%s376 + $0x160] sm:%s369]
                %435 = vst [vmem:[%s377 + $0xe0] sm:%s369] %v434
                %v436 = vld [vmem:[%s376 + $0x168] sm:%s369]
                %437 = vst [vmem:[%s377 + $0xe8] sm:%s369] %v436
                %v438 = vld [vmem:[%s376 + $0x170] sm:%s369]
                %439 = vst [vmem:[%s377 + $0xf0] sm:%s369] %v438
                %v440 = vld [vmem:[%s376 + $0x178] sm:%s369]
                %441 = vst [vmem:[%s377 + $0xf8] sm:%s369] %v440
              $region53: #{tpu_custom_call.1} parent=47 // loop_footer
                %s375 = sadd.s32 1, %s371
              $region54: #{tpu_custom_call.1} parent=47 // loop_footer_branch
                %370 = sbr.rel target = $region50
              $region55: #{tpu_custom_call.1} parent=47 // loop_exit
                _
            $region48: #{tpu_custom_call.1} parent=39 // pred_fallthru
              _
          $region40: #{tpu_custom_call.1} parent=35 // pred_fallthru
            _
          %518 = vnop
        $region36: #{tpu_custom_call.1} parent=31 // pred_fallthru
          _
        // Predicated region
        $region71: #{tpu_custom_call.1} parent=31 // pred_check
          %p519 = pneg %p159
        $region72: #{tpu_custom_call.1} parent=31 // pred_check_branch
          %521 = sbr.rel (%p519) target = $region74
        $region73: #{tpu_custom_call.1} parent=31 // pred_region
          %s522 = sand.u32 %s149, 1
          %s523 = sand.u32 %s149, 1
          %s524 = smul.addr %s523, 256
          %s525 = scalar_lea.vmem [#allocation4], %s524
          %s526 = smul.u32 16, %s29
          %s527 = smul.addr %s526, 8
          %s528 = scalar_lea.vmem %s5, %s527
          // Predicated region
          $region75: #{tpu_custom_call.1} parent=73 // pred_check
            _
          $region76: #{tpu_custom_call.1} parent=73 // pred_check_branch
            %530 = sbr.rel (0) target = $region78
          $region77: #{tpu_custom_call.1} parent=73 // pred_region
            // Predicated region
            $region79: #{tpu_custom_call.1} parent=77 // pred_check
              _
            $region80: #{tpu_custom_call.1} parent=77 // pred_check_branch
              %532 = sbr.rel (0) target = $region82
            $region81: #{tpu_custom_call.1} parent=77 // pred_region
              // Predicated region
              $region94: #{tpu_custom_call.1} parent=81 // pred_check
                _
              $region95: #{tpu_custom_call.1} parent=81 // pred_check_branch
                %610 = sbr.rel (0) target = $region97
              $region96: #{tpu_custom_call.1} parent=81 // pred_region
                loop: start=0, step=1, limit=1
                $region98: #{tpu_custom_call.1} parent=96 // loop_pre_header
                  _
                $region99: #{tpu_custom_call.1} parent=96 // loop_header
                  %s612 = sphi 0, %s616
                  %p613 = scmp.ge.s32.totalorder %s612, 1
                  %s617 = sphi %s528, %s528
                  %s618 = sphi %s525, %s525
                $region100: #{tpu_custom_call.1} parent=96 // loop_header_branch
                  %615 = sbr.rel (%p613) target = $region104
                $region101: #{tpu_custom_call.1} parent=96 // loop_body
                  %v619 = vld [vmem:[%s617] sm:$0xff]
                  %620 = vst [vmem:[%s618] sm:$0xff] %v619
                  %v621 = vld [vmem:[%s617 + $0x8] sm:$0xff]
                  %622 = vst [vmem:[%s618 + $0x8] sm:$0xff] %v621
                  %v623 = vld [vmem:[%s617 + $0x10] sm:$0xff]
                  %624 = vst [vmem:[%s618 + $0x10] sm:$0xff] %v623
                  %v625 = vld [vmem:[%s617 + $0x18] sm:$0xff]
                  %626 = vst [vmem:[%s618 + $0x18] sm:$0xff] %v625
                  %v627 = vld [vmem:[%s617 + $0x20] sm:$0xff]
                  %628 = vst [vmem:[%s618 + $0x20] sm:$0xff] %v627
                  %v629 = vld [vmem:[%s617 + $0x28] sm:$0xff]
                  %630 = vst [vmem:[%s618 + $0x28] sm:$0xff] %v629
                  %v631 = vld [vmem:[%s617 + $0x30] sm:$0xff]
                  %632 = vst [vmem:[%s618 + $0x30] sm:$0xff] %v631
                  %v633 = vld [vmem:[%s617 + $0x38] sm:$0xff]
                  %634 = vst [vmem:[%s618 + $0x38] sm:$0xff] %v633
                  %v635 = vld [vmem:[%s617 + $0x40] sm:$0xff]
                  %636 = vst [vmem:[%s618 + $0x40] sm:$0xff] %v635
                  %v637 = vld [vmem:[%s617 + $0x48] sm:$0xff]
                  %638 = vst [vmem:[%s618 + $0x48] sm:$0xff] %v637
                  %v639 = vld [vmem:[%s617 + $0x50] sm:$0xff]
                  %640 = vst [vmem:[%s618 + $0x50] sm:$0xff] %v639
                  %v641 = vld [vmem:[%s617 + $0x58] sm:$0xff]
                  %642 = vst [vmem:[%s618 + $0x58] sm:$0xff] %v641
                  %v643 = vld [vmem:[%s617 + $0x60] sm:$0xff]
                  %644 = vst [vmem:[%s618 + $0x60] sm:$0xff] %v643
                  %v645 = vld [vmem:[%s617 + $0x68] sm:$0xff]
                  %646 = vst [vmem:[%s618 + $0x68] sm:$0xff] %v645
                  %v647 = vld [vmem:[%s617 + $0x70] sm:$0xff]
                  %648 = vst [vmem:[%s618 + $0x70] sm:$0xff] %v647
                  %v649 = vld [vmem:[%s617 + $0x78] sm:$0xff]
                  %650 = vst [vmem:[%s618 + $0x78] sm:$0xff] %v649
                  %v651 = vld [vmem:[%s617 + $0x100] sm:$0xff]
                  %652 = vst [vmem:[%s618 + $0x80] sm:$0xff] %v651
                  %v653 = vld [vmem:[%s617 + $0x108] sm:$0xff]
                  %654 = vst [vmem:[%s618 + $0x88] sm:$0xff] %v653
                  %v655 = vld [vmem:[%s617 + $0x110] sm:$0xff]
                  %656 = vst [vmem:[%s618 + $0x90] sm:$0xff] %v655
                  %v657 = vld [vmem:[%s617 + $0x118] sm:$0xff]
                  %658 = vst [vmem:[%s618 + $0x98] sm:$0xff] %v657
                  %v659 = vld [vmem:[%s617 + $0x120] sm:$0xff]
                  %660 = vst [vmem:[%s618 + $0xa0] sm:$0xff] %v659
                  %v661 = vld [vmem:[%s617 + $0x128] sm:$0xff]
                  %662 = vst [vmem:[%s618 + $0xa8] sm:$0xff] %v661
                  %v663 = vld [vmem:[%s617 + $0x130] sm:$0xff]
                  %664 = vst [vmem:[%s618 + $0xb0] sm:$0xff] %v663
                  %v665 = vld [vmem:[%s617 + $0x138] sm:$0xff]
                  %666 = vst [vmem:[%s618 + $0xb8] sm:$0xff] %v665
                  %v667 = vld [vmem:[%s617 + $0x140] sm:$0xff]
                  %668 = vst [vmem:[%s618 + $0xc0] sm:$0xff] %v667
                  %v669 = vld [vmem:[%s617 + $0x148] sm:$0xff]
                  %670 = vst [vmem:[%s618 + $0xc8] sm:$0xff] %v669
                  %v671 = vld [vmem:[%s617 + $0x150] sm:$0xff]
                  %672 = vst [vmem:[%s618 + $0xd0] sm:$0xff] %v671
                  %v673 = vld [vmem:[%s617 + $0x158] sm:$0xff]
                  %674 = vst [vmem:[%s618 + $0xd8] sm:$0xff] %v673
                  %v675 = vld [vmem:[%s617 + $0x160] sm:$0xff]
                  %676 = vst [vmem:[%s618 + $0xe0] sm:$0xff] %v675
                  %v677 = vld [vmem:[%s617 + $0x168] sm:$0xff]
                  %678 = vst [vmem:[%s618 + $0xe8] sm:$0xff] %v677
                  %v679 = vld [vmem:[%s617 + $0x170] sm:$0xff]
                  %680 = vst [vmem:[%s618 + $0xf0] sm:$0xff] %v679
                  %v681 = vld [vmem:[%s617 + $0x178] sm:$0xff]
                  %682 = vst [vmem:[%s618 + $0xf8] sm:$0xff] %v681
                $region102: #{tpu_custom_call.1} parent=96 // loop_footer
                  %s616 = sadd.s32 1, %s612
                $region103: #{tpu_custom_call.1} parent=96 // loop_footer_branch
                  %611 = sbr.rel target = $region99
                $region104: #{tpu_custom_call.1} parent=96 // loop_exit
                  _
              $region97: #{tpu_custom_call.1} parent=81 // pred_fallthru
                _
              // Predicated region
              $region105: #{tpu_custom_call.1} parent=81 // pred_check
                _
              $region106: #{tpu_custom_call.1} parent=81 // pred_check_branch
                %684 = sbr.rel target = $region108
              $region107: #{tpu_custom_call.1} parent=81 // pred_region
                _
              $region108: #{tpu_custom_call.1} parent=81 // pred_fallthru
                _
            $region82: #{tpu_custom_call.1} parent=77 // pred_fallthru
              _
            // Predicated region
            $region83: #{tpu_custom_call.1} parent=77 // pred_check
              _
            $region84: #{tpu_custom_call.1} parent=77 // pred_check_branch
              %534 = sbr.rel target = $region86
            $region85: #{tpu_custom_call.1} parent=77 // pred_region
              %s536 = ssub.s32 256, 1
              loop: start=0, step=1, limit=1
              $region87: #{tpu_custom_call.1} parent=85 // loop_pre_header
                _
              $region88: #{tpu_custom_call.1} parent=85 // loop_header
                %s538 = sphi 0, %s542
                %p539 = scmp.ge.s32.totalorder %s538, 1
                %s543 = sphi %s528, %s528
                %s544 = sphi %s525, %s525
              $region89: #{tpu_custom_call.1} parent=85 // loop_header_branch
                %541 = sbr.rel (%p539) target = $region93
              $region90: #{tpu_custom_call.1} parent=85 // loop_body
                %v545 = vld [vmem:[%s543] sm:%s536]
                %546 = vst [vmem:[%s544] sm:%s536] %v545
                %v547 = vld [vmem:[%s543 + $0x8] sm:%s536]
                %548 = vst [vmem:[%s544 + $0x8] sm:%s536] %v547
                %v549 = vld [vmem:[%s543 + $0x10] sm:%s536]
                %550 = vst [vmem:[%s544 + $0x10] sm:%s536] %v549
                %v551 = vld [vmem:[%s543 + $0x18] sm:%s536]
                %552 = vst [vmem:[%s544 + $0x18] sm:%s536] %v551
                %v553 = vld [vmem:[%s543 + $0x20] sm:%s536]
                %554 = vst [vmem:[%s544 + $0x20] sm:%s536] %v553
                %v555 = vld [vmem:[%s543 + $0x28] sm:%s536]
                %556 = vst [vmem:[%s544 + $0x28] sm:%s536] %v555
                %v557 = vld [vmem:[%s543 + $0x30] sm:%s536]
                %558 = vst [vmem:[%s544 + $0x30] sm:%s536] %v557
                %v559 = vld [vmem:[%s543 + $0x38] sm:%s536]
                %560 = vst [vmem:[%s544 + $0x38] sm:%s536] %v559
                %v561 = vld [vmem:[%s543 + $0x40] sm:%s536]
                %562 = vst [vmem:[%s544 + $0x40] sm:%s536] %v561
                %v563 = vld [vmem:[%s543 + $0x48] sm:%s536]
                %564 = vst [vmem:[%s544 + $0x48] sm:%s536] %v563
                %v565 = vld [vmem:[%s543 + $0x50] sm:%s536]
                %566 = vst [vmem:[%s544 + $0x50] sm:%s536] %v565
                %v567 = vld [vmem:[%s543 + $0x58] sm:%s536]
                %568 = vst [vmem:[%s544 + $0x58] sm:%s536] %v567
                %v569 = vld [vmem:[%s543 + $0x60] sm:%s536]
                %570 = vst [vmem:[%s544 + $0x60] sm:%s536] %v569
                %v571 = vld [vmem:[%s543 + $0x68] sm:%s536]
                %572 = vst [vmem:[%s544 + $0x68] sm:%s536] %v571
                %v573 = vld [vmem:[%s543 + $0x70] sm:%s536]
                %574 = vst [vmem:[%s544 + $0x70] sm:%s536] %v573
                %v575 = vld [vmem:[%s543 + $0x78] sm:%s536]
                %576 = vst [vmem:[%s544 + $0x78] sm:%s536] %v575
                %v577 = vld [vmem:[%s543 + $0x100] sm:%s536]
                %578 = vst [vmem:[%s544 + $0x80] sm:%s536] %v577
                %v579 = vld [vmem:[%s543 + $0x108] sm:%s536]
                %580 = vst [vmem:[%s544 + $0x88] sm:%s536] %v579
                %v581 = vld [vmem:[%s543 + $0x110] sm:%s536]
                %582 = vst [vmem:[%s544 + $0x90] sm:%s536] %v581
                %v583 = vld [vmem:[%s543 + $0x118] sm:%s536]
                %584 = vst [vmem:[%s544 + $0x98] sm:%s536] %v583
                %v585 = vld [vmem:[%s543 + $0x120] sm:%s536]
                %586 = vst [vmem:[%s544 + $0xa0] sm:%s536] %v585
                %v587 = vld [vmem:[%s543 + $0x128] sm:%s536]
                %588 = vst [vmem:[%s544 + $0xa8] sm:%s536] %v587
                %v589 = vld [vmem:[%s543 + $0x130] sm:%s536]
                %590 = vst [vmem:[%s544 + $0xb0] sm:%s536] %v589
                %v591 = vld [vmem:[%s543 + $0x138] sm:%s536]
                %592 = vst [vmem:[%s544 + $0xb8] sm:%s536] %v591
                %v593 = vld [vmem:[%s543 + $0x140] sm:%s536]
                %594 = vst [vmem:[%s544 + $0xc0] sm:%s536] %v593
                %v595 = vld [vmem:[%s543 + $0x148] sm:%s536]
                %596 = vst [vmem:[%s544 + $0xc8] sm:%s536] %v595
                %v597 = vld [vmem:[%s543 + $0x150] sm:%s536]
                %598 = vst [vmem:[%s544 + $0xd0] sm:%s536] %v597
                %v599 = vld [vmem:[%s543 + $0x158] sm:%s536]
                %600 = vst [vmem:[%s544 + $0xd8] sm:%s536] %v599
                %v601 = vld [vmem:[%s543 + $0x160] sm:%s536]
                %602 = vst [vmem:[%s544 + $0xe0] sm:%s536] %v601
                %v603 = vld [vmem:[%s543 + $0x168] sm:%s536]
                %604 = vst [vmem:[%s544 + $0xe8] sm:%s536] %v603
                %v605 = vld [vmem:[%s543 + $0x170] sm:%s536]
                %606 = vst [vmem:[%s544 + $0xf0] sm:%s536] %v605
                %v607 = vld [vmem:[%s543 + $0x178] sm:%s536]
                %608 = vst [vmem:[%s544 + $0xf8] sm:%s536] %v607
              $region91: #{tpu_custom_call.1} parent=85 // loop_footer
                %s542 = sadd.s32 1, %s538
              $region92: #{tpu_custom_call.1} parent=85 // loop_footer_branch
                %537 = sbr.rel target = $region88
              $region93: #{tpu_custom_call.1} parent=85 // loop_exit
                _
            $region86: #{tpu_custom_call.1} parent=77 // pred_fallthru
              _
          $region78: #{tpu_custom_call.1} parent=73 // pred_fallthru
            _
          %685 = vnop
        $region74: #{tpu_custom_call.1} parent=31 // pred_fallthru
          _
        // Predicated region
        $region109: #{tpu_custom_call.1} parent=31 // pred_check
          %p686 = pneg %p185
        $region110: #{tpu_custom_call.1} parent=31 // pred_check_branch
          %688 = sbr.rel (%p686) target = $region112
        $region111: #{tpu_custom_call.1} parent=31 // pred_region
          %s689 = sand.u32 %s175, 1
          %s690 = sand.u32 %s175, 1
          %s691 = smul.addr %s690, 256
          %s692 = scalar_lea.vmem [#allocation5], %s691
          %s693 = smul.u32 16, %s29
          %s694 = smul.addr %s693, 8
          %s695 = scalar_lea.vmem %s6, %s694
          // Predicated region
          $region113: #{tpu_custom_call.1} parent=111 // pred_check
            _
          $region114: #{tpu_custom_call.1} parent=111 // pred_check_branch
            %697 = sbr.rel (0) target = $region116
          $region115: #{tpu_custom_call.1} parent=111 // pred_region
            // Predicated region
            $region117: #{tpu_custom_call.1} parent=115 // pred_check
              _
            $region118: #{tpu_custom_call.1} parent=115 // pred_check_branch
              %699 = sbr.rel (0) target = $region120
            $region119: #{tpu_custom_call.1} parent=115 // pred_region
              // Predicated region
              $region132: #{tpu_custom_call.1} parent=119 // pred_check
                _
              $region133: #{tpu_custom_call.1} parent=119 // pred_check_branch
                %777 = sbr.rel (0) target = $region135
              $region134: #{tpu_custom_call.1} parent=119 // pred_region
                loop: start=0, step=1, limit=1
                $region136: #{tpu_custom_call.1} parent=134 // loop_pre_header
                  _
                $region137: #{tpu_custom_call.1} parent=134 // loop_header
                  %s779 = sphi 0, %s783
                  %p780 = scmp.ge.s32.totalorder %s779, 1
                  %s784 = sphi %s695, %s695
                  %s785 = sphi %s692, %s692
                $region138: #{tpu_custom_call.1} parent=134 // loop_header_branch
                  %782 = sbr.rel (%p780) target = $region142
                $region139: #{tpu_custom_call.1} parent=134 // loop_body
                  %v786 = vld [vmem:[%s784] sm:$0xff]
                  %787 = vst [vmem:[%s785] sm:$0xff] %v786
                  %v788 = vld [vmem:[%s784 + $0x8] sm:$0xff]
                  %789 = vst [vmem:[%s785 + $0x8] sm:$0xff] %v788
                  %v790 = vld [vmem:[%s784 + $0x10] sm:$0xff]
                  %791 = vst [vmem:[%s785 + $0x10] sm:$0xff] %v790
                  %v792 = vld [vmem:[%s784 + $0x18] sm:$0xff]
                  %793 = vst [vmem:[%s785 + $0x18] sm:$0xff] %v792
                  %v794 = vld [vmem:[%s784 + $0x20] sm:$0xff]
                  %795 = vst [vmem:[%s785 + $0x20] sm:$0xff] %v794
                  %v796 = vld [vmem:[%s784 + $0x28] sm:$0xff]
                  %797 = vst [vmem:[%s785 + $0x28] sm:$0xff] %v796
                  %v798 = vld [vmem:[%s784 + $0x30] sm:$0xff]
                  %799 = vst [vmem:[%s785 + $0x30] sm:$0xff] %v798
                  %v800 = vld [vmem:[%s784 + $0x38] sm:$0xff]
                  %801 = vst [vmem:[%s785 + $0x38] sm:$0xff] %v800
                  %v802 = vld [vmem:[%s784 + $0x40] sm:$0xff]
                  %803 = vst [vmem:[%s785 + $0x40] sm:$0xff] %v802
                  %v804 = vld [vmem:[%s784 + $0x48] sm:$0xff]
                  %805 = vst [vmem:[%s785 + $0x48] sm:$0xff] %v804
                  %v806 = vld [vmem:[%s784 + $0x50] sm:$0xff]
                  %807 = vst [vmem:[%s785 + $0x50] sm:$0xff] %v806
                  %v808 = vld [vmem:[%s784 + $0x58] sm:$0xff]
                  %809 = vst [vmem:[%s785 + $0x58] sm:$0xff] %v808
                  %v810 = vld [vmem:[%s784 + $0x60] sm:$0xff]
                  %811 = vst [vmem:[%s785 + $0x60] sm:$0xff] %v810
                  %v812 = vld [vmem:[%s784 + $0x68] sm:$0xff]
                  %813 = vst [vmem:[%s785 + $0x68] sm:$0xff] %v812
                  %v814 = vld [vmem:[%s784 + $0x70] sm:$0xff]
                  %815 = vst [vmem:[%s785 + $0x70] sm:$0xff] %v814
                  %v816 = vld [vmem:[%s784 + $0x78] sm:$0xff]
                  %817 = vst [vmem:[%s785 + $0x78] sm:$0xff] %v816
                  %v818 = vld [vmem:[%s784 + $0x100] sm:$0xff]
                  %819 = vst [vmem:[%s785 + $0x80] sm:$0xff] %v818
                  %v820 = vld [vmem:[%s784 + $0x108] sm:$0xff]
                  %821 = vst [vmem:[%s785 + $0x88] sm:$0xff] %v820
                  %v822 = vld [vmem:[%s784 + $0x110] sm:$0xff]
                  %823 = vst [vmem:[%s785 + $0x90] sm:$0xff] %v822
                  %v824 = vld [vmem:[%s784 + $0x118] sm:$0xff]
                  %825 = vst [vmem:[%s785 + $0x98] sm:$0xff] %v824
                  %v826 = vld [vmem:[%s784 + $0x120] sm:$0xff]
                  %827 = vst [vmem:[%s785 + $0xa0] sm:$0xff] %v826
                  %v828 = vld [vmem:[%s784 + $0x128] sm:$0xff]
                  %829 = vst [vmem:[%s785 + $0xa8] sm:$0xff] %v828
                  %v830 = vld [vmem:[%s784 + $0x130] sm:$0xff]
                  %831 = vst [vmem:[%s785 + $0xb0] sm:$0xff] %v830
                  %v832 = vld [vmem:[%s784 + $0x138] sm:$0xff]
                  %833 = vst [vmem:[%s785 + $0xb8] sm:$0xff] %v832
                  %v834 = vld [vmem:[%s784 + $0x140] sm:$0xff]
                  %835 = vst [vmem:[%s785 + $0xc0] sm:$0xff] %v834
                  %v836 = vld [vmem:[%s784 + $0x148] sm:$0xff]
                  %837 = vst [vmem:[%s785 + $0xc8] sm:$0xff] %v836
                  %v838 = vld [vmem:[%s784 + $0x150] sm:$0xff]
                  %839 = vst [vmem:[%s785 + $0xd0] sm:$0xff] %v838
                  %v840 = vld [vmem:[%s784 + $0x158] sm:$0xff]
                  %841 = vst [vmem:[%s785 + $0xd8] sm:$0xff] %v840
                  %v842 = vld [vmem:[%s784 + $0x160] sm:$0xff]
                  %843 = vst [vmem:[%s785 + $0xe0] sm:$0xff] %v842
                  %v844 = vld [vmem:[%s784 + $0x168] sm:$0xff]
                  %845 = vst [vmem:[%s785 + $0xe8] sm:$0xff] %v844
                  %v846 = vld [vmem:[%s784 + $0x170] sm:$0xff]
                  %847 = vst [vmem:[%s785 + $0xf0] sm:$0xff] %v846
                  %v848 = vld [vmem:[%s784 + $0x178] sm:$0xff]
                  %849 = vst [vmem:[%s785 + $0xf8] sm:$0xff] %v848
                $region140: #{tpu_custom_call.1} parent=134 // loop_footer
                  %s783 = sadd.s32 1, %s779
                $region141: #{tpu_custom_call.1} parent=134 // loop_footer_branch
                  %778 = sbr.rel target = $region137
                $region142: #{tpu_custom_call.1} parent=134 // loop_exit
                  _
              $region135: #{tpu_custom_call.1} parent=119 // pred_fallthru
                _
              // Predicated region
              $region143: #{tpu_custom_call.1} parent=119 // pred_check
                _
              $region144: #{tpu_custom_call.1} parent=119 // pred_check_branch
                %851 = sbr.rel target = $region146
              $region145: #{tpu_custom_call.1} parent=119 // pred_region
                _
              $region146: #{tpu_custom_call.1} parent=119 // pred_fallthru
                _
            $region120: #{tpu_custom_call.1} parent=115 // pred_fallthru
              _
            // Predicated region
            $region121: #{tpu_custom_call.1} parent=115 // pred_check
              _
            $region122: #{tpu_custom_call.1} parent=115 // pred_check_branch
              %701 = sbr.rel target = $region124
            $region123: #{tpu_custom_call.1} parent=115 // pred_region
              %s703 = ssub.s32 256, 1
              loop: start=0, step=1, limit=1
              $region125: #{tpu_custom_call.1} parent=123 // loop_pre_header
                _
              $region126: #{tpu_custom_call.1} parent=123 // loop_header
                %s705 = sphi 0, %s709
                %p706 = scmp.ge.s32.totalorder %s705, 1
                %s710 = sphi %s695, %s695
                %s711 = sphi %s692, %s692
              $region127: #{tpu_custom_call.1} parent=123 // loop_header_branch
                %708 = sbr.rel (%p706) target = $region131
              $region128: #{tpu_custom_call.1} parent=123 // loop_body
                %v712 = vld [vmem:[%s710] sm:%s703]
                %713 = vst [vmem:[%s711] sm:%s703] %v712
                %v714 = vld [vmem:[%s710 + $0x8] sm:%s703]
                %715 = vst [vmem:[%s711 + $0x8] sm:%s703] %v714
                %v716 = vld [vmem:[%s710 + $0x10] sm:%s703]
                %717 = vst [vmem:[%s711 + $0x10] sm:%s703] %v716
                %v718 = vld [vmem:[%s710 + $0x18] sm:%s703]
                %719 = vst [vmem:[%s711 + $0x18] sm:%s703] %v718
                %v720 = vld [vmem:[%s710 + $0x20] sm:%s703]
                %721 = vst [vmem:[%s711 + $0x20] sm:%s703] %v720
                %v722 = vld [vmem:[%s710 + $0x28] sm:%s703]
                %723 = vst [vmem:[%s711 + $0x28] sm:%s703] %v722
                %v724 = vld [vmem:[%s710 + $0x30] sm:%s703]
                %725 = vst [vmem:[%s711 + $0x30] sm:%s703] %v724
                %v726 = vld [vmem:[%s710 + $0x38] sm:%s703]
                %727 = vst [vmem:[%s711 + $0x38] sm:%s703] %v726
                %v728 = vld [vmem:[%s710 + $0x40] sm:%s703]
                %729 = vst [vmem:[%s711 + $0x40] sm:%s703] %v728
                %v730 = vld [vmem:[%s710 + $0x48] sm:%s703]
                %731 = vst [vmem:[%s711 + $0x48] sm:%s703] %v730
                %v732 = vld [vmem:[%s710 + $0x50] sm:%s703]
                %733 = vst [vmem:[%s711 + $0x50] sm:%s703] %v732
                %v734 = vld [vmem:[%s710 + $0x58] sm:%s703]
                %735 = vst [vmem:[%s711 + $0x58] sm:%s703] %v734
                %v736 = vld [vmem:[%s710 + $0x60] sm:%s703]
                %737 = vst [vmem:[%s711 + $0x60] sm:%s703] %v736
                %v738 = vld [vmem:[%s710 + $0x68] sm:%s703]
                %739 = vst [vmem:[%s711 + $0x68] sm:%s703] %v738
                %v740 = vld [vmem:[%s710 + $0x70] sm:%s703]
                %741 = vst [vmem:[%s711 + $0x70] sm:%s703] %v740
                %v742 = vld [vmem:[%s710 + $0x78] sm:%s703]
                %743 = vst [vmem:[%s711 + $0x78] sm:%s703] %v742
                %v744 = vld [vmem:[%s710 + $0x100] sm:%s703]
                %745 = vst [vmem:[%s711 + $0x80] sm:%s703] %v744
                %v746 = vld [vmem:[%s710 + $0x108] sm:%s703]
                %747 = vst [vmem:[%s711 + $0x88] sm:%s703] %v746
                %v748 = vld [vmem:[%s710 + $0x110] sm:%s703]
                %749 = vst [vmem:[%s711 + $0x90] sm:%s703] %v748
                %v750 = vld [vmem:[%s710 + $0x118] sm:%s703]
                %751 = vst [vmem:[%s711 + $0x98] sm:%s703] %v750
                %v752 = vld [vmem:[%s710 + $0x120] sm:%s703]
                %753 = vst [vmem:[%s711 + $0xa0] sm:%s703] %v752
                %v754 = vld [vmem:[%s710 + $0x128] sm:%s703]
                %755 = vst [vmem:[%s711 + $0xa8] sm:%s703] %v754
                %v756 = vld [vmem:[%s710 + $0x130] sm:%s703]
                %757 = vst [vmem:[%s711 + $0xb0] sm:%s703] %v756
                %v758 = vld [vmem:[%s710 + $0x138] sm:%s703]
                %759 = vst [vmem:[%s711 + $0xb8] sm:%s703] %v758
                %v760 = vld [vmem:[%s710 + $0x140] sm:%s703]
                %761 = vst [vmem:[%s711 + $0xc0] sm:%s703] %v760
                %v762 = vld [vmem:[%s710 + $0x148] sm:%s703]
                %763 = vst [vmem:[%s711 + $0xc8] sm:%s703] %v762
                %v764 = vld [vmem:[%s710 + $0x150] sm:%s703]
                %765 = vst [vmem:[%s711 + $0xd0] sm:%s703] %v764
                %v766 = vld [vmem:[%s710 + $0x158] sm:%s703]
                %767 = vst [vmem:[%s711 + $0xd8] sm:%s703] %v766
                %v768 = vld [vmem:[%s710 + $0x160] sm:%s703]
                %769 = vst [vmem:[%s711 + $0xe0] sm:%s703] %v768
                %v770 = vld [vmem:[%s710 + $0x168] sm:%s703]
                %771 = vst [vmem:[%s711 + $0xe8] sm:%s703] %v770
                %v772 = vld [vmem:[%s710 + $0x170] sm:%s703]
                %773 = vst [vmem:[%s711 + $0xf0] sm:%s703] %v772
                %v774 = vld [vmem:[%s710 + $0x178] sm:%s703]
                %775 = vst [vmem:[%s711 + $0xf8] sm:%s703] %v774
              $region129: #{tpu_custom_call.1} parent=123 // loop_footer
                %s709 = sadd.s32 1, %s705
              $region130: #{tpu_custom_call.1} parent=123 // loop_footer_branch
                %704 = sbr.rel target = $region126
              $region131: #{tpu_custom_call.1} parent=123 // loop_exit
                _
            $region124: #{tpu_custom_call.1} parent=115 // pred_fallthru
              _
          $region116: #{tpu_custom_call.1} parent=111 // pred_fallthru
            _
          %852 = vnop
        $region112: #{tpu_custom_call.1} parent=31 // pred_fallthru
          _
        // Predicated region
        $region147: #{tpu_custom_call.1} parent=31 // pred_check
          %p853 = pneg %p211
        $region148: #{tpu_custom_call.1} parent=31 // pred_check_branch
          %855 = sbr.rel (%p853) target = $region150
        $region149: #{tpu_custom_call.1} parent=31 // pred_region
          %s856 = sand.u32 %s201, 1
          %s857 = sand.u32 %s201, 1
          %s858 = smul.addr %s857, 256
          %s859 = scalar_lea.vmem [#allocation6], %s858
          %s860 = smul.u32 16, %s29
          %s861 = smul.addr %s860, 8
          %s862 = scalar_lea.vmem %s7, %s861
          // Predicated region
          $region151: #{tpu_custom_call.1} parent=149 // pred_check
            _
          $region152: #{tpu_custom_call.1} parent=149 // pred_check_branch
            %864 = sbr.rel (0) target = $region154
          $region153: #{tpu_custom_call.1} parent=149 // pred_region
            // Predicated region
            $region155: #{tpu_custom_call.1} parent=153 // pred_check
              _
            $region156: #{tpu_custom_call.1} parent=153 // pred_check_branch
              %866 = sbr.rel (0) target = $region158
            $region157: #{tpu_custom_call.1} parent=153 // pred_region
              // Predicated region
              $region170: #{tpu_custom_call.1} parent=157 // pred_check
                _
              $region171: #{tpu_custom_call.1} parent=157 // pred_check_branch
                %944 = sbr.rel (0) target = $region173
              $region172: #{tpu_custom_call.1} parent=157 // pred_region
                loop: start=0, step=1, limit=1
                $region174: #{tpu_custom_call.1} parent=172 // loop_pre_header
                  _
                $region175: #{tpu_custom_call.1} parent=172 // loop_header
                  %s946 = sphi 0, %s950
                  %p947 = scmp.ge.s32.totalorder %s946, 1
                  %s951 = sphi %s862, %s862
                  %s952 = sphi %s859, %s859
                $region176: #{tpu_custom_call.1} parent=172 // loop_header_branch
                  %949 = sbr.rel (%p947) target = $region180
                $region177: #{tpu_custom_call.1} parent=172 // loop_body
                  %v953 = vld [vmem:[%s951] sm:$0xff]
                  %954 = vst [vmem:[%s952] sm:$0xff] %v953
                  %v955 = vld [vmem:[%s951 + $0x8] sm:$0xff]
                  %956 = vst [vmem:[%s952 + $0x8] sm:$0xff] %v955
                  %v957 = vld [vmem:[%s951 + $0x10] sm:$0xff]
                  %958 = vst [vmem:[%s952 + $0x10] sm:$0xff] %v957
                  %v959 = vld [vmem:[%s951 + $0x18] sm:$0xff]
                  %960 = vst [vmem:[%s952 + $0x18] sm:$0xff] %v959
                  %v961 = vld [vmem:[%s951 + $0x20] sm:$0xff]
                  %962 = vst [vmem:[%s952 + $0x20] sm:$0xff] %v961
                  %v963 = vld [vmem:[%s951 + $0x28] sm:$0xff]
                  %964 = vst [vmem:[%s952 + $0x28] sm:$0xff] %v963
                  %v965 = vld [vmem:[%s951 + $0x30] sm:$0xff]
                  %966 = vst [vmem:[%s952 + $0x30] sm:$0xff] %v965
                  %v967 = vld [vmem:[%s951 + $0x38] sm:$0xff]
                  %968 = vst [vmem:[%s952 + $0x38] sm:$0xff] %v967
                  %v969 = vld [vmem:[%s951 + $0x40] sm:$0xff]
                  %970 = vst [vmem:[%s952 + $0x40] sm:$0xff] %v969
                  %v971 = vld [vmem:[%s951 + $0x48] sm:$0xff]
                  %972 = vst [vmem:[%s952 + $0x48] sm:$0xff] %v971
                  %v973 = vld [vmem:[%s951 + $0x50] sm:$0xff]
                  %974 = vst [vmem:[%s952 + $0x50] sm:$0xff] %v973
                  %v975 = vld [vmem:[%s951 + $0x58] sm:$0xff]
                  %976 = vst [vmem:[%s952 + $0x58] sm:$0xff] %v975
                  %v977 = vld [vmem:[%s951 + $0x60] sm:$0xff]
                  %978 = vst [vmem:[%s952 + $0x60] sm:$0xff] %v977
                  %v979 = vld [vmem:[%s951 + $0x68] sm:$0xff]
                  %980 = vst [vmem:[%s952 + $0x68] sm:$0xff] %v979
                  %v981 = vld [vmem:[%s951 + $0x70] sm:$0xff]
                  %982 = vst [vmem:[%s952 + $0x70] sm:$0xff] %v981
                  %v983 = vld [vmem:[%s951 + $0x78] sm:$0xff]
                  %984 = vst [vmem:[%s952 + $0x78] sm:$0xff] %v983
                  %v985 = vld [vmem:[%s951 + $0x100] sm:$0xff]
                  %986 = vst [vmem:[%s952 + $0x80] sm:$0xff] %v985
                  %v987 = vld [vmem:[%s951 + $0x108] sm:$0xff]
                  %988 = vst [vmem:[%s952 + $0x88] sm:$0xff] %v987
                  %v989 = vld [vmem:[%s951 + $0x110] sm:$0xff]
                  %990 = vst [vmem:[%s952 + $0x90] sm:$0xff] %v989
                  %v991 = vld [vmem:[%s951 + $0x118] sm:$0xff]
                  %992 = vst [vmem:[%s952 + $0x98] sm:$0xff] %v991
                  %v993 = vld [vmem:[%s951 + $0x120] sm:$0xff]
                  %994 = vst [vmem:[%s952 + $0xa0] sm:$0xff] %v993
                  %v995 = vld [vmem:[%s951 + $0x128] sm:$0xff]
                  %996 = vst [vmem:[%s952 + $0xa8] sm:$0xff] %v995
                  %v997 = vld [vmem:[%s951 + $0x130] sm:$0xff]
                  %998 = vst [vmem:[%s952 + $0xb0] sm:$0xff] %v997
                  %v999 = vld [vmem:[%s951 + $0x138] sm:$0xff]
                  %1000 = vst [vmem:[%s952 + $0xb8] sm:$0xff] %v999
                  %v1001 = vld [vmem:[%s951 + $0x140] sm:$0xff]
                  %1002 = vst [vmem:[%s952 + $0xc0] sm:$0xff] %v1001
                  %v1003 = vld [vmem:[%s951 + $0x148] sm:$0xff]
                  %1004 = vst [vmem:[%s952 + $0xc8] sm:$0xff] %v1003
                  %v1005 = vld [vmem:[%s951 + $0x150] sm:$0xff]
                  %1006 = vst [vmem:[%s952 + $0xd0] sm:$0xff] %v1005
                  %v1007 = vld [vmem:[%s951 + $0x158] sm:$0xff]
                  %1008 = vst [vmem:[%s952 + $0xd8] sm:$0xff] %v1007
                  %v1009 = vld [vmem:[%s951 + $0x160] sm:$0xff]
                  %1010 = vst [vmem:[%s952 + $0xe0] sm:$0xff] %v1009
                  %v1011 = vld [vmem:[%s951 + $0x168] sm:$0xff]
                  %1012 = vst [vmem:[%s952 + $0xe8] sm:$0xff] %v1011
                  %v1013 = vld [vmem:[%s951 + $0x170] sm:$0xff]
                  %1014 = vst [vmem:[%s952 + $0xf0] sm:$0xff] %v1013
                  %v1015 = vld [vmem:[%s951 + $0x178] sm:$0xff]
                  %1016 = vst [vmem:[%s952 + $0xf8] sm:$0xff] %v1015
                $region178: #{tpu_custom_call.1} parent=172 // loop_footer
                  %s950 = sadd.s32 1, %s946
                $region179: #{tpu_custom_call.1} parent=172 // loop_footer_branch
                  %945 = sbr.rel target = $region175
                $region180: #{tpu_custom_call.1} parent=172 // loop_exit
                  _
              $region173: #{tpu_custom_call.1} parent=157 // pred_fallthru
                _
              // Predicated region
              $region181: #{tpu_custom_call.1} parent=157 // pred_check
                _
              $region182: #{tpu_custom_call.1} parent=157 // pred_check_branch
                %1018 = sbr.rel target = $region184
              $region183: #{tpu_custom_call.1} parent=157 // pred_region
                _
              $region184: #{tpu_custom_call.1} parent=157 // pred_fallthru
                _
            $region158: #{tpu_custom_call.1} parent=153 // pred_fallthru
              _
            // Predicated region
            $region159: #{tpu_custom_call.1} parent=153 // pred_check
              _
            $region160: #{tpu_custom_call.1} parent=153 // pred_check_branch
              %868 = sbr.rel target = $region162
            $region161: #{tpu_custom_call.1} parent=153 // pred_region
              %s870 = ssub.s32 256, 1
              loop: start=0, step=1, limit=1
              $region163: #{tpu_custom_call.1} parent=161 // loop_pre_header
                _
              $region164: #{tpu_custom_call.1} parent=161 // loop_header
                %s872 = sphi 0, %s876
                %p873 = scmp.ge.s32.totalorder %s872, 1
                %s877 = sphi %s862, %s862
                %s878 = sphi %s859, %s859
              $region165: #{tpu_custom_call.1} parent=161 // loop_header_branch
                %875 = sbr.rel (%p873) target = $region169
              $region166: #{tpu_custom_call.1} parent=161 // loop_body
                %v879 = vld [vmem:[%s877] sm:%s870]
                %880 = vst [vmem:[%s878] sm:%s870] %v879
                %v881 = vld [vmem:[%s877 + $0x8] sm:%s870]
                %882 = vst [vmem:[%s878 + $0x8] sm:%s870] %v881
                %v883 = vld [vmem:[%s877 + $0x10] sm:%s870]
                %884 = vst [vmem:[%s878 + $0x10] sm:%s870] %v883
                %v885 = vld [vmem:[%s877 + $0x18] sm:%s870]
                %886 = vst [vmem:[%s878 + $0x18] sm:%s870] %v885
                %v887 = vld [vmem:[%s877 + $0x20] sm:%s870]
                %888 = vst [vmem:[%s878 + $0x20] sm:%s870] %v887
                %v889 = vld [vmem:[%s877 + $0x28] sm:%s870]
                %890 = vst [vmem:[%s878 + $0x28] sm:%s870] %v889
                %v891 = vld [vmem:[%s877 + $0x30] sm:%s870]
                %892 = vst [vmem:[%s878 + $0x30] sm:%s870] %v891
                %v893 = vld [vmem:[%s877 + $0x38] sm:%s870]
                %894 = vst [vmem:[%s878 + $0x38] sm:%s870] %v893
                %v895 = vld [vmem:[%s877 + $0x40] sm:%s870]
                %896 = vst [vmem:[%s878 + $0x40] sm:%s870] %v895
                %v897 = vld [vmem:[%s877 + $0x48] sm:%s870]
                %898 = vst [vmem:[%s878 + $0x48] sm:%s870] %v897
                %v899 = vld [vmem:[%s877 + $0x50] sm:%s870]
                %900 = vst [vmem:[%s878 + $0x50] sm:%s870] %v899
                %v901 = vld [vmem:[%s877 + $0x58] sm:%s870]
                %902 = vst [vmem:[%s878 + $0x58] sm:%s870] %v901
                %v903 = vld [vmem:[%s877 + $0x60] sm:%s870]
                %904 = vst [vmem:[%s878 + $0x60] sm:%s870] %v903
                %v905 = vld [vmem:[%s877 + $0x68] sm:%s870]
                %906 = vst [vmem:[%s878 + $0x68] sm:%s870] %v905
                %v907 = vld [vmem:[%s877 + $0x70] sm:%s870]
                %908 = vst [vmem:[%s878 + $0x70] sm:%s870] %v907
                %v909 = vld [vmem:[%s877 + $0x78] sm:%s870]
                %910 = vst [vmem:[%s878 + $0x78] sm:%s870] %v909
                %v911 = vld [vmem:[%s877 + $0x100] sm:%s870]
                %912 = vst [vmem:[%s878 + $0x80] sm:%s870] %v911
                %v913 = vld [vmem:[%s877 + $0x108] sm:%s870]
                %914 = vst [vmem:[%s878 + $0x88] sm:%s870] %v913
                %v915 = vld [vmem:[%s877 + $0x110] sm:%s870]
                %916 = vst [vmem:[%s878 + $0x90] sm:%s870] %v915
                %v917 = vld [vmem:[%s877 + $0x118] sm:%s870]
                %918 = vst [vmem:[%s878 + $0x98] sm:%s870] %v917
                %v919 = vld [vmem:[%s877 + $0x120] sm:%s870]
                %920 = vst [vmem:[%s878 + $0xa0] sm:%s870] %v919
                %v921 = vld [vmem:[%s877 + $0x128] sm:%s870]
                %922 = vst [vmem:[%s878 + $0xa8] sm:%s870] %v921
                %v923 = vld [vmem:[%s877 + $0x130] sm:%s870]
                %924 = vst [vmem:[%s878 + $0xb0] sm:%s870] %v923
                %v925 = vld [vmem:[%s877 + $0x138] sm:%s870]
                %926 = vst [vmem:[%s878 + $0xb8] sm:%s870] %v925
                %v927 = vld [vmem:[%s877 + $0x140] sm:%s870]
                %928 = vst [vmem:[%s878 + $0xc0] sm:%s870] %v927
                %v929 = vld [vmem:[%s877 + $0x148] sm:%s870]
                %930 = vst [vmem:[%s878 + $0xc8] sm:%s870] %v929
                %v931 = vld [vmem:[%s877 + $0x150] sm:%s870]
                %932 = vst [vmem:[%s878 + $0xd0] sm:%s870] %v931
                %v933 = vld [vmem:[%s877 + $0x158] sm:%s870]
                %934 = vst [vmem:[%s878 + $0xd8] sm:%s870] %v933
                %v935 = vld [vmem:[%s877 + $0x160] sm:%s870]
                %936 = vst [vmem:[%s878 + $0xe0] sm:%s870] %v935
                %v937 = vld [vmem:[%s877 + $0x168] sm:%s870]
                %938 = vst [vmem:[%s878 + $0xe8] sm:%s870] %v937
                %v939 = vld [vmem:[%s877 + $0x170] sm:%s870]
                %940 = vst [vmem:[%s878 + $0xf0] sm:%s870] %v939
                %v941 = vld [vmem:[%s877 + $0x178] sm:%s870]
                %942 = vst [vmem:[%s878 + $0xf8] sm:%s870] %v941
              $region167: #{tpu_custom_call.1} parent=161 // loop_footer
                %s876 = sadd.s32 1, %s872
              $region168: #{tpu_custom_call.1} parent=161 // loop_footer_branch
                %871 = sbr.rel target = $region164
              $region169: #{tpu_custom_call.1} parent=161 // loop_exit
                _
            $region162: #{tpu_custom_call.1} parent=153 // pred_fallthru
              _
          $region154: #{tpu_custom_call.1} parent=149 // pred_fallthru
            _
          %1019 = vnop
        $region150: #{tpu_custom_call.1} parent=31 // pred_fallthru
          _
      $region32: #{tpu_custom_call.1} parent=5 // pred_fallthru
        _
      %p1020 = scmp.le.s32.totalorder 1, %s29
      %p1021 = scmp.lt.s32.totalorder %s29, 3
      %p1022 = pnand %p1020, %p1021
      %p1023 = pneg %p1022
      // Predicated region
      $region185: #{tpu_custom_call.1} parent=5 // pred_check
        _
      $region186: #{tpu_custom_call.1} parent=5 // pred_check_branch
        %1025 = sbr.rel (%p1022) target = $region188
      $region187: #{tpu_custom_call.1} parent=5 // pred_region
        %s1026 = ssub.s32 %s29, 1
        %s1027 = sand.u32 %s126, 1
        %s1028 = sand.u32 %s126, 1
        %s1029 = smul.addr %s1028, 256
        %s1030 = scalar_lea.vmem [#allocation3], %s1029
        // Predicated region
        $region189: #{tpu_custom_call.1} parent=187 // pred_check
          %p1031 = pneg %p139
        $region190: #{tpu_custom_call.1} parent=187 // pred_check_branch
          %1033 = sbr.rel (%p1031) target = $region192
        $region191: #{tpu_custom_call.1} parent=187 // pred_region
          _
        $region192: #{tpu_custom_call.1} parent=187 // pred_fallthru
          _
        %s1034 = sand.u32 %s152, 1
        %s1035 = sand.u32 %s152, 1
        %s1036 = smul.addr %s1035, 256
        %s1037 = scalar_lea.vmem [#allocation4], %s1036
        // Predicated region
        $region193: #{tpu_custom_call.1} parent=187 // pred_check
          %p1038 = pneg %p165
        $region194: #{tpu_custom_call.1} parent=187 // pred_check_branch
          %1040 = sbr.rel (%p1038) target = $region196
        $region195: #{tpu_custom_call.1} parent=187 // pred_region
          _
        $region196: #{tpu_custom_call.1} parent=187 // pred_fallthru
          _
        %s1041 = sand.u32 %s178, 1
        %s1042 = sand.u32 %s178, 1
        %s1043 = smul.addr %s1042, 256
        %s1044 = scalar_lea.vmem [#allocation5], %s1043
        // Predicated region
        $region197: #{tpu_custom_call.1} parent=187 // pred_check
          %p1045 = pneg %p191
        $region198: #{tpu_custom_call.1} parent=187 // pred_check_branch
          %1047 = sbr.rel (%p1045) target = $region200
        $region199: #{tpu_custom_call.1} parent=187 // pred_region
          _
        $region200: #{tpu_custom_call.1} parent=187 // pred_fallthru
          _
        %s1048 = sand.u32 %s204, 1
        %s1049 = sand.u32 %s204, 1
        %s1050 = smul.addr %s1049, 256
        %s1051 = scalar_lea.vmem [#allocation6], %s1050
        // Predicated region
        $region201: #{tpu_custom_call.1} parent=187 // pred_check
          %p1052 = pneg %p217
        $region202: #{tpu_custom_call.1} parent=187 // pred_check_branch
          %1054 = sbr.rel (%p1052) target = $region204
        $region203: #{tpu_custom_call.1} parent=187 // pred_region
          _
        $region204: #{tpu_custom_call.1} parent=187 // pred_fallthru
          _
        %p1055 = pneg %p50
        %p1056 = pneg %p47
        %p1057 = pneg %p71
        %p1058 = pneg %p68
        %p1059 = pneg %p92
        %p1060 = pneg %p89
        %p1061 = pneg %p113
        %p1062 = pneg %p110
        %s1063 = sand.u32 %s126, 1
        %s1064 = sand.u32 %s126, 1
        %s1065 = smul.addr %s1064, 256
        %s1066 = scalar_lea.vmem [#allocation3], %s1065
        %p1067 = pneg %p139
        %p1068 = pneg %p136
        %s1069 = sand.u32 %s152, 1
        %s1070 = sand.u32 %s152, 1
        %s1071 = smul.addr %s1070, 256
        %s1072 = scalar_lea.vmem [#allocation4], %s1071
        %p1073 = pneg %p165
        %p1074 = pneg %p162
        %s1075 = sand.u32 %s178, 1
        %s1076 = sand.u32 %s178, 1
        %s1077 = smul.addr %s1076, 256
        %s1078 = scalar_lea.vmem [#allocation5], %s1077
        %p1079 = pneg %p191
        %p1080 = pneg %p188
        %s1081 = sand.u32 %s204, 1
        %s1082 = sand.u32 %s204, 1
        %s1083 = smul.addr %s1082, 256
        %s1084 = scalar_lea.vmem [#allocation6], %s1083
        %p1085 = pneg %p217
        %p1086 = pneg %p214
        %p1087 = pneg %p243
        %p1088 = pneg %p240
        %s1089 = sand.u32 %s230, 1
        %s1090 = scalar_lea.sflag [#allocation8], %s1089
        %s1091 = sand.u32 %s230, 1
        %s1092 = smul.addr %s1091, 2
        %s1093 = scalar_lea.vmem [#allocation7], %s1092
        %p1094 = pneg %p269
        %p1095 = pneg %p266
        %s1096 = sand.u32 %s34, 1
        %s1097 = scalar_lea.sflag [#allocation10], %s1096
        %s1098 = sand.u32 %s256, 1
        %s1099 = smul.addr %s1098, 2
        %s1100 = scalar_lea.vmem [#allocation9], %s1099
        %p1101 = pneg %p295
        %p1102 = pneg %p292
        %s1103 = sand.u32 %s34, 1
        %s1104 = scalar_lea.sflag [#allocation10], %s1103
        %s1105 = sand.u32 %s282, 1
        %s1106 = smul.addr %s1105, 2
        %s1107 = scalar_lea.vmem [#allocation11], %s1106
        %p1108 = pneg %p321
        %p1109 = pneg %p318
        %s1110 = sand.u32 %s308, 1
        %s1111 = scalar_lea.sflag [#allocation13], %s1110
        %s1112 = sand.u32 %s308, 1
        %s1113 = smul.addr %s1112, 2
        %s1114 = scalar_lea.vmem [#allocation12], %s1113
        %s1115 = smul.u32 16, %s34
        %s1116 = smul.u32 16, %s34
        %s1117 = smul.u32 16, %s34
        %s1118 = smul.u32 16, %s34
        %v1119 = vld [vmem:[%s2] sm:$0xff]
        %v1120 = vld [vmem:[%s2 + $0x8] sm:$0xff]
        %v1121 = vld [vmem:[%s2 + $0x10] sm:$0xff]
        %v1122 = vld [vmem:[%s2 + $0x18] sm:$0xff]
        %v1123 = vld [vmem:[%s2 + $0x20] sm:$0xff]
        %v1124 = vld [vmem:[%s2 + $0x28] sm:$0xff]
        %v1125 = vld [vmem:[%s2 + $0x30] sm:$0xff]
        %v1126 = vld [vmem:[%s2 + $0x38] sm:$0xff]
        %v1127 = vld [vmem:[%s0] sm:$0x3]
        %v1128 = vld [vmem:[%s1] sm:$0x3]
        %v1129 = vperm.slane %v1127, 0
        %v1130 = vlaneseq
        %v1131 = vshrl.u32 %v1130, 7
        %1133 = vset.pattern.permute.xlu0 %v1131
        %1134 = vperm.xlu0 %1133, %v1129
        %v1135 = vpop.permute.xlu0 %1134
        %v1136 = vlaneseq
        %v1137 = vshrl.u32 %v1136, 7
        %v1138 = vadd.s32 %v1137, 8
        %1139 = vset.pattern.permute.xlu0 %v1138
        %1140 = vperm.xlu0 %1139, %v1129
        %v1141 = vpop.permute.xlu0 %1140
        %v1142 = vlaneseq
        %v1143 = vshrl.u32 %v1142, 7
        %v1144 = vadd.s32 %v1143, 16
        %1145 = vset.pattern.permute.xlu0 %v1144
        %1146 = vperm.xlu0 %1145, %v1129
        %v1147 = vpop.permute.xlu0 %1146
        %v1148 = vlaneseq
        %v1149 = vshrl.u32 %v1148, 7
        %v1150 = vadd.s32 %v1149, 24
        %1151 = vset.pattern.permute.xlu0 %v1150
        %1152 = vperm.xlu0 %1151, %v1129
        %v1153 = vpop.permute.xlu0 %1152
        %v1154 = vlaneseq
        %v1155 = vshrl.u32 %v1154, 7
        %v1156 = vadd.s32 %v1155, 32
        %1157 = vset.pattern.permute.xlu0 %v1156
        %1158 = vperm.xlu0 %1157, %v1129
        %v1159 = vpop.permute.xlu0 %1158
        %v1160 = vlaneseq
        %v1161 = vshrl.u32 %v1160, 7
        %v1162 = vadd.s32 %v1161, 40
        %1163 = vset.pattern.permute.xlu0 %v1162
        %1164 = vperm.xlu0 %1163, %v1129
        %v1165 = vpop.permute.xlu0 %1164
        %v1166 = vlaneseq
        %v1167 = vshrl.u32 %v1166, 7
        %v1168 = vadd.s32 %v1167, 48
        %1169 = vset.pattern.permute.xlu0 %v1168
        %1170 = vperm.xlu0 %1169, %v1129
        %v1171 = vpop.permute.xlu0 %1170
        %v1172 = vlaneseq
        %v1173 = vshrl.u32 %v1172, 7
        %v1174 = vadd.s32 %v1173, 56
        %1175 = vset.pattern.permute.xlu0 %v1174
        %1176 = vperm.xlu0 %1175, %v1129
        %v1177 = vpop.permute.xlu0 %1176
        %v1178 = vperm.slane %v1127, 1
        %v1179 = vlaneseq
        %v1180 = vshrl.u32 %v1179, 7
        %1182 = vset.pattern.permute.xlu0 %v1180
        %1183 = vperm.xlu0 %1182, %v1178
        %v1184 = vpop.permute.xlu0 %1183
        %v1185 = vlaneseq
        %v1186 = vshrl.u32 %v1185, 7
        %v1187 = vadd.s32 %v1186, 8
        %1188 = vset.pattern.permute.xlu0 %v1187
        %1189 = vperm.xlu0 %1188, %v1178
        %v1190 = vpop.permute.xlu0 %1189
        %v1191 = vlaneseq
        %v1192 = vshrl.u32 %v1191, 7
        %v1193 = vadd.s32 %v1192, 16
        %1194 = vset.pattern.permute.xlu0 %v1193
        %1195 = vperm.xlu0 %1194, %v1178
        %v1196 = vpop.permute.xlu0 %1195
        %v1197 = vlaneseq
        %v1198 = vshrl.u32 %v1197, 7
        %v1199 = vadd.s32 %v1198, 24
        %1200 = vset.pattern.permute.xlu0 %v1199
        %1201 = vperm.xlu0 %1200, %v1178
        %v1202 = vpop.permute.xlu0 %1201
        %v1203 = vlaneseq
        %v1204 = vshrl.u32 %v1203, 7
        %v1205 = vadd.s32 %v1204, 32
        %1206 = vset.pattern.permute.xlu0 %v1205
        %1207 = vperm.xlu0 %1206, %v1178
        %v1208 = vpop.permute.xlu0 %1207
        %v1209 = vlaneseq
        %v1210 = vshrl.u32 %v1209, 7
        %v1211 = vadd.s32 %v1210, 40
        %1212 = vset.pattern.permute.xlu0 %v1211
        %1213 = vperm.xlu0 %1212, %v1178
        %v1214 = vpop.permute.xlu0 %1213
        %v1215 = vlaneseq
        %v1216 = vshrl.u32 %v1215, 7
        %v1217 = vadd.s32 %v1216, 48
        %1218 = vset.pattern.permute.xlu0 %v1217
        %1219 = vperm.xlu0 %1218, %v1178
        %v1220 = vpop.permute.xlu0 %1219
        %v1221 = vlaneseq
        %v1222 = vshrl.u32 %v1221, 7
        %v1223 = vadd.s32 %v1222, 56
        %1224 = vset.pattern.permute.xlu0 %v1223
        %1225 = vperm.xlu0 %1224, %v1178
        %v1226 = vpop.permute.xlu0 %1225
        %v1227 = vmul.f32 %v1135, %v1119
        %v1228 = vmul.f32 %v1141, %v1120
        %v1229 = vmul.f32 %v1147, %v1121
        %v1230 = vmul.f32 %v1153, %v1122
        %v1231 = vmul.f32 %v1159, %v1123
        %v1232 = vmul.f32 %v1165, %v1124
        %v1233 = vmul.f32 %v1171, %v1125
        %v1234 = vmul.f32 %v1177, %v1126
        %v1235 = vmul.f32 %v1184, %v1119
        %v1236 = vmul.f32 %v1190, %v1120
        %v1237 = vmul.f32 %v1196, %v1121
        %v1238 = vmul.f32 %v1202, %v1122
        %v1239 = vmul.f32 %v1208, %v1123
        %v1240 = vmul.f32 %v1214, %v1124
        %v1241 = vmul.f32 %v1220, %v1125
        %v1242 = vmul.f32 %v1226, %v1126
        %vm1243 = vcmask 523264
        %v1244 = vsel %vm1243, %v1227, 0.0
        %v1245 = vsel %vm1243, %v1228, 0.0
        %v1246 = vadd.f32 %v1244, %v1245
        %v1247 = vsel %vm1243, %v1229, 0.0
        %v1248 = vadd.f32 %v1246, %v1247
        %v1249 = vsel %vm1243, %v1230, 0.0
        %v1250 = vadd.f32 %v1248, %v1249
        %v1251 = vsel %vm1243, %v1231, 0.0
        %v1252 = vadd.f32 %v1250, %v1251
        %v1253 = vsel %vm1243, %v1232, 0.0
        %v1254 = vadd.f32 %v1252, %v1253
        %v1255 = vsel %vm1243, %v1233, 0.0
        %v1256 = vadd.f32 %v1254, %v1255
        %v1257 = vsel %vm1243, %v1234, 0.0
        %v1258 = vadd.f32 %v1256, %v1257
        %v1259 = vrot.slane %v1258, 4
        %v1260 = vadd.f32 %v1258, %v1259
        %v1261 = vrot.slane %v1260, 2
        %v1262 = vadd.f32 %v1260, %v1261
        %v1263 = vrot.slane %v1262, 1
        %v1264 = vadd.f32 %v1262, %v1263
        %v1265 = vsel %vm1243, %v1235, 0.0
        %v1266 = vsel %vm1243, %v1236, 0.0
        %v1267 = vadd.f32 %v1265, %v1266
        %v1268 = vsel %vm1243, %v1237, 0.0
        %v1269 = vadd.f32 %v1267, %v1268
        %v1270 = vsel %vm1243, %v1238, 0.0
        %v1271 = vadd.f32 %v1269, %v1270
        %v1272 = vsel %vm1243, %v1239, 0.0
        %v1273 = vadd.f32 %v1271, %v1272
        %v1274 = vsel %vm1243, %v1240, 0.0
        %v1275 = vadd.f32 %v1273, %v1274
        %v1276 = vsel %vm1243, %v1241, 0.0
        %v1277 = vadd.f32 %v1275, %v1276
        %v1278 = vsel %vm1243, %v1242, 0.0
        %v1279 = vadd.f32 %v1277, %v1278
        %v1280 = vrot.slane %v1279, 4
        %v1281 = vadd.f32 %v1279, %v1280
        %v1282 = vrot.slane %v1281, 2
        %v1283 = vadd.f32 %v1281, %v1282
        %v1284 = vrot.slane %v1283, 1
        %v1285 = vadd.f32 %v1283, %v1284
        %v1286 = vperm.slane %v1128, 0
        %v1287 = vlaneseq
        %v1288 = vshrl.u32 %v1287, 7
        %1290 = vset.pattern.permute.xlu0 %v1288
        %1291 = vperm.xlu0 %1290, %v1286
        %v1292 = vpop.permute.xlu0 %1291
        %v1293 = vlaneseq
        %v1294 = vshrl.u32 %v1293, 7
        %v1295 = vadd.s32 %v1294, 8
        %1296 = vset.pattern.permute.xlu0 %v1295
        %1297 = vperm.xlu0 %1296, %v1286
        %v1298 = vpop.permute.xlu0 %1297
        %v1299 = vlaneseq
        %v1300 = vshrl.u32 %v1299, 7
        %v1301 = vadd.s32 %v1300, 16
        %1302 = vset.pattern.permute.xlu0 %v1301
        %1303 = vperm.xlu0 %1302, %v1286
        %v1304 = vpop.permute.xlu0 %1303
        %v1305 = vlaneseq
        %v1306 = vshrl.u32 %v1305, 7
        %v1307 = vadd.s32 %v1306, 24
        %1308 = vset.pattern.permute.xlu0 %v1307
        %1309 = vperm.xlu0 %1308, %v1286
        %v1310 = vpop.permute.xlu0 %1309
        %v1311 = vlaneseq
        %v1312 = vshrl.u32 %v1311, 7
        %v1313 = vadd.s32 %v1312, 32
        %1314 = vset.pattern.permute.xlu0 %v1313
        %1315 = vperm.xlu0 %1314, %v1286
        %v1316 = vpop.permute.xlu0 %1315
        %v1317 = vlaneseq
        %v1318 = vshrl.u32 %v1317, 7
        %v1319 = vadd.s32 %v1318, 40
        %1320 = vset.pattern.permute.xlu0 %v1319
        %1321 = vperm.xlu0 %1320, %v1286
        %v1322 = vpop.permute.xlu0 %1321
        %v1323 = vlaneseq
        %v1324 = vshrl.u32 %v1323, 7
        %v1325 = vadd.s32 %v1324, 48
        %1326 = vset.pattern.permute.xlu0 %v1325
        %1327 = vperm.xlu0 %1326, %v1286
        %v1328 = vpop.permute.xlu0 %1327
        %v1329 = vlaneseq
        %v1330 = vshrl.u32 %v1329, 7
        %v1331 = vadd.s32 %v1330, 56
        %1332 = vset.pattern.permute.xlu0 %v1331
        %1333 = vperm.xlu0 %1332, %v1286
        %v1334 = vpop.permute.xlu0 %1333
        %v1335 = vperm.slane %v1128, 1
        %v1336 = vlaneseq
        %v1337 = vshrl.u32 %v1336, 7
        %1339 = vset.pattern.permute.xlu0 %v1337
        %1340 = vperm.xlu0 %1339, %v1335
        %v1341 = vpop.permute.xlu0 %1340
        %v1342 = vlaneseq
        %v1343 = vshrl.u32 %v1342, 7
        %v1344 = vadd.s32 %v1343, 8
        %1345 = vset.pattern.permute.xlu0 %v1344
        %1346 = vperm.xlu0 %1345, %v1335
        %v1347 = vpop.permute.xlu0 %1346
        %v1348 = vlaneseq
        %v1349 = vshrl.u32 %v1348, 7
        %v1350 = vadd.s32 %v1349, 16
        %1351 = vset.pattern.permute.xlu0 %v1350
        %1352 = vperm.xlu0 %1351, %v1335
        %v1353 = vpop.permute.xlu0 %1352
        %v1354 = vlaneseq
        %v1355 = vshrl.u32 %v1354, 7
        %v1356 = vadd.s32 %v1355, 24
        %1357 = vset.pattern.permute.xlu0 %v1356
        %1358 = vperm.xlu0 %1357, %v1335
        %v1359 = vpop.permute.xlu0 %1358
        %v1360 = vlaneseq
        %v1361 = vshrl.u32 %v1360, 7
        %v1362 = vadd.s32 %v1361, 32
        %1363 = vset.pattern.permute.xlu0 %v1362
        %1364 = vperm.xlu0 %1363, %v1335
        %v1365 = vpop.permute.xlu0 %1364
        %v1366 = vlaneseq
        %v1367 = vshrl.u32 %v1366, 7
        %v1368 = vadd.s32 %v1367, 40
        %1369 = vset.pattern.permute.xlu0 %v1368
        %1370 = vperm.xlu0 %1369, %v1335
        %v1371 = vpop.permute.xlu0 %1370
        %v1372 = vlaneseq
        %v1373 = vshrl.u32 %v1372, 7
        %v1374 = vadd.s32 %v1373, 48
        %1375 = vset.pattern.permute.xlu0 %v1374
        %1376 = vperm.xlu0 %1375, %v1335
        %v1377 = vpop.permute.xlu0 %1376
        %v1378 = vlaneseq
        %v1379 = vshrl.u32 %v1378, 7
        %v1380 = vadd.s32 %v1379, 56
        %1381 = vset.pattern.permute.xlu0 %v1380
        %1382 = vperm.xlu0 %1381, %v1335
        %v1383 = vpop.permute.xlu0 %1382
        %v1384 = vmul.f32 %v1292, %v1119
        %v1385 = vmul.f32 %v1298, %v1120
        %v1386 = vmul.f32 %v1304, %v1121
        %v1387 = vmul.f32 %v1310, %v1122
        %v1388 = vmul.f32 %v1316, %v1123
        %v1389 = vmul.f32 %v1322, %v1124
        %v1390 = vmul.f32 %v1328, %v1125
        %v1391 = vmul.f32 %v1334, %v1126
        %v1392 = vmul.f32 %v1341, %v1119
        %v1393 = vmul.f32 %v1347, %v1120
        %v1394 = vmul.f32 %v1353, %v1121
        %v1395 = vmul.f32 %v1359, %v1122
        %v1396 = vmul.f32 %v1365, %v1123
        %v1397 = vmul.f32 %v1371, %v1124
        %v1398 = vmul.f32 %v1377, %v1125
        %v1399 = vmul.f32 %v1383, %v1126
        %v1400 = vsel %vm1243, %v1384, 0.0
        %v1401 = vsel %vm1243, %v1385, 0.0
        %v1402 = vadd.f32 %v1400, %v1401
        %v1403 = vsel %vm1243, %v1386, 0.0
        %v1404 = vadd.f32 %v1402, %v1403
        %v1405 = vsel %vm1243, %v1387, 0.0
        %v1406 = vadd.f32 %v1404, %v1405
        %v1407 = vsel %vm1243, %v1388, 0.0
        %v1408 = vadd.f32 %v1406, %v1407
        %v1409 = vsel %vm1243, %v1389, 0.0
        %v1410 = vadd.f32 %v1408, %v1409
        %v1411 = vsel %vm1243, %v1390, 0.0
        %v1412 = vadd.f32 %v1410, %v1411
        %v1413 = vsel %vm1243, %v1391, 0.0
        %v1414 = vadd.f32 %v1412, %v1413
        %v1415 = vrot.slane %v1414, 4
        %v1416 = vadd.f32 %v1414, %v1415
        %v1417 = vrot.slane %v1416, 2
        %v1418 = vadd.f32 %v1416, %v1417
        %v1419 = vrot.slane %v1418, 1
        %v1420 = vadd.f32 %v1418, %v1419
        %v1421 = vsel %vm1243, %v1392, 0.0
        %v1422 = vsel %vm1243, %v1393, 0.0
        %v1423 = vadd.f32 %v1421, %v1422
        %v1424 = vsel %vm1243, %v1394, 0.0
        %v1425 = vadd.f32 %v1423, %v1424
        %v1426 = vsel %vm1243, %v1395, 0.0
        %v1427 = vadd.f32 %v1425, %v1426
        %v1428 = vsel %vm1243, %v1396, 0.0
        %v1429 = vadd.f32 %v1427, %v1428
        %v1430 = vsel %vm1243, %v1397, 0.0
        %v1431 = vadd.f32 %v1429, %v1430
        %v1432 = vsel %vm1243, %v1398, 0.0
        %v1433 = vadd.f32 %v1431, %v1432
        %v1434 = vsel %vm1243, %v1399, 0.0
        %v1435 = vadd.f32 %v1433, %v1434
        %v1436 = vrot.slane %v1435, 4
        %v1437 = vadd.f32 %v1435, %v1436
        %v1438 = vrot.slane %v1437, 2
        %v1439 = vadd.f32 %v1437, %v1438
        %v1440 = vrot.slane %v1439, 1
        %v1441 = vadd.f32 %v1439, %v1440
        %v1442 = vld [vmem:[#allocation2] sm:$0x1]
        %v1443 = vld [vmem:[%s1037] sm:$0xff]
        %v1444 = vld [vmem:[%s1037 + $0x8] sm:$0xff]
        %v1445 = vld [vmem:[%s1037 + $0x10] sm:$0xff]
        %v1446 = vld [vmem:[%s1037 + $0x18] sm:$0xff]
        %v1447 = vld [vmem:[%s1037 + $0x20] sm:$0xff]
        %v1448 = vld [vmem:[%s1037 + $0x28] sm:$0xff]
        %v1449 = vld [vmem:[%s1037 + $0x30] sm:$0xff]
        %v1450 = vld [vmem:[%s1037 + $0x38] sm:$0xff]
        %v1451 = vld [vmem:[%s1037 + $0x40] sm:$0xff]
        %v1452 = vld [vmem:[%s1037 + $0x48] sm:$0xff]
        %v1453 = vld [vmem:[%s1037 + $0x50] sm:$0xff]
        %v1454 = vld [vmem:[%s1037 + $0x58] sm:$0xff]
        %v1455 = vld [vmem:[%s1037 + $0x60] sm:$0xff]
        %v1456 = vld [vmem:[%s1037 + $0x68] sm:$0xff]
        %v1457 = vld [vmem:[%s1037 + $0x70] sm:$0xff]
        %v1458 = vld [vmem:[%s1037 + $0x78] sm:$0xff]
        %v1459 = vld [vmem:[%s1037 + $0x80] sm:$0xff]
        %v1460 = vld [vmem:[%s1037 + $0x88] sm:$0xff]
        %v1461 = vld [vmem:[%s1037 + $0x90] sm:$0xff]
        %v1462 = vld [vmem:[%s1037 + $0x98] sm:$0xff]
        %v1463 = vld [vmem:[%s1037 + $0xa0] sm:$0xff]
        %v1464 = vld [vmem:[%s1037 + $0xa8] sm:$0xff]
        %v1465 = vld [vmem:[%s1037 + $0xb0] sm:$0xff]
        %v1466 = vld [vmem:[%s1037 + $0xb8] sm:$0xff]
        %v1467 = vld [vmem:[%s1037 + $0xc0] sm:$0xff]
        %v1468 = vld [vmem:[%s1037 + $0xc8] sm:$0xff]
        %v1469 = vld [vmem:[%s1037 + $0xd0] sm:$0xff]
        %v1470 = vld [vmem:[%s1037 + $0xd8] sm:$0xff]
        %v1471 = vld [vmem:[%s1037 + $0xe0] sm:$0xff]
        %v1472 = vld [vmem:[%s1037 + $0xe8] sm:$0xff]
        %v1473 = vld [vmem:[%s1037 + $0xf0] sm:$0xff]
        %v1474 = vld [vmem:[%s1037 + $0xf8] sm:$0xff]
        %v1475 = vmul.f32 %v1443, %v1264
        %v1476 = vmul.f32 %v1444, %v1264
        %v1477 = vmul.f32 %v1445, %v1264
        %v1478 = vmul.f32 %v1446, %v1264
        %v1479 = vmul.f32 %v1447, %v1264
        %v1480 = vmul.f32 %v1448, %v1264
        %v1481 = vmul.f32 %v1449, %v1264
        %v1482 = vmul.f32 %v1450, %v1264
        %v1483 = vmul.f32 %v1451, %v1264
        %v1484 = vmul.f32 %v1452, %v1264
        %v1485 = vmul.f32 %v1453, %v1264
        %v1486 = vmul.f32 %v1454, %v1264
        %v1487 = vmul.f32 %v1455, %v1264
        %v1488 = vmul.f32 %v1456, %v1264
        %v1489 = vmul.f32 %v1457, %v1264
        %v1490 = vmul.f32 %v1458, %v1264
        %v1491 = vmul.f32 %v1459, %v1285
        %v1492 = vmul.f32 %v1460, %v1285
        %v1493 = vmul.f32 %v1461, %v1285
        %v1494 = vmul.f32 %v1462, %v1285
        %v1495 = vmul.f32 %v1463, %v1285
        %v1496 = vmul.f32 %v1464, %v1285
        %v1497 = vmul.f32 %v1465, %v1285
        %v1498 = vmul.f32 %v1466, %v1285
        %v1499 = vmul.f32 %v1467, %v1285
        %v1500 = vmul.f32 %v1468, %v1285
        %v1501 = vmul.f32 %v1469, %v1285
        %v1502 = vmul.f32 %v1470, %v1285
        %v1503 = vmul.f32 %v1471, %v1285
        %v1504 = vmul.f32 %v1472, %v1285
        %v1505 = vmul.f32 %v1473, %v1285
        %v1506 = vmul.f32 %v1474, %v1285
        %v1507 = vsel %vm1243, %v1475, 0.0
        %1508 = vadd.xlane.f32.xlu0 %v1507
        %v1509 = vpop.xlane.xlu0 %1508
        %v1510 = vsel %vm1243, %v1476, 0.0
        %1511 = vadd.xlane.f32.xlu0 %v1510
        %v1512 = vpop.xlane.xlu0 %1511
        %v1513 = vsel %vm1243, %v1477, 0.0
        %1514 = vadd.xlane.f32.xlu0 %v1513
        %v1515 = vpop.xlane.xlu0 %1514
        %v1516 = vsel %vm1243, %v1478, 0.0
        %1517 = vadd.xlane.f32.xlu0 %v1516
        %v1518 = vpop.xlane.xlu0 %1517
        %v1519 = vsel %vm1243, %v1479, 0.0
        %1520 = vadd.xlane.f32.xlu0 %v1519
        %v1521 = vpop.xlane.xlu0 %1520
        %v1522 = vsel %vm1243, %v1480, 0.0
        %1523 = vadd.xlane.f32.xlu0 %v1522
        %v1524 = vpop.xlane.xlu0 %1523
        %v1525 = vsel %vm1243, %v1481, 0.0
        %1526 = vadd.xlane.f32.xlu0 %v1525
        %v1527 = vpop.xlane.xlu0 %1526
        %v1528 = vsel %vm1243, %v1482, 0.0
        %1529 = vadd.xlane.f32.xlu0 %v1528
        %v1530 = vpop.xlane.xlu0 %1529
        %v1531 = vsel %vm1243, %v1483, 0.0
        %1532 = vadd.xlane.f32.xlu0 %v1531
        %v1533 = vpop.xlane.xlu0 %1532
        %v1534 = vsel %vm1243, %v1484, 0.0
        %1535 = vadd.xlane.f32.xlu0 %v1534
        %v1536 = vpop.xlane.xlu0 %1535
        %v1537 = vsel %vm1243, %v1485, 0.0
        %1538 = vadd.xlane.f32.xlu0 %v1537
        %v1539 = vpop.xlane.xlu0 %1538
        %v1540 = vsel %vm1243, %v1486, 0.0
        %1541 = vadd.xlane.f32.xlu0 %v1540
        %v1542 = vpop.xlane.xlu0 %1541
        %v1543 = vsel %vm1243, %v1487, 0.0
        %1544 = vadd.xlane.f32.xlu0 %v1543
        %v1545 = vpop.xlane.xlu0 %1544
        %v1546 = vsel %vm1243, %v1488, 0.0
        %1547 = vadd.xlane.f32.xlu0 %v1546
        %v1548 = vpop.xlane.xlu0 %1547
        %v1549 = vsel %vm1243, %v1489, 0.0
        %1550 = vadd.xlane.f32.xlu0 %v1549
        %v1551 = vpop.xlane.xlu0 %1550
        %v1552 = vsel %vm1243, %v1490, 0.0
        %1553 = vadd.xlane.f32.xlu0 %v1552
        %v1554 = vpop.xlane.xlu0 %1553
        %v1555 = vsel %vm1243, %v1491, 0.0
        %1556 = vadd.xlane.f32.xlu0 %v1555
        %v1557 = vpop.xlane.xlu0 %1556
        %v1558 = vsel %vm1243, %v1492, 0.0
        %1559 = vadd.xlane.f32.xlu0 %v1558
        %v1560 = vpop.xlane.xlu0 %1559
        %v1561 = vsel %vm1243, %v1493, 0.0
        %1562 = vadd.xlane.f32.xlu0 %v1561
        %v1563 = vpop.xlane.xlu0 %1562
        %v1564 = vsel %vm1243, %v1494, 0.0
        %1565 = vadd.xlane.f32.xlu0 %v1564
        %v1566 = vpop.xlane.xlu0 %1565
        %v1567 = vsel %vm1243, %v1495, 0.0
        %1568 = vadd.xlane.f32.xlu0 %v1567
        %v1569 = vpop.xlane.xlu0 %1568
        %v1570 = vsel %vm1243, %v1496, 0.0
        %1571 = vadd.xlane.f32.xlu0 %v1570
        %v1572 = vpop.xlane.xlu0 %1571
        %v1573 = vsel %vm1243, %v1497, 0.0
        %1574 = vadd.xlane.f32.xlu0 %v1573
        %v1575 = vpop.xlane.xlu0 %1574
        %v1576 = vsel %vm1243, %v1498, 0.0
        %1577 = vadd.xlane.f32.xlu0 %v1576
        %v1578 = vpop.xlane.xlu0 %1577
        %v1579 = vsel %vm1243, %v1499, 0.0
        %1580 = vadd.xlane.f32.xlu0 %v1579
        %v1581 = vpop.xlane.xlu0 %1580
        %v1582 = vsel %vm1243, %v1500, 0.0
        %1583 = vadd.xlane.f32.xlu0 %v1582
        %v1584 = vpop.xlane.xlu0 %1583
        %v1585 = vsel %vm1243, %v1501, 0.0
        %1586 = vadd.xlane.f32.xlu0 %v1585
        %v1587 = vpop.xlane.xlu0 %1586
        %v1588 = vsel %vm1243, %v1502, 0.0
        %1589 = vadd.xlane.f32.xlu0 %v1588
        %v1590 = vpop.xlane.xlu0 %1589
        %v1591 = vsel %vm1243, %v1503, 0.0
        %1592 = vadd.xlane.f32.xlu0 %v1591
        %v1593 = vpop.xlane.xlu0 %1592
        %v1594 = vsel %vm1243, %v1504, 0.0
        %1595 = vadd.xlane.f32.xlu0 %v1594
        %v1596 = vpop.xlane.xlu0 %1595
        %v1597 = vsel %vm1243, %v1505, 0.0
        %1598 = vadd.xlane.f32.xlu0 %v1597
        %v1599 = vpop.xlane.xlu0 %1598
        %v1600 = vsel %vm1243, %v1506, 0.0
        %1601 = vadd.xlane.f32.xlu0 %v1600
        %v1602 = vpop.xlane.xlu0 %1601
        %v1604 = vperm.slane %v1442, 0
        %1605 = vset.pattern.permute.xlu0 0
        %1606 = vperm.xlu0 %1605, %v1604
        %v1607 = vpop.permute.xlu0 %1606
        %v1609 = vadd.f32 %v1509, %v1607
        %v1610 = vadd.f32 %v1512, %v1607
        %v1611 = vadd.f32 %v1515, %v1607
        %v1612 = vadd.f32 %v1518, %v1607
        %v1613 = vadd.f32 %v1521, %v1607
        %v1614 = vadd.f32 %v1524, %v1607
        %v1615 = vadd.f32 %v1527, %v1607
        %v1616 = vadd.f32 %v1530, %v1607
        %v1617 = vadd.f32 %v1533, %v1607
        %v1618 = vadd.f32 %v1536, %v1607
        %v1619 = vadd.f32 %v1539, %v1607
        %v1620 = vadd.f32 %v1542, %v1607
        %v1621 = vadd.f32 %v1545, %v1607
        %v1622 = vadd.f32 %v1548, %v1607
        %v1623 = vadd.f32 %v1551, %v1607
        %v1624 = vadd.f32 %v1554, %v1607
        %v1625 = vadd.f32 %v1557, %v1607
        %v1626 = vadd.f32 %v1560, %v1607
        %v1627 = vadd.f32 %v1563, %v1607
        %v1628 = vadd.f32 %v1566, %v1607
        %v1629 = vadd.f32 %v1569, %v1607
        %v1630 = vadd.f32 %v1572, %v1607
        %v1631 = vadd.f32 %v1575, %v1607
        %v1632 = vadd.f32 %v1578, %v1607
        %v1633 = vadd.f32 %v1581, %v1607
        %v1634 = vadd.f32 %v1584, %v1607
        %v1635 = vadd.f32 %v1587, %v1607
        %v1636 = vadd.f32 %v1590, %v1607
        %v1637 = vadd.f32 %v1593, %v1607
        %v1638 = vadd.f32 %v1596, %v1607
        %v1639 = vadd.f32 %v1599, %v1607
        %v1640 = vadd.f32 %v1602, %v1607
        %v1673 = vlaneseq
        %v1674 = vand.u32 %v1673, 127
        %v1675 = vperm.slane %v1609, %v1674
        %v1676 = vadd.s32 %v1674, 4294967288
        %v1677 = vperm.slane %v1610, %v1676
        %vm1678 = vcmask 130112
        %v1679 = vsel %vm1678, %v1677, %v1675
        %v1680 = vadd.s32 %v1674, 4294967280
        %v1681 = vperm.slane %v1611, %v1680
        %vm1682 = vcmask 195712
        %v1683 = vsel %vm1682, %v1681, %v1679
        %v1684 = vadd.s32 %v1674, 4294967272
        %v1685 = vperm.slane %v1612, %v1684
        %vm1686 = vcmask 261312
        %v1687 = vsel %vm1686, %v1685, %v1683
        %v1688 = vadd.s32 %v1674, 4294967264
        %v1689 = vperm.slane %v1613, %v1688
        %vm1690 = vcmask 326912
        %v1691 = vsel %vm1690, %v1689, %v1687
        %v1692 = vadd.s32 %v1674, 4294967256
        %v1693 = vperm.slane %v1614, %v1692
        %vm1694 = vcmask 392512
        %v1695 = vsel %vm1694, %v1693, %v1691
        %v1696 = vadd.s32 %v1674, 4294967248
        %v1697 = vperm.slane %v1615, %v1696
        %vm1698 = vcmask 458112
        %v1699 = vsel %vm1698, %v1697, %v1695
        %v1700 = vadd.s32 %v1674, 4294967240
        %v1701 = vperm.slane %v1616, %v1700
        %vm1702 = vcmask 523712
        %v1703 = vsel %vm1702, %v1701, %v1699
        %v1704 = vadd.s32 %v1674, 4294967232
        %v1705 = vperm.slane %v1617, %v1704
        %vm1706 = vcmask 589312
        %v1707 = vsel %vm1706, %v1705, %v1703
        %v1708 = vadd.s32 %v1674, 4294967224
        %v1709 = vperm.slane %v1618, %v1708
        %vm1710 = vcmask 654912
        %v1711 = vsel %vm1710, %v1709, %v1707
        %v1712 = vadd.s32 %v1674, 4294967216
        %v1713 = vperm.slane %v1619, %v1712
        %vm1714 = vcmask 720512
        %v1715 = vsel %vm1714, %v1713, %v1711
        %v1716 = vadd.s32 %v1674, 4294967208
        %v1717 = vperm.slane %v1620, %v1716
        %vm1718 = vcmask 786112
        %v1719 = vsel %vm1718, %v1717, %v1715
        %v1720 = vadd.s32 %v1674, 4294967200
        %v1721 = vperm.slane %v1621, %v1720
        %vm1722 = vcmask 851712
        %v1723 = vsel %vm1722, %v1721, %v1719
        %v1724 = vadd.s32 %v1674, 4294967192
        %v1725 = vperm.slane %v1622, %v1724
        %vm1726 = vcmask 917312
        %v1727 = vsel %vm1726, %v1725, %v1723
        %v1728 = vadd.s32 %v1674, 4294967184
        %v1729 = vperm.slane %v1623, %v1728
        %vm1730 = vcmask 982912
        %v1731 = vsel %vm1730, %v1729, %v1727
        %v1732 = vadd.s32 %v1674, 4294967176
        %v1733 = vperm.slane %v1624, %v1732
        %vm1734 = vcmask 1048512
        %v1735 = vsel %vm1734, %v1733, %v1731
        %v1736 = vperm.slane %v1625, %v1674
        %v1737 = vperm.slane %v1626, %v1676
        %v1738 = vsel %vm1678, %v1737, %v1736
        %v1739 = vperm.slane %v1627, %v1680
        %v1740 = vsel %vm1682, %v1739, %v1738
        %v1741 = vperm.slane %v1628, %v1684
        %v1742 = vsel %vm1686, %v1741, %v1740
        %v1743 = vperm.slane %v1629, %v1688
        %v1744 = vsel %vm1690, %v1743, %v1742
        %v1745 = vperm.slane %v1630, %v1692
        %v1746 = vsel %vm1694, %v1745, %v1744
        %v1747 = vperm.slane %v1631, %v1696
        %v1748 = vsel %vm1698, %v1747, %v1746
        %v1749 = vperm.slane %v1632, %v1700
        %v1750 = vsel %vm1702, %v1749, %v1748
        %v1751 = vperm.slane %v1633, %v1704
        %v1752 = vsel %vm1706, %v1751, %v1750
        %v1753 = vperm.slane %v1634, %v1708
        %v1754 = vsel %vm1710, %v1753, %v1752
        %v1755 = vperm.slane %v1635, %v1712
        %v1756 = vsel %vm1714, %v1755, %v1754
        %v1757 = vperm.slane %v1636, %v1716
        %v1758 = vsel %vm1718, %v1757, %v1756
        %v1759 = vperm.slane %v1637, %v1720
        %v1760 = vsel %vm1722, %v1759, %v1758
        %v1761 = vperm.slane %v1638, %v1724
        %v1762 = vsel %vm1726, %v1761, %v1760
        %v1763 = vperm.slane %v1639, %v1728
        %v1764 = vsel %vm1730, %v1763, %v1762
        %v1765 = vperm.slane %v1640, %v1732
        %v1766 = vsel %vm1734, %v1765, %v1764
        %vm1767 = vcmask 1041409
        %v1768 = vsel %vm1767, %v1766, %v1735
        %1770 = vst [vmem:[%s1093] sm:$0x3] %v1768
        %v1771 = vld [vmem:[%s1030] sm:$0xff]
        %v1772 = vld [vmem:[%s1030 + $0x8] sm:$0xff]
        %v1773 = vld [vmem:[%s1030 + $0x10] sm:$0xff]
        %v1774 = vld [vmem:[%s1030 + $0x18] sm:$0xff]
        %v1775 = vld [vmem:[%s1030 + $0x20] sm:$0xff]
        %v1776 = vld [vmem:[%s1030 + $0x28] sm:$0xff]
        %v1777 = vld [vmem:[%s1030 + $0x30] sm:$0xff]
        %v1778 = vld [vmem:[%s1030 + $0x38] sm:$0xff]
        %v1779 = vld [vmem:[%s1030 + $0x40] sm:$0xff]
        %v1780 = vld [vmem:[%s1030 + $0x48] sm:$0xff]
        %v1781 = vld [vmem:[%s1030 + $0x50] sm:$0xff]
        %v1782 = vld [vmem:[%s1030 + $0x58] sm:$0xff]
        %v1783 = vld [vmem:[%s1030 + $0x60] sm:$0xff]
        %v1784 = vld [vmem:[%s1030 + $0x68] sm:$0xff]
        %v1785 = vld [vmem:[%s1030 + $0x70] sm:$0xff]
        %v1786 = vld [vmem:[%s1030 + $0x78] sm:$0xff]
        %v1787 = vld [vmem:[%s1030 + $0x80] sm:$0xff]
        %v1788 = vld [vmem:[%s1030 + $0x88] sm:$0xff]
        %v1789 = vld [vmem:[%s1030 + $0x90] sm:$0xff]
        %v1790 = vld [vmem:[%s1030 + $0x98] sm:$0xff]
        %v1791 = vld [vmem:[%s1030 + $0xa0] sm:$0xff]
        %v1792 = vld [vmem:[%s1030 + $0xa8] sm:$0xff]
        %v1793 = vld [vmem:[%s1030 + $0xb0] sm:$0xff]
        %v1794 = vld [vmem:[%s1030 + $0xb8] sm:$0xff]
        %v1795 = vld [vmem:[%s1030 + $0xc0] sm:$0xff]
        %v1796 = vld [vmem:[%s1030 + $0xc8] sm:$0xff]
        %v1797 = vld [vmem:[%s1030 + $0xd0] sm:$0xff]
        %v1798 = vld [vmem:[%s1030 + $0xd8] sm:$0xff]
        %v1799 = vld [vmem:[%s1030 + $0xe0] sm:$0xff]
        %v1800 = vld [vmem:[%s1030 + $0xe8] sm:$0xff]
        %v1801 = vld [vmem:[%s1030 + $0xf0] sm:$0xff]
        %v1802 = vld [vmem:[%s1030 + $0xf8] sm:$0xff]
        %v1803 = vmul.f32 %v1771, %v1420
        %v1804 = vmul.f32 %v1772, %v1420
        %v1805 = vmul.f32 %v1773, %v1420
        %v1806 = vmul.f32 %v1774, %v1420
        %v1807 = vmul.f32 %v1775, %v1420
        %v1808 = vmul.f32 %v1776, %v1420
        %v1809 = vmul.f32 %v1777, %v1420
        %v1810 = vmul.f32 %v1778, %v1420
        %v1811 = vmul.f32 %v1779, %v1420
        %v1812 = vmul.f32 %v1780, %v1420
        %v1813 = vmul.f32 %v1781, %v1420
        %v1814 = vmul.f32 %v1782, %v1420
        %v1815 = vmul.f32 %v1783, %v1420
        %v1816 = vmul.f32 %v1784, %v1420
        %v1817 = vmul.f32 %v1785, %v1420
        %v1818 = vmul.f32 %v1786, %v1420
        %v1819 = vmul.f32 %v1787, %v1441
        %v1820 = vmul.f32 %v1788, %v1441
        %v1821 = vmul.f32 %v1789, %v1441
        %v1822 = vmul.f32 %v1790, %v1441
        %v1823 = vmul.f32 %v1791, %v1441
        %v1824 = vmul.f32 %v1792, %v1441
        %v1825 = vmul.f32 %v1793, %v1441
        %v1826 = vmul.f32 %v1794, %v1441
        %v1827 = vmul.f32 %v1795, %v1441
        %v1828 = vmul.f32 %v1796, %v1441
        %v1829 = vmul.f32 %v1797, %v1441
        %v1830 = vmul.f32 %v1798, %v1441
        %v1831 = vmul.f32 %v1799, %v1441
        %v1832 = vmul.f32 %v1800, %v1441
        %v1833 = vmul.f32 %v1801, %v1441
        %v1834 = vmul.f32 %v1802, %v1441
        %v1835 = vsel %vm1243, %v1803, 0.0
        %1836 = vadd.xlane.f32.xlu0 %v1835
        %v1837 = vpop.xlane.xlu0 %1836
        %v1838 = vsel %vm1243, %v1804, 0.0
        %1839 = vadd.xlane.f32.xlu0 %v1838
        %v1840 = vpop.xlane.xlu0 %1839
        %v1841 = vsel %vm1243, %v1805, 0.0
        %1842 = vadd.xlane.f32.xlu0 %v1841
        %v1843 = vpop.xlane.xlu0 %1842
        %v1844 = vsel %vm1243, %v1806, 0.0
        %1845 = vadd.xlane.f32.xlu0 %v1844
        %v1846 = vpop.xlane.xlu0 %1845
        %v1847 = vsel %vm1243, %v1807, 0.0
        %1848 = vadd.xlane.f32.xlu0 %v1847
        %v1849 = vpop.xlane.xlu0 %1848
        %v1850 = vsel %vm1243, %v1808, 0.0
        %1851 = vadd.xlane.f32.xlu0 %v1850
        %v1852 = vpop.xlane.xlu0 %1851
        %v1853 = vsel %vm1243, %v1809, 0.0
        %1854 = vadd.xlane.f32.xlu0 %v1853
        %v1855 = vpop.xlane.xlu0 %1854
        %v1856 = vsel %vm1243, %v1810, 0.0
        %1857 = vadd.xlane.f32.xlu0 %v1856
        %v1858 = vpop.xlane.xlu0 %1857
        %v1859 = vsel %vm1243, %v1811, 0.0
        %1860 = vadd.xlane.f32.xlu0 %v1859
        %v1861 = vpop.xlane.xlu0 %1860
        %v1862 = vsel %vm1243, %v1812, 0.0
        %1863 = vadd.xlane.f32.xlu0 %v1862
        %v1864 = vpop.xlane.xlu0 %1863
        %v1865 = vsel %vm1243, %v1813, 0.0
        %1866 = vadd.xlane.f32.xlu0 %v1865
        %v1867 = vpop.xlane.xlu0 %1866
        %v1868 = vsel %vm1243, %v1814, 0.0
        %1869 = vadd.xlane.f32.xlu0 %v1868
        %v1870 = vpop.xlane.xlu0 %1869
        %v1871 = vsel %vm1243, %v1815, 0.0
        %1872 = vadd.xlane.f32.xlu0 %v1871
        %v1873 = vpop.xlane.xlu0 %1872
        %v1874 = vsel %vm1243, %v1816, 0.0
        %1875 = vadd.xlane.f32.xlu0 %v1874
        %v1876 = vpop.xlane.xlu0 %1875
        %v1877 = vsel %vm1243, %v1817, 0.0
        %1878 = vadd.xlane.f32.xlu0 %v1877
        %v1879 = vpop.xlane.xlu0 %1878
        %v1880 = vsel %vm1243, %v1818, 0.0
        %1881 = vadd.xlane.f32.xlu0 %v1880
        %v1882 = vpop.xlane.xlu0 %1881
        %v1883 = vsel %vm1243, %v1819, 0.0
        %1884 = vadd.xlane.f32.xlu0 %v1883
        %v1885 = vpop.xlane.xlu0 %1884
        %v1886 = vsel %vm1243, %v1820, 0.0
        %1887 = vadd.xlane.f32.xlu0 %v1886
        %v1888 = vpop.xlane.xlu0 %1887
        %v1889 = vsel %vm1243, %v1821, 0.0
        %1890 = vadd.xlane.f32.xlu0 %v1889
        %v1891 = vpop.xlane.xlu0 %1890
        %v1892 = vsel %vm1243, %v1822, 0.0
        %1893 = vadd.xlane.f32.xlu0 %v1892
        %v1894 = vpop.xlane.xlu0 %1893
        %v1895 = vsel %vm1243, %v1823, 0.0
        %1896 = vadd.xlane.f32.xlu0 %v1895
        %v1897 = vpop.xlane.xlu0 %1896
        %v1898 = vsel %vm1243, %v1824, 0.0
        %1899 = vadd.xlane.f32.xlu0 %v1898
        %v1900 = vpop.xlane.xlu0 %1899
        %v1901 = vsel %vm1243, %v1825, 0.0
        %1902 = vadd.xlane.f32.xlu0 %v1901
        %v1903 = vpop.xlane.xlu0 %1902
        %v1904 = vsel %vm1243, %v1826, 0.0
        %1905 = vadd.xlane.f32.xlu0 %v1904
        %v1906 = vpop.xlane.xlu0 %1905
        %v1907 = vsel %vm1243, %v1827, 0.0
        %1908 = vadd.xlane.f32.xlu0 %v1907
        %v1909 = vpop.xlane.xlu0 %1908
        %v1910 = vsel %vm1243, %v1828, 0.0
        %1911 = vadd.xlane.f32.xlu0 %v1910
        %v1912 = vpop.xlane.xlu0 %1911
        %v1913 = vsel %vm1243, %v1829, 0.0
        %1914 = vadd.xlane.f32.xlu0 %v1913
        %v1915 = vpop.xlane.xlu0 %1914
        %v1916 = vsel %vm1243, %v1830, 0.0
        %1917 = vadd.xlane.f32.xlu0 %v1916
        %v1918 = vpop.xlane.xlu0 %1917
        %v1919 = vsel %vm1243, %v1831, 0.0
        %1920 = vadd.xlane.f32.xlu0 %v1919
        %v1921 = vpop.xlane.xlu0 %1920
        %v1922 = vsel %vm1243, %v1832, 0.0
        %1923 = vadd.xlane.f32.xlu0 %v1922
        %v1924 = vpop.xlane.xlu0 %1923
        %v1925 = vsel %vm1243, %v1833, 0.0
        %1926 = vadd.xlane.f32.xlu0 %v1925
        %v1927 = vpop.xlane.xlu0 %1926
        %v1928 = vsel %vm1243, %v1834, 0.0
        %1929 = vadd.xlane.f32.xlu0 %v1928
        %v1930 = vpop.xlane.xlu0 %1929
        %v1931 = vadd.f32 %v1837, %v1607
        %v1932 = vadd.f32 %v1840, %v1607
        %v1933 = vadd.f32 %v1843, %v1607
        %v1934 = vadd.f32 %v1846, %v1607
        %v1935 = vadd.f32 %v1849, %v1607
        %v1936 = vadd.f32 %v1852, %v1607
        %v1937 = vadd.f32 %v1855, %v1607
        %v1938 = vadd.f32 %v1858, %v1607
        %v1939 = vadd.f32 %v1861, %v1607
        %v1940 = vadd.f32 %v1864, %v1607
        %v1941 = vadd.f32 %v1867, %v1607
        %v1942 = vadd.f32 %v1870, %v1607
        %v1943 = vadd.f32 %v1873, %v1607
        %v1944 = vadd.f32 %v1876, %v1607
        %v1945 = vadd.f32 %v1879, %v1607
        %v1946 = vadd.f32 %v1882, %v1607
        %v1947 = vadd.f32 %v1885, %v1607
        %v1948 = vadd.f32 %v1888, %v1607
        %v1949 = vadd.f32 %v1891, %v1607
        %v1950 = vadd.f32 %v1894, %v1607
        %v1951 = vadd.f32 %v1897, %v1607
        %v1952 = vadd.f32 %v1900, %v1607
        %v1953 = vadd.f32 %v1903, %v1607
        %v1954 = vadd.f32 %v1906, %v1607
        %v1955 = vadd.f32 %v1909, %v1607
        %v1956 = vadd.f32 %v1912, %v1607
        %v1957 = vadd.f32 %v1915, %v1607
        %v1958 = vadd.f32 %v1918, %v1607
        %v1959 = vadd.f32 %v1921, %v1607
        %v1960 = vadd.f32 %v1924, %v1607
        %v1961 = vadd.f32 %v1927, %v1607
        %v1962 = vadd.f32 %v1930, %v1607
        %v1995 = vperm.slane %v1931, %v1674
        %v1996 = vperm.slane %v1932, %v1676
        %v1997 = vsel %vm1678, %v1996, %v1995
        %v1998 = vperm.slane %v1933, %v1680
        %v1999 = vsel %vm1682, %v1998, %v1997
        %v2000 = vperm.slane %v1934, %v1684
        %v2001 = vsel %vm1686, %v2000, %v1999
        %v2002 = vperm.slane %v1935, %v1688
        %v2003 = vsel %vm1690, %v2002, %v2001
        %v2004 = vperm.slane %v1936, %v1692
        %v2005 = vsel %vm1694, %v2004, %v2003
        %v2006 = vperm.slane %v1937, %v1696
        %v2007 = vsel %vm1698, %v2006, %v2005
        %v2008 = vperm.slane %v1938, %v1700
        %v2009 = vsel %vm1702, %v2008, %v2007
        %v2010 = vperm.slane %v1939, %v1704
        %v2011 = vsel %vm1706, %v2010, %v2009
        %v2012 = vperm.slane %v1940, %v1708
        %v2013 = vsel %vm1710, %v2012, %v2011
        %v2014 = vperm.slane %v1941, %v1712
        %v2015 = vsel %vm1714, %v2014, %v2013
        %v2016 = vperm.slane %v1942, %v1716
        %v2017 = vsel %vm1718, %v2016, %v2015
        %v2018 = vperm.slane %v1943, %v1720
        %v2019 = vsel %vm1722, %v2018, %v2017
        %v2020 = vperm.slane %v1944, %v1724
        %v2021 = vsel %vm1726, %v2020, %v2019
        %v2022 = vperm.slane %v1945, %v1728
        %v2023 = vsel %vm1730, %v2022, %v2021
        %v2024 = vperm.slane %v1946, %v1732
        %v2025 = vsel %vm1734, %v2024, %v2023
        %v2026 = vperm.slane %v1947, %v1674
        %v2027 = vperm.slane %v1948, %v1676
        %v2028 = vsel %vm1678, %v2027, %v2026
        %v2029 = vperm.slane %v1949, %v1680
        %v2030 = vsel %vm1682, %v2029, %v2028
        %v2031 = vperm.slane %v1950, %v1684
        %v2032 = vsel %vm1686, %v2031, %v2030
        %v2033 = vperm.slane %v1951, %v1688
        %v2034 = vsel %vm1690, %v2033, %v2032
        %v2035 = vperm.slane %v1952, %v1692
        %v2036 = vsel %vm1694, %v2035, %v2034
        %v2037 = vperm.slane %v1953, %v1696
        %v2038 = vsel %vm1698, %v2037, %v2036
        %v2039 = vperm.slane %v1954, %v1700
        %v2040 = vsel %vm1702, %v2039, %v2038
        %v2041 = vperm.slane %v1955, %v1704
        %v2042 = vsel %vm1706, %v2041, %v2040
        %v2043 = vperm.slane %v1956, %v1708
        %v2044 = vsel %vm1710, %v2043, %v2042
        %v2045 = vperm.slane %v1957, %v1712
        %v2046 = vsel %vm1714, %v2045, %v2044
        %v2047 = vperm.slane %v1958, %v1716
        %v2048 = vsel %vm1718, %v2047, %v2046
        %v2049 = vperm.slane %v1959, %v1720
        %v2050 = vsel %vm1722, %v2049, %v2048
        %v2051 = vperm.slane %v1960, %v1724
        %v2052 = vsel %vm1726, %v2051, %v2050
        %v2053 = vperm.slane %v1961, %v1728
        %v2054 = vsel %vm1730, %v2053, %v2052
        %v2055 = vperm.slane %v1962, %v1732
        %v2056 = vsel %vm1734, %v2055, %v2054
        %v2057 = vsel %vm1767, %v2056, %v2025
        %2059 = vst [vmem:[%s1100] sm:$0x3] %v2057
        %v2060 = vld [vmem:[%s1051] sm:$0xff]
        %v2061 = vld [vmem:[%s1051 + $0x8] sm:$0xff]
        %v2062 = vld [vmem:[%s1051 + $0x10] sm:$0xff]
        %v2063 = vld [vmem:[%s1051 + $0x18] sm:$0xff]
        %v2064 = vld [vmem:[%s1051 + $0x20] sm:$0xff]
        %v2065 = vld [vmem:[%s1051 + $0x28] sm:$0xff]
        %v2066 = vld [vmem:[%s1051 + $0x30] sm:$0xff]
        %v2067 = vld [vmem:[%s1051 + $0x38] sm:$0xff]
        %v2068 = vld [vmem:[%s1051 + $0x40] sm:$0xff]
        %v2069 = vld [vmem:[%s1051 + $0x48] sm:$0xff]
        %v2070 = vld [vmem:[%s1051 + $0x50] sm:$0xff]
        %v2071 = vld [vmem:[%s1051 + $0x58] sm:$0xff]
        %v2072 = vld [vmem:[%s1051 + $0x60] sm:$0xff]
        %v2073 = vld [vmem:[%s1051 + $0x68] sm:$0xff]
        %v2074 = vld [vmem:[%s1051 + $0x70] sm:$0xff]
        %v2075 = vld [vmem:[%s1051 + $0x78] sm:$0xff]
        %v2076 = vld [vmem:[%s1051 + $0x80] sm:$0xff]
        %v2077 = vld [vmem:[%s1051 + $0x88] sm:$0xff]
        %v2078 = vld [vmem:[%s1051 + $0x90] sm:$0xff]
        %v2079 = vld [vmem:[%s1051 + $0x98] sm:$0xff]
        %v2080 = vld [vmem:[%s1051 + $0xa0] sm:$0xff]
        %v2081 = vld [vmem:[%s1051 + $0xa8] sm:$0xff]
        %v2082 = vld [vmem:[%s1051 + $0xb0] sm:$0xff]
        %v2083 = vld [vmem:[%s1051 + $0xb8] sm:$0xff]
        %v2084 = vld [vmem:[%s1051 + $0xc0] sm:$0xff]
        %v2085 = vld [vmem:[%s1051 + $0xc8] sm:$0xff]
        %v2086 = vld [vmem:[%s1051 + $0xd0] sm:$0xff]
        %v2087 = vld [vmem:[%s1051 + $0xd8] sm:$0xff]
        %v2088 = vld [vmem:[%s1051 + $0xe0] sm:$0xff]
        %v2089 = vld [vmem:[%s1051 + $0xe8] sm:$0xff]
        %v2090 = vld [vmem:[%s1051 + $0xf0] sm:$0xff]
        %v2091 = vld [vmem:[%s1051 + $0xf8] sm:$0xff]
        %v2092 = vmul.f32 %v2060, %v1264
        %v2093 = vmul.f32 %v2061, %v1264
        %v2094 = vmul.f32 %v2062, %v1264
        %v2095 = vmul.f32 %v2063, %v1264
        %v2096 = vmul.f32 %v2064, %v1264
        %v2097 = vmul.f32 %v2065, %v1264
        %v2098 = vmul.f32 %v2066, %v1264
        %v2099 = vmul.f32 %v2067, %v1264
        %v2100 = vmul.f32 %v2068, %v1264
        %v2101 = vmul.f32 %v2069, %v1264
        %v2102 = vmul.f32 %v2070, %v1264
        %v2103 = vmul.f32 %v2071, %v1264
        %v2104 = vmul.f32 %v2072, %v1264
        %v2105 = vmul.f32 %v2073, %v1264
        %v2106 = vmul.f32 %v2074, %v1264
        %v2107 = vmul.f32 %v2075, %v1264
        %v2108 = vmul.f32 %v2076, %v1285
        %v2109 = vmul.f32 %v2077, %v1285
        %v2110 = vmul.f32 %v2078, %v1285
        %v2111 = vmul.f32 %v2079, %v1285
        %v2112 = vmul.f32 %v2080, %v1285
        %v2113 = vmul.f32 %v2081, %v1285
        %v2114 = vmul.f32 %v2082, %v1285
        %v2115 = vmul.f32 %v2083, %v1285
        %v2116 = vmul.f32 %v2084, %v1285
        %v2117 = vmul.f32 %v2085, %v1285
        %v2118 = vmul.f32 %v2086, %v1285
        %v2119 = vmul.f32 %v2087, %v1285
        %v2120 = vmul.f32 %v2088, %v1285
        %v2121 = vmul.f32 %v2089, %v1285
        %v2122 = vmul.f32 %v2090, %v1285
        %v2123 = vmul.f32 %v2091, %v1285
        %v2124 = vsel %vm1243, %v2092, 0.0
        %2125 = vadd.xlane.f32.xlu0 %v2124
        %v2126 = vpop.xlane.xlu0 %2125
        %v2127 = vsel %vm1243, %v2093, 0.0
        %2128 = vadd.xlane.f32.xlu0 %v2127
        %v2129 = vpop.xlane.xlu0 %2128
        %v2130 = vsel %vm1243, %v2094, 0.0
        %2131 = vadd.xlane.f32.xlu0 %v2130
        %v2132 = vpop.xlane.xlu0 %2131
        %v2133 = vsel %vm1243, %v2095, 0.0
        %2134 = vadd.xlane.f32.xlu0 %v2133
        %v2135 = vpop.xlane.xlu0 %2134
        %v2136 = vsel %vm1243, %v2096, 0.0
        %2137 = vadd.xlane.f32.xlu0 %v2136
        %v2138 = vpop.xlane.xlu0 %2137
        %v2139 = vsel %vm1243, %v2097, 0.0
        %2140 = vadd.xlane.f32.xlu0 %v2139
        %v2141 = vpop.xlane.xlu0 %2140
        %v2142 = vsel %vm1243, %v2098, 0.0
        %2143 = vadd.xlane.f32.xlu0 %v2142
        %v2144 = vpop.xlane.xlu0 %2143
        %v2145 = vsel %vm1243, %v2099, 0.0
        %2146 = vadd.xlane.f32.xlu0 %v2145
        %v2147 = vpop.xlane.xlu0 %2146
        %v2148 = vsel %vm1243, %v2100, 0.0
        %2149 = vadd.xlane.f32.xlu0 %v2148
        %v2150 = vpop.xlane.xlu0 %2149
        %v2151 = vsel %vm1243, %v2101, 0.0
        %2152 = vadd.xlane.f32.xlu0 %v2151
        %v2153 = vpop.xlane.xlu0 %2152
        %v2154 = vsel %vm1243, %v2102, 0.0
        %2155 = vadd.xlane.f32.xlu0 %v2154
        %v2156 = vpop.xlane.xlu0 %2155
        %v2157 = vsel %vm1243, %v2103, 0.0
        %2158 = vadd.xlane.f32.xlu0 %v2157
        %v2159 = vpop.xlane.xlu0 %2158
        %v2160 = vsel %vm1243, %v2104, 0.0
        %2161 = vadd.xlane.f32.xlu0 %v2160
        %v2162 = vpop.xlane.xlu0 %2161
        %v2163 = vsel %vm1243, %v2105, 0.0
        %2164 = vadd.xlane.f32.xlu0 %v2163
        %v2165 = vpop.xlane.xlu0 %2164
        %v2166 = vsel %vm1243, %v2106, 0.0
        %2167 = vadd.xlane.f32.xlu0 %v2166
        %v2168 = vpop.xlane.xlu0 %2167
        %v2169 = vsel %vm1243, %v2107, 0.0
        %2170 = vadd.xlane.f32.xlu0 %v2169
        %v2171 = vpop.xlane.xlu0 %2170
        %v2172 = vsel %vm1243, %v2108, 0.0
        %2173 = vadd.xlane.f32.xlu0 %v2172
        %v2174 = vpop.xlane.xlu0 %2173
        %v2175 = vsel %vm1243, %v2109, 0.0
        %2176 = vadd.xlane.f32.xlu0 %v2175
        %v2177 = vpop.xlane.xlu0 %2176
        %v2178 = vsel %vm1243, %v2110, 0.0
        %2179 = vadd.xlane.f32.xlu0 %v2178
        %v2180 = vpop.xlane.xlu0 %2179
        %v2181 = vsel %vm1243, %v2111, 0.0
        %2182 = vadd.xlane.f32.xlu0 %v2181
        %v2183 = vpop.xlane.xlu0 %2182
        %v2184 = vsel %vm1243, %v2112, 0.0
        %2185 = vadd.xlane.f32.xlu0 %v2184
        %v2186 = vpop.xlane.xlu0 %2185
        %v2187 = vsel %vm1243, %v2113, 0.0
        %2188 = vadd.xlane.f32.xlu0 %v2187
        %v2189 = vpop.xlane.xlu0 %2188
        %v2190 = vsel %vm1243, %v2114, 0.0
        %2191 = vadd.xlane.f32.xlu0 %v2190
        %v2192 = vpop.xlane.xlu0 %2191
        %v2193 = vsel %vm1243, %v2115, 0.0
        %2194 = vadd.xlane.f32.xlu0 %v2193
        %v2195 = vpop.xlane.xlu0 %2194
        %v2196 = vsel %vm1243, %v2116, 0.0
        %2197 = vadd.xlane.f32.xlu0 %v2196
        %v2198 = vpop.xlane.xlu0 %2197
        %v2199 = vsel %vm1243, %v2117, 0.0
        %2200 = vadd.xlane.f32.xlu0 %v2199
        %v2201 = vpop.xlane.xlu0 %2200
        %v2202 = vsel %vm1243, %v2118, 0.0
        %2203 = vadd.xlane.f32.xlu0 %v2202
        %v2204 = vpop.xlane.xlu0 %2203
        %v2205 = vsel %vm1243, %v2119, 0.0
        %2206 = vadd.xlane.f32.xlu0 %v2205
        %v2207 = vpop.xlane.xlu0 %2206
        %v2208 = vsel %vm1243, %v2120, 0.0
        %2209 = vadd.xlane.f32.xlu0 %v2208
        %v2210 = vpop.xlane.xlu0 %2209
        %v2211 = vsel %vm1243, %v2121, 0.0
        %2212 = vadd.xlane.f32.xlu0 %v2211
        %v2213 = vpop.xlane.xlu0 %2212
        %v2214 = vsel %vm1243, %v2122, 0.0
        %2215 = vadd.xlane.f32.xlu0 %v2214
        %v2216 = vpop.xlane.xlu0 %2215
        %v2217 = vsel %vm1243, %v2123, 0.0
        %2218 = vadd.xlane.f32.xlu0 %v2217
        %v2219 = vpop.xlane.xlu0 %2218
        %v2220 = vadd.f32 %v2126, %v1607
        %v2221 = vadd.f32 %v2129, %v1607
        %v2222 = vadd.f32 %v2132, %v1607
        %v2223 = vadd.f32 %v2135, %v1607
        %v2224 = vadd.f32 %v2138, %v1607
        %v2225 = vadd.f32 %v2141, %v1607
        %v2226 = vadd.f32 %v2144, %v1607
        %v2227 = vadd.f32 %v2147, %v1607
        %v2228 = vadd.f32 %v2150, %v1607
        %v2229 = vadd.f32 %v2153, %v1607
        %v2230 = vadd.f32 %v2156, %v1607
        %v2231 = vadd.f32 %v2159, %v1607
        %v2232 = vadd.f32 %v2162, %v1607
        %v2233 = vadd.f32 %v2165, %v1607
        %v2234 = vadd.f32 %v2168, %v1607
        %v2235 = vadd.f32 %v2171, %v1607
        %v2236 = vadd.f32 %v2174, %v1607
        %v2237 = vadd.f32 %v2177, %v1607
        %v2238 = vadd.f32 %v2180, %v1607
        %v2239 = vadd.f32 %v2183, %v1607
        %v2240 = vadd.f32 %v2186, %v1607
        %v2241 = vadd.f32 %v2189, %v1607
        %v2242 = vadd.f32 %v2192, %v1607
        %v2243 = vadd.f32 %v2195, %v1607
        %v2244 = vadd.f32 %v2198, %v1607
        %v2245 = vadd.f32 %v2201, %v1607
        %v2246 = vadd.f32 %v2204, %v1607
        %v2247 = vadd.f32 %v2207, %v1607
        %v2248 = vadd.f32 %v2210, %v1607
        %v2249 = vadd.f32 %v2213, %v1607
        %v2250 = vadd.f32 %v2216, %v1607
        %v2251 = vadd.f32 %v2219, %v1607
        %v2284 = vperm.slane %v2220, %v1674
        %v2285 = vperm.slane %v2221, %v1676
        %v2286 = vsel %vm1678, %v2285, %v2284
        %v2287 = vperm.slane %v2222, %v1680
        %v2288 = vsel %vm1682, %v2287, %v2286
        %v2289 = vperm.slane %v2223, %v1684
        %v2290 = vsel %vm1686, %v2289, %v2288
        %v2291 = vperm.slane %v2224, %v1688
        %v2292 = vsel %vm1690, %v2291, %v2290
        %v2293 = vperm.slane %v2225, %v1692
        %v2294 = vsel %vm1694, %v2293, %v2292
        %v2295 = vperm.slane %v2226, %v1696
        %v2296 = vsel %vm1698, %v2295, %v2294
        %v2297 = vperm.slane %v2227, %v1700
        %v2298 = vsel %vm1702, %v2297, %v2296
        %v2299 = vperm.slane %v2228, %v1704
        %v2300 = vsel %vm1706, %v2299, %v2298
        %v2301 = vperm.slane %v2229, %v1708
        %v2302 = vsel %vm1710, %v2301, %v2300
        %v2303 = vperm.slane %v2230, %v1712
        %v2304 = vsel %vm1714, %v2303, %v2302
        %v2305 = vperm.slane %v2231, %v1716
        %v2306 = vsel %vm1718, %v2305, %v2304
        %v2307 = vperm.slane %v2232, %v1720
        %v2308 = vsel %vm1722, %v2307, %v2306
        %v2309 = vperm.slane %v2233, %v1724
        %v2310 = vsel %vm1726, %v2309, %v2308
        %v2311 = vperm.slane %v2234, %v1728
        %v2312 = vsel %vm1730, %v2311, %v2310
        %v2313 = vperm.slane %v2235, %v1732
        %v2314 = vsel %vm1734, %v2313, %v2312
        %v2315 = vperm.slane %v2236, %v1674
        %v2316 = vperm.slane %v2237, %v1676
        %v2317 = vsel %vm1678, %v2316, %v2315
        %v2318 = vperm.slane %v2238, %v1680
        %v2319 = vsel %vm1682, %v2318, %v2317
        %v2320 = vperm.slane %v2239, %v1684
        %v2321 = vsel %vm1686, %v2320, %v2319
        %v2322 = vperm.slane %v2240, %v1688
        %v2323 = vsel %vm1690, %v2322, %v2321
        %v2324 = vperm.slane %v2241, %v1692
        %v2325 = vsel %vm1694, %v2324, %v2323
        %v2326 = vperm.slane %v2242, %v1696
        %v2327 = vsel %vm1698, %v2326, %v2325
        %v2328 = vperm.slane %v2243, %v1700
        %v2329 = vsel %vm1702, %v2328, %v2327
        %v2330 = vperm.slane %v2244, %v1704
        %v2331 = vsel %vm1706, %v2330, %v2329
        %v2332 = vperm.slane %v2245, %v1708
        %v2333 = vsel %vm1710, %v2332, %v2331
        %v2334 = vperm.slane %v2246, %v1712
        %v2335 = vsel %vm1714, %v2334, %v2333
        %v2336 = vperm.slane %v2247, %v1716
        %v2337 = vsel %vm1718, %v2336, %v2335
        %v2338 = vperm.slane %v2248, %v1720
        %v2339 = vsel %vm1722, %v2338, %v2337
        %v2340 = vperm.slane %v2249, %v1724
        %v2341 = vsel %vm1726, %v2340, %v2339
        %v2342 = vperm.slane %v2250, %v1728
        %v2343 = vsel %vm1730, %v2342, %v2341
        %v2344 = vperm.slane %v2251, %v1732
        %v2345 = vsel %vm1734, %v2344, %v2343
        %v2346 = vsel %vm1767, %v2345, %v2314
        %2348 = vst [vmem:[%s1107] sm:$0x3] %v2346
        %v2349 = vld [vmem:[%s1044] sm:$0xff]
        %v2350 = vld [vmem:[%s1044 + $0x8] sm:$0xff]
        %v2351 = vld [vmem:[%s1044 + $0x10] sm:$0xff]
        %v2352 = vld [vmem:[%s1044 + $0x18] sm:$0xff]
        %v2353 = vld [vmem:[%s1044 + $0x20] sm:$0xff]
        %v2354 = vld [vmem:[%s1044 + $0x28] sm:$0xff]
        %v2355 = vld [vmem:[%s1044 + $0x30] sm:$0xff]
        %v2356 = vld [vmem:[%s1044 + $0x38] sm:$0xff]
        %v2357 = vld [vmem:[%s1044 + $0x40] sm:$0xff]
        %v2358 = vld [vmem:[%s1044 + $0x48] sm:$0xff]
        %v2359 = vld [vmem:[%s1044 + $0x50] sm:$0xff]
        %v2360 = vld [vmem:[%s1044 + $0x58] sm:$0xff]
        %v2361 = vld [vmem:[%s1044 + $0x60] sm:$0xff]
        %v2362 = vld [vmem:[%s1044 + $0x68] sm:$0xff]
        %v2363 = vld [vmem:[%s1044 + $0x70] sm:$0xff]
        %v2364 = vld [vmem:[%s1044 + $0x78] sm:$0xff]
        %v2365 = vld [vmem:[%s1044 + $0x80] sm:$0xff]
        %v2366 = vld [vmem:[%s1044 + $0x88] sm:$0xff]
        %v2367 = vld [vmem:[%s1044 + $0x90] sm:$0xff]
        %v2368 = vld [vmem:[%s1044 + $0x98] sm:$0xff]
        %v2369 = vld [vmem:[%s1044 + $0xa0] sm:$0xff]
        %v2370 = vld [vmem:[%s1044 + $0xa8] sm:$0xff]
        %v2371 = vld [vmem:[%s1044 + $0xb0] sm:$0xff]
        %v2372 = vld [vmem:[%s1044 + $0xb8] sm:$0xff]
        %v2373 = vld [vmem:[%s1044 + $0xc0] sm:$0xff]
        %v2374 = vld [vmem:[%s1044 + $0xc8] sm:$0xff]
        %v2375 = vld [vmem:[%s1044 + $0xd0] sm:$0xff]
        %v2376 = vld [vmem:[%s1044 + $0xd8] sm:$0xff]
        %v2377 = vld [vmem:[%s1044 + $0xe0] sm:$0xff]
        %v2378 = vld [vmem:[%s1044 + $0xe8] sm:$0xff]
        %v2379 = vld [vmem:[%s1044 + $0xf0] sm:$0xff]
        %v2380 = vld [vmem:[%s1044 + $0xf8] sm:$0xff]
        %v2381 = vmul.f32 %v2349, %v1420
        %v2382 = vmul.f32 %v2350, %v1420
        %v2383 = vmul.f32 %v2351, %v1420
        %v2384 = vmul.f32 %v2352, %v1420
        %v2385 = vmul.f32 %v2353, %v1420
        %v2386 = vmul.f32 %v2354, %v1420
        %v2387 = vmul.f32 %v2355, %v1420
        %v2388 = vmul.f32 %v2356, %v1420
        %v2389 = vmul.f32 %v2357, %v1420
        %v2390 = vmul.f32 %v2358, %v1420
        %v2391 = vmul.f32 %v2359, %v1420
        %v2392 = vmul.f32 %v2360, %v1420
        %v2393 = vmul.f32 %v2361, %v1420
        %v2394 = vmul.f32 %v2362, %v1420
        %v2395 = vmul.f32 %v2363, %v1420
        %v2396 = vmul.f32 %v2364, %v1420
        %v2397 = vmul.f32 %v2365, %v1441
        %v2398 = vmul.f32 %v2366, %v1441
        %v2399 = vmul.f32 %v2367, %v1441
        %v2400 = vmul.f32 %v2368, %v1441
        %v2401 = vmul.f32 %v2369, %v1441
        %v2402 = vmul.f32 %v2370, %v1441
        %v2403 = vmul.f32 %v2371, %v1441
        %v2404 = vmul.f32 %v2372, %v1441
        %v2405 = vmul.f32 %v2373, %v1441
        %v2406 = vmul.f32 %v2374, %v1441
        %v2407 = vmul.f32 %v2375, %v1441
        %v2408 = vmul.f32 %v2376, %v1441
        %v2409 = vmul.f32 %v2377, %v1441
        %v2410 = vmul.f32 %v2378, %v1441
        %v2411 = vmul.f32 %v2379, %v1441
        %v2412 = vmul.f32 %v2380, %v1441
        %v2413 = vsel %vm1243, %v2381, 0.0
        %2414 = vadd.xlane.f32.xlu0 %v2413
        %v2415 = vpop.xlane.xlu0 %2414
        %v2416 = vsel %vm1243, %v2382, 0.0
        %2417 = vadd.xlane.f32.xlu0 %v2416
        %v2418 = vpop.xlane.xlu0 %2417
        %v2419 = vsel %vm1243, %v2383, 0.0
        %2420 = vadd.xlane.f32.xlu0 %v2419
        %v2421 = vpop.xlane.xlu0 %2420
        %v2422 = vsel %vm1243, %v2384, 0.0
        %2423 = vadd.xlane.f32.xlu0 %v2422
        %v2424 = vpop.xlane.xlu0 %2423
        %v2425 = vsel %vm1243, %v2385, 0.0
        %2426 = vadd.xlane.f32.xlu0 %v2425
        %v2427 = vpop.xlane.xlu0 %2426
        %v2428 = vsel %vm1243, %v2386, 0.0
        %2429 = vadd.xlane.f32.xlu0 %v2428
        %v2430 = vpop.xlane.xlu0 %2429
        %v2431 = vsel %vm1243, %v2387, 0.0
        %2432 = vadd.xlane.f32.xlu0 %v2431
        %v2433 = vpop.xlane.xlu0 %2432
        %v2434 = vsel %vm1243, %v2388, 0.0
        %2435 = vadd.xlane.f32.xlu0 %v2434
        %v2436 = vpop.xlane.xlu0 %2435
        %v2437 = vsel %vm1243, %v2389, 0.0
        %2438 = vadd.xlane.f32.xlu0 %v2437
        %v2439 = vpop.xlane.xlu0 %2438
        %v2440 = vsel %vm1243, %v2390, 0.0
        %2441 = vadd.xlane.f32.xlu0 %v2440
        %v2442 = vpop.xlane.xlu0 %2441
        %v2443 = vsel %vm1243, %v2391, 0.0
        %2444 = vadd.xlane.f32.xlu0 %v2443
        %v2445 = vpop.xlane.xlu0 %2444
        %v2446 = vsel %vm1243, %v2392, 0.0
        %2447 = vadd.xlane.f32.xlu0 %v2446
        %v2448 = vpop.xlane.xlu0 %2447
        %v2449 = vsel %vm1243, %v2393, 0.0
        %2450 = vadd.xlane.f32.xlu0 %v2449
        %v2451 = vpop.xlane.xlu0 %2450
        %v2452 = vsel %vm1243, %v2394, 0.0
        %2453 = vadd.xlane.f32.xlu0 %v2452
        %v2454 = vpop.xlane.xlu0 %2453
        %v2455 = vsel %vm1243, %v2395, 0.0
        %2456 = vadd.xlane.f32.xlu0 %v2455
        %v2457 = vpop.xlane.xlu0 %2456
        %v2458 = vsel %vm1243, %v2396, 0.0
        %2459 = vadd.xlane.f32.xlu0 %v2458
        %v2460 = vpop.xlane.xlu0 %2459
        %v2461 = vsel %vm1243, %v2397, 0.0
        %2462 = vadd.xlane.f32.xlu0 %v2461
        %v2463 = vpop.xlane.xlu0 %2462
        %v2464 = vsel %vm1243, %v2398, 0.0
        %2465 = vadd.xlane.f32.xlu0 %v2464
        %v2466 = vpop.xlane.xlu0 %2465
        %v2467 = vsel %vm1243, %v2399, 0.0
        %2468 = vadd.xlane.f32.xlu0 %v2467
        %v2469 = vpop.xlane.xlu0 %2468
        %v2470 = vsel %vm1243, %v2400, 0.0
        %2471 = vadd.xlane.f32.xlu0 %v2470
        %v2472 = vpop.xlane.xlu0 %2471
        %v2473 = vsel %vm1243, %v2401, 0.0
        %2474 = vadd.xlane.f32.xlu0 %v2473
        %v2475 = vpop.xlane.xlu0 %2474
        %v2476 = vsel %vm1243, %v2402, 0.0
        %2477 = vadd.xlane.f32.xlu0 %v2476
        %v2478 = vpop.xlane.xlu0 %2477
        %v2479 = vsel %vm1243, %v2403, 0.0
        %2480 = vadd.xlane.f32.xlu0 %v2479
        %v2481 = vpop.xlane.xlu0 %2480
        %v2482 = vsel %vm1243, %v2404, 0.0
        %2483 = vadd.xlane.f32.xlu0 %v2482
        %v2484 = vpop.xlane.xlu0 %2483
        %v2485 = vsel %vm1243, %v2405, 0.0
        %2486 = vadd.xlane.f32.xlu0 %v2485
        %v2487 = vpop.xlane.xlu0 %2486
        %v2488 = vsel %vm1243, %v2406, 0.0
        %2489 = vadd.xlane.f32.xlu0 %v2488
        %v2490 = vpop.xlane.xlu0 %2489
        %v2491 = vsel %vm1243, %v2407, 0.0
        %2492 = vadd.xlane.f32.xlu0 %v2491
        %v2493 = vpop.xlane.xlu0 %2492
        %v2494 = vsel %vm1243, %v2408, 0.0
        %2495 = vadd.xlane.f32.xlu0 %v2494
        %v2496 = vpop.xlane.xlu0 %2495
        %v2497 = vsel %vm1243, %v2409, 0.0
        %2498 = vadd.xlane.f32.xlu0 %v2497
        %v2499 = vpop.xlane.xlu0 %2498
        %v2500 = vsel %vm1243, %v2410, 0.0
        %2501 = vadd.xlane.f32.xlu0 %v2500
        %v2502 = vpop.xlane.xlu0 %2501
        %v2503 = vsel %vm1243, %v2411, 0.0
        %2504 = vadd.xlane.f32.xlu0 %v2503
        %v2505 = vpop.xlane.xlu0 %2504
        %v2506 = vsel %vm1243, %v2412, 0.0
        %2507 = vadd.xlane.f32.xlu0 %v2506
        %v2508 = vpop.xlane.xlu0 %2507
        %v2509 = vadd.f32 %v2415, %v1607
        %v2510 = vadd.f32 %v2418, %v1607
        %v2511 = vadd.f32 %v2421, %v1607
        %v2512 = vadd.f32 %v2424, %v1607
        %v2513 = vadd.f32 %v2427, %v1607
        %v2514 = vadd.f32 %v2430, %v1607
        %v2515 = vadd.f32 %v2433, %v1607
        %v2516 = vadd.f32 %v2436, %v1607
        %v2517 = vadd.f32 %v2439, %v1607
        %v2518 = vadd.f32 %v2442, %v1607
        %v2519 = vadd.f32 %v2445, %v1607
        %v2520 = vadd.f32 %v2448, %v1607
        %v2521 = vadd.f32 %v2451, %v1607
        %v2522 = vadd.f32 %v2454, %v1607
        %v2523 = vadd.f32 %v2457, %v1607
        %v2524 = vadd.f32 %v2460, %v1607
        %v2525 = vadd.f32 %v2463, %v1607
        %v2526 = vadd.f32 %v2466, %v1607
        %v2527 = vadd.f32 %v2469, %v1607
        %v2528 = vadd.f32 %v2472, %v1607
        %v2529 = vadd.f32 %v2475, %v1607
        %v2530 = vadd.f32 %v2478, %v1607
        %v2531 = vadd.f32 %v2481, %v1607
        %v2532 = vadd.f32 %v2484, %v1607
        %v2533 = vadd.f32 %v2487, %v1607
        %v2534 = vadd.f32 %v2490, %v1607
        %v2535 = vadd.f32 %v2493, %v1607
        %v2536 = vadd.f32 %v2496, %v1607
        %v2537 = vadd.f32 %v2499, %v1607
        %v2538 = vadd.f32 %v2502, %v1607
        %v2539 = vadd.f32 %v2505, %v1607
        %v2540 = vadd.f32 %v2508, %v1607
        %v2573 = vperm.slane %v2509, %v1674
        %v2574 = vperm.slane %v2510, %v1676
        %v2575 = vsel %vm1678, %v2574, %v2573
        %v2576 = vperm.slane %v2511, %v1680
        %v2577 = vsel %vm1682, %v2576, %v2575
        %v2578 = vperm.slane %v2512, %v1684
        %v2579 = vsel %vm1686, %v2578, %v2577
        %v2580 = vperm.slane %v2513, %v1688
        %v2581 = vsel %vm1690, %v2580, %v2579
        %v2582 = vperm.slane %v2514, %v1692
        %v2583 = vsel %vm1694, %v2582, %v2581
        %v2584 = vperm.slane %v2515, %v1696
        %v2585 = vsel %vm1698, %v2584, %v2583
        %v2586 = vperm.slane %v2516, %v1700
        %v2587 = vsel %vm1702, %v2586, %v2585
        %v2588 = vperm.slane %v2517, %v1704
        %v2589 = vsel %vm1706, %v2588, %v2587
        %v2590 = vperm.slane %v2518, %v1708
        %v2591 = vsel %vm1710, %v2590, %v2589
        %v2592 = vperm.slane %v2519, %v1712
        %v2593 = vsel %vm1714, %v2592, %v2591
        %v2594 = vperm.slane %v2520, %v1716
        %v2595 = vsel %vm1718, %v2594, %v2593
        %v2596 = vperm.slane %v2521, %v1720
        %v2597 = vsel %vm1722, %v2596, %v2595
        %v2598 = vperm.slane %v2522, %v1724
        %v2599 = vsel %vm1726, %v2598, %v2597
        %v2600 = vperm.slane %v2523, %v1728
        %v2601 = vsel %vm1730, %v2600, %v2599
        %v2602 = vperm.slane %v2524, %v1732
        %v2603 = vsel %vm1734, %v2602, %v2601
        %v2604 = vperm.slane %v2525, %v1674
        %v2605 = vperm.slane %v2526, %v1676
        %v2606 = vsel %vm1678, %v2605, %v2604
        %v2607 = vperm.slane %v2527, %v1680
        %v2608 = vsel %vm1682, %v2607, %v2606
        %v2609 = vperm.slane %v2528, %v1684
        %v2610 = vsel %vm1686, %v2609, %v2608
        %v2611 = vperm.slane %v2529, %v1688
        %v2612 = vsel %vm1690, %v2611, %v2610
        %v2613 = vperm.slane %v2530, %v1692
        %v2614 = vsel %vm1694, %v2613, %v2612
        %v2615 = vperm.slane %v2531, %v1696
        %v2616 = vsel %vm1698, %v2615, %v2614
        %v2617 = vperm.slane %v2532, %v1700
        %v2618 = vsel %vm1702, %v2617, %v2616
        %v2619 = vperm.slane %v2533, %v1704
        %v2620 = vsel %vm1706, %v2619, %v2618
        %v2621 = vperm.slane %v2534, %v1708
        %v2622 = vsel %vm1710, %v2621, %v2620
        %v2623 = vperm.slane %v2535, %v1712
        %v2624 = vsel %vm1714, %v2623, %v2622
        %v2625 = vperm.slane %v2536, %v1716
        %v2626 = vsel %vm1718, %v2625, %v2624
        %v2627 = vperm.slane %v2537, %v1720
        %v2628 = vsel %vm1722, %v2627, %v2626
        %v2629 = vperm.slane %v2538, %v1724
        %v2630 = vsel %vm1726, %v2629, %v2628
        %v2631 = vperm.slane %v2539, %v1728
        %v2632 = vsel %vm1730, %v2631, %v2630
        %v2633 = vperm.slane %v2540, %v1732
        %v2634 = vsel %vm1734, %v2633, %v2632
        %v2635 = vsel %vm1767, %v2634, %v2603
        %2637 = vst [vmem:[%s1114] sm:$0x3] %v2635
        %s2638 = sand.u32 %s230, 1
        %s2639 = scalar_lea.sflag [#allocation8], %s2638
        %s2640 = sand.u32 %s230, 1
        %s2641 = smul.addr %s2640, 2
        %s2642 = scalar_lea.vmem [#allocation7], %s2641
        %s2643 = sand.u32 %s34, 1
        %s2644 = scalar_lea.sflag [#allocation10], %s2643
        %s2645 = sand.u32 %s256, 1
        %s2646 = smul.addr %s2645, 2
        %s2647 = scalar_lea.vmem [#allocation9], %s2646
        %s2648 = sand.u32 %s34, 1
        %s2649 = scalar_lea.sflag [#allocation10], %s2648
        %s2650 = sand.u32 %s282, 1
        %s2651 = smul.addr %s2650, 2
        %s2652 = scalar_lea.vmem [#allocation11], %s2651
        %s2653 = sand.u32 %s308, 1
        %s2654 = scalar_lea.sflag [#allocation13], %s2653
        %s2655 = sand.u32 %s308, 1
        %s2656 = smul.addr %s2655, 2
        %s2657 = scalar_lea.vmem [#allocation12], %s2656
        // Predicated region
        $region205: #{tpu_custom_call.1} parent=187 // pred_check
          %p2658 = pneg %p240
        $region206: #{tpu_custom_call.1} parent=187 // pred_check_branch
          %2660 = sbr.rel (%p2658) target = $region208
        $region207: #{tpu_custom_call.1} parent=187 // pred_region
          %2662 = vsyncadd %s2639, 0
          %s2663 = smul.addr %s34, 2
          %s2664 = scalar_lea.hbm %s8, %s2663
          %s2666 = sshll.u32 %s2642, 4
          %s2667 = int_to_ptr.vmem [resolvable:$true] %s2666
          %s2668 = sshll.u32 %s2664, 4
          %s2669 = int_to_ptr.hbm [resolvable:$true] %s2668
          %2671 = dma.vmem_to_hbm [thread:$0]  %s2667, 32, %s2669, %s2639
        $region208: #{tpu_custom_call.1} parent=187 // pred_fallthru
          _
        // Predicated region
        $region209: #{tpu_custom_call.1} parent=187 // pred_check
          %p2672 = pneg %p266
        $region210: #{tpu_custom_call.1} parent=187 // pred_check_branch
          %2674 = sbr.rel (%p2672) target = $region212
        $region211: #{tpu_custom_call.1} parent=187 // pred_region
          %2676 = vsyncadd %s2644, 0
          %s2677 = smul.addr %s34, 2
          %s2678 = scalar_lea.hbm %s9, %s2677
          %s2680 = sshll.u32 %s2647, 4
          %s2681 = int_to_ptr.vmem [resolvable:$true] %s2680
          %s2682 = sshll.u32 %s2678, 4
          %s2683 = int_to_ptr.hbm [resolvable:$true] %s2682
          %2685 = dma.vmem_to_hbm [thread:$0]  %s2681, 32, %s2683, %s2644
        $region212: #{tpu_custom_call.1} parent=187 // pred_fallthru
          _
        // Predicated region
        $region213: #{tpu_custom_call.1} parent=187 // pred_check
          %p2686 = pneg %p292
        $region214: #{tpu_custom_call.1} parent=187 // pred_check_branch
          %2688 = sbr.rel (%p2686) target = $region216
        $region215: #{tpu_custom_call.1} parent=187 // pred_region
          %2690 = vsyncadd %s2649, 0
          %s2691 = smul.addr %s34, 2
          %s2692 = scalar_lea.hbm %s10, %s2691
          %s2694 = sshll.u32 %s2652, 4
          %s2695 = int_to_ptr.vmem [resolvable:$true] %s2694
          %s2696 = sshll.u32 %s2692, 4
          %s2697 = int_to_ptr.hbm [resolvable:$true] %s2696
          %2699 = dma.vmem_to_hbm [thread:$0]  %s2695, 32, %s2697, %s2649
        $region216: #{tpu_custom_call.1} parent=187 // pred_fallthru
          _
        // Predicated region
        $region217: #{tpu_custom_call.1} parent=187 // pred_check
          %p2700 = pneg %p318
        $region218: #{tpu_custom_call.1} parent=187 // pred_check_branch
          %2702 = sbr.rel (%p2700) target = $region220
        $region219: #{tpu_custom_call.1} parent=187 // pred_region
          %2704 = vsyncadd %s2654, 0
          %s2705 = smul.addr %s34, 2
          %s2706 = scalar_lea.hbm %s11, %s2705
          %s2708 = sshll.u32 %s2657, 4
          %s2709 = int_to_ptr.vmem [resolvable:$true] %s2708
          %s2710 = sshll.u32 %s2706, 4
          %s2711 = int_to_ptr.hbm [resolvable:$true] %s2710
          %2713 = dma.vmem_to_hbm [thread:$0]  %s2709, 32, %s2711, %s2654
        $region220: #{tpu_custom_call.1} parent=187 // pred_fallthru
          _
      $region188: #{tpu_custom_call.1} parent=5 // pred_fallthru
        _
      %p2714 = scmp.le.s32.totalorder 2, %s29
      // Predicated region
      $region221: #{tpu_custom_call.1} parent=5 // pred_check
        %p2715 = pneg %p2714
      $region222: #{tpu_custom_call.1} parent=5 // pred_check_branch
        %2717 = sbr.rel (%p2715) target = $region224
      $region223: #{tpu_custom_call.1} parent=5 // pred_region
        %s2718 = ssub.s32 %s29, 2
        // Predicated region
        $region225: #{tpu_custom_call.1} parent=223 // pred_check
          %p2719 = pneg %p246
        $region226: #{tpu_custom_call.1} parent=223 // pred_check_branch
          %2721 = sbr.rel (%p2719) target = $region228
        $region227: #{tpu_custom_call.1} parent=223 // pred_region
          %s2722 = sand.u32 %s231, 1
          %s2723 = scalar_lea.sflag [#allocation8], %s2722
          %s2724 = sand.u32 %s231, 1
          %s2725 = smul.addr %s2724, 2
          %s2726 = scalar_lea.vmem [#allocation7], %s2725
          %2728 = dma.done %s2723, 32
        $region228: #{tpu_custom_call.1} parent=223 // pred_fallthru
          _
        // Predicated region
        $region229: #{tpu_custom_call.1} parent=223 // pred_check
          %p2729 = pneg %p272
        $region230: #{tpu_custom_call.1} parent=223 // pred_check_branch
          %2731 = sbr.rel (%p2729) target = $region232
        $region231: #{tpu_custom_call.1} parent=223 // pred_region
          %s2732 = sand.u32 %s35, 1
          %s2733 = scalar_lea.sflag [#allocation10], %s2732
          %s2734 = sand.u32 %s257, 1
          %s2735 = smul.addr %s2734, 2
          %s2736 = scalar_lea.vmem [#allocation9], %s2735
          %2738 = dma.done %s2733, 32
        $region232: #{tpu_custom_call.1} parent=223 // pred_fallthru
          _
        // Predicated region
        $region233: #{tpu_custom_call.1} parent=223 // pred_check
          %p2739 = pneg %p298
        $region234: #{tpu_custom_call.1} parent=223 // pred_check_branch
          %2741 = sbr.rel (%p2739) target = $region236
        $region235: #{tpu_custom_call.1} parent=223 // pred_region
          %s2742 = sand.u32 %s35, 1
          %s2743 = scalar_lea.sflag [#allocation10], %s2742
          %s2744 = sand.u32 %s283, 1
          %s2745 = smul.addr %s2744, 2
          %s2746 = scalar_lea.vmem [#allocation11], %s2745
          %2748 = dma.done %s2743, 32
        $region236: #{tpu_custom_call.1} parent=223 // pred_fallthru
          _
        // Predicated region
        $region237: #{tpu_custom_call.1} parent=223 // pred_check
          %p2749 = pneg %p324
        $region238: #{tpu_custom_call.1} parent=223 // pred_check_branch
          %2751 = sbr.rel (%p2749) target = $region240
        $region239: #{tpu_custom_call.1} parent=223 // pred_region
          %s2752 = sand.u32 %s309, 1
          %s2753 = scalar_lea.sflag [#allocation13], %s2752
          %s2754 = sand.u32 %s309, 1
          %s2755 = smul.addr %s2754, 2
          %s2756 = scalar_lea.vmem [#allocation12], %s2755
          %2758 = dma.done %s2753, 32
        $region240: #{tpu_custom_call.1} parent=223 // pred_fallthru
          _
      $region224: #{tpu_custom_call.1} parent=5 // pred_fallthru
        _
    $region6: #{tpu_custom_call.1} parent=1 // loop_footer
      %s33 = sadd.s32 1, %s29
    $region7: #{tpu_custom_call.1} parent=1 // loop_footer_branch
      %28 = sbr.rel target = $region3
    $region8: #{tpu_custom_call.1} parent=1 // loop_exit
      _
    %2759 = vsyncpa [#allocation8], 1
    %s2760 = scalar_lea.sflag [#allocation8], 1
    %2761 = vsyncpa %s2760, 1
    %2762 = vsyncpa [#allocation10], 1
    %s2763 = scalar_lea.sflag [#allocation10], 1
    %2764 = vsyncpa %s2763, 1
    %2765 = vsyncpa [#allocation13], 1
    %s2766 = scalar_lea.sflag [#allocation13], 1
    %2767 = vsyncpa %s2766, 1

</llo_original>
